<compile_context>
chip_gen: v6e
topology: v6e:2x2x1
jax: 0.10.0
libtpu: 0.0.40
codegen_flags: <defaults>
</compile_context>

<pallas_src>
import math
from functools import partial

import jax
import jax.numpy as jnp
from jax.experimental import pallas as pl
from jax.experimental.pallas import tpu as pltpu


_NEG_INF = -1e30  # finite "minus infinity": representable in bf16, no NaNs


def mha_kernel(x_ref, bias_ref, wqkv_ref, bqkv_ref, wo_ref, bo_ref,
               out_ref, *attn_refs, num_heads, block_b, seq_len):
    """One grid step = Bt folded batch elements; all matmuls are lane-dense."""
    H, Bt, S = num_heads, block_b, seq_len
    M, D = x_ref.shape                      # M = Bt * S
    d_k = D // H
    f32, bf16 = jnp.float32, jnp.bfloat16

    # ---- fused QKV projection: one (M, D) @ (D, 3D) MXU pass ----------------
    # 1/sqrt(d_k) is already folded into the Q columns of W_qkv / b_qkv.
    qkv = jnp.dot(x_ref[...], wqkv_ref[...], preferred_element_type=f32)
    qkv = qkv + bqkv_ref[...]               # (M, 3D) fp32

    # ---- head split: (M, 3D) -> (Bt*H, S, d_k) bf16, group index g = b*H + h
    # Only static lane/sublane slices + leading-axis stack/concat (no 4-D
    # transposes), so Mosaic lowering stays on well-supported paths.
    def split_heads(base):
        cols = [qkv[:, base + h * d_k: base + (h + 1) * d_k].astype(bf16)
                for h in range(H)]                       # H x (M, d_k)
        th = jnp.stack(cols, axis=0)                     # (H, M, d_k)
        rows = [th[:, b * S:(b + 1) * S, :] for b in range(Bt)]
        return jnp.concatenate(rows, axis=0)             # (Bt*H, S, d_k)

    q = split_heads(0)
    k = split_heads(D)
    v = split_heads(2 * D)

    # ---- attention logits (scale pre-folded) --------------------------------
    scores = jnp.einsum('gqe,gke->gqk', q, k,
                        preferred_element_type=f32)       # (Bt*H, S, S) fp32
    # additive mask bias (Bt, S, S); broadcast over heads along an untiled
    # major dim (no materialized H-fold copy).
    scores = scores.reshape(Bt, H, S, S) + bias_ref[...][:, None, :, :]

    # ---- softmax (fp32) ------------------------------------------------------
    m = jnp.max(scores, axis=-1, keepdims=True)
    e = jnp.exp(scores - m)
    denom = jnp.sum(e, axis=-1, keepdims=True)
    if attn_refs:
        probs = e / denom                   # exact: returned rows sum to 1
        attn_refs[0][...] = probs.astype(attn_refs[0].dtype)
    else:
        probs = e * pl.reciprocal(denom, approx=True)     # EUP slot, perf path
    # TODO(synk): nn.Dropout(p=0.1) on the attention weights omitted
    # (identity / eval mode).

    # ---- context -------------------------------------------------------------
    ctx = jnp.einsum('gqk,gke->gqe',
                     probs.reshape(Bt * H, S, S).astype(bf16), v,
                     preferred_element_type=f32)          # (Bt*H, S, d_k)
    ctx = ctx.reshape(Bt, H, S, d_k)

    # ---- combine heads (head-major lanes) + single K=D output projection ----
    rows = [jnp.concatenate([ctx[b, h] for h in range(H)], axis=-1)   # (S, D)
            for b in range(Bt)]
    ctx2d = jnp.concatenate(rows, axis=0).astype(bf16)                # (M, D)
    out = jnp.dot(ctx2d, wo_ref[...], preferred_element_type=f32) + bo_ref[...]
    out_ref[...] = out.astype(out_ref.dtype)


def _pick_block_b(B, S, max_bt=8):
    """Largest divisor of B that is <= max_bt, keeps >= 2 grid steps and keeps
    the (Bt*S, D) block sublane-aligned.  Falls back to the whole batch."""
    best = 0
    for d in range(1, B + 1):
        if B % d or d > max_bt:
            continue
        if B > 1 and B // d < 2:          # keep >= 2 parallel steps (v7x: 2 TCs)
            continue
        if (d * S) % 8 != 0:              # (8, 128) block constraint on (Bt*S, D)
            continue
        best = max(best, d)
    return best if best else B            # Bt == B -> block equals full dims


def _vmem_limit_bytes(Bt, S, D, H, return_attn, attn_dtype):
    """Rough footprint of one grid step (double-buffered blocks + live
    intermediates) with 2x headroom, instead of a blanket 48 MiB."""
    d_k = D // H
    bf2, f4 = 2, 4
    blocks = (Bt * S * D * bf2            # x block
              + Bt * S * S * bf2          # mask bias block
              + D * 3 * D * bf2 + 3 * D * f4   # W_qkv, b_qkv
              + D * D * bf2 + D * f4      # W_o, b_o
              + Bt * S * D * f4)          # output block
    if return_attn:
        blocks += Bt * H * S * S * jnp.dtype(attn_dtype).itemsize
    blocks *= 2                           # double buffering
    interm = (Bt * S * 3 * D * f4         # qkv fp32
              + 3 * Bt * H * S * d_k * bf2
              + 3 * Bt * H * S * S * f4   # scores / exp / probs
              + Bt * H * S * d_k * f4     # ctx
              + Bt * S * D * (bf2 + f4))  # combined ctx + out fp32
    need = blocks + interm
    return int(min(96 * 2**20, max(16 * 2**20, 2 * need)))


def multi_head_attention(x, mask, params, *, num_heads, block_b=None,
                         return_attn=True, attn_dtype=jnp.float32):
    """Fused MHA forward.  Returns (output, attention_weights or None).

    params = (wq, bq, wk, bk, wv, bv, wo, bo) with weights stored as
    (D_in, D_out) so projections are x @ W + b (== torch Linear's x @ W.T + b).
    """
    B, S, D = x.shape
    H = num_heads
    assert D % H == 0, 'd_model must be divisible by num_heads'
    d_k = D // H
    wq, bq, wk, bk, wv, bv, wo, bo = params

    if block_b is None:
        block_b = _pick_block_b(B, S)
    Bt = block_b
    assert B % Bt == 0, 'block_b must divide batch'
    assert (Bt * S) % 8 == 0 or Bt == B, 'Bt*S must be a multiple of 8'
    grid = (B // Bt,)

    f32, bf16 = jnp.float32, jnp.bfloat16
    scale = 1.0 / math.sqrt(d_k)

    # Fused (D, 3D) QKV weight; softmax scale folded into the Q columns.
    wqkv = jnp.concatenate([wq * scale, wk, wv], axis=1).astype(bf16)   # (D, 3D)
    bqkv = jnp.concatenate([bq * scale, bk, bv], axis=1).astype(f32)    # (1, 3D)
    wo_b = wo.astype(bf16)                                              # (D, D)
    bo_f = bo.astype(f32)                                               # (1, D)

    # Lane-dense activation slab; bf16 halves the x DMA.
    x2d = x.reshape(B * S, D).astype(bf16)
    # Additive mask bias (0 keep / -1e30 drop), bf16: half the fp32 mask DMA.
    mask_bias = jnp.where(mask.reshape(B, S, S) == 0, _NEG_INF, 0.0).astype(bf16)

    kernel = partial(mha_kernel, num_heads=H, block_b=Bt, seq_len=S)

    const2 = lambda b: (0, 0)
    # Weight/bias blocks are constant-index; Pallas skips re-fetching them.
    # (pipeline_mode=pl.Buffered(1) would also halve their resident footprint,
    #  but at this d_model the saving is negligible, so it is left off.)
    in_specs = [
        pl.BlockSpec((Bt * S, D), lambda b: (b, 0)),        # x slab
        pl.BlockSpec((Bt, S, S), lambda b: (b, 0, 0)),      # mask bias
        pl.BlockSpec((D, 3 * D), const2),                   # W_qkv
        pl.BlockSpec((1, 3 * D), const2),                   # b_qkv
        pl.BlockSpec((D, D), const2),                       # W_o
        pl.BlockSpec((1, D), const2),                       # b_o
    ]

    out_shape = [jax.ShapeDtypeStruct((B * S, D), jnp.float32)]
    out_specs = [pl.BlockSpec((Bt * S, D), lambda b: (b, 0))]
    if return_attn:
        out_shape.append(jax.ShapeDtypeStruct((B, H, S, S), attn_dtype))
        out_specs.append(pl.BlockSpec((Bt, H, S, S), lambda b: (b, 0, 0, 0)))

    res = pl.pallas_call(
        kernel,
        out_shape=tuple(out_shape),
        grid_spec=pltpu.PrefetchScalarGridSpec(
            num_scalar_prefetch=0,
            grid=grid,
            in_specs=in_specs,
            out_specs=tuple(out_specs),
        ),
        compiler_params=pltpu.CompilerParams(
            dimension_semantics=("parallel",),
            vmem_limit_bytes=_vmem_limit_bytes(Bt, S, D, H, return_attn,
                                               attn_dtype),
        ),
    )(x2d, mask_bias, wqkv, bqkv, wo_b, bo_f)

    out = res[0].reshape(B, S, D)
    attn = res[1] if return_attn else None
    return out, attn


def reference(x, mask, params, *, num_heads):
    """Pure-JAX fp32 reference mirroring the PyTorch forward (dropout=identity)."""
    B, S, D = x.shape
    d_k = D // num_heads
    wq, bq, wk, bk, wv, bv, wo, bo = params

    def split(t):  # (B,S,D) -> (B,H,S,d_k)
        return t.reshape(B, S, num_heads, d_k).transpose(0, 2, 1, 3)

    Q = split(x @ wq + bq)
    K = split(x @ wk + bk)
    V = split(x @ wv + bv)
    scores = jnp.einsum('bhqd,bhkd->bhqk', Q, K) / math.sqrt(d_k)
    scores = jnp.where(mask == 0, _NEG_INF, scores)
    attn = jax.nn.softmax(scores, axis=-1)
    ctx = jnp.einsum('bhqk,bhkd->bhqd', attn, V)
    ctx = ctx.transpose(0, 2, 1, 3).reshape(B, S, D)
    out = ctx @ wo + bo
    return out, attn


if __name__ == "__main__":
    # Small shapes consistent with the module (d_model % num_heads == 0).
    B, S, D, H = 4, 16, 128, 8

    key = jax.random.PRNGKey(0)
    keys = jax.random.split(key, 10)

    x = jax.random.normal(keys[0], (B, S, D), dtype=jnp.float32)
    mask_full = jnp.ones((B, 1, S, S), dtype=jnp.float32)
    mask_causal = jnp.broadcast_to(jnp.tril(jnp.ones((S, S), jnp.float32)),
                                   (B, 1, S, S))

    scale = 1.0 / math.sqrt(D)
    wq = jax.random.normal(keys[1], (D, D), jnp.float32) * scale
    wk = jax.random.normal(keys[2], (D, D), jnp.float32) * scale
    wv = jax.random.normal(keys[3], (D, D), jnp.float32) * scale
    wo = jax.random.normal(keys[4], (D, D), jnp.float32) * scale
    bq = jax.random.normal(keys[5], (1, D), jnp.float32) * scale
    bk = jax.random.normal(keys[6], (1, D), jnp.float32) * scale
    bv = jax.random.normal(keys[7], (1, D), jnp.float32) * scale
    bo = jax.random.normal(keys[8], (1, D), jnp.float32) * scale
    params = (wq, bq, wk, bk, wv, bv, wo, bo)

    # bf16 MXU operands (fp32 accumulation / softmax) -> bf16-level tolerances.
    OUT_TOL = dict(atol=1e-1, rtol=5e-2)
    ATTN_TOL = dict(atol=3e-2, rtol=3e-2)

    # 1) dense (all-ones) mask, both outputs (module semantics)
    out, attn = multi_head_attention(x, mask_full, params, num_heads=H)
    out, attn = jax.block_until_ready((out, attn))
    ref_out, ref_attn = reference(x, mask_full, params, num_heads=H)
    assert out.shape == (B, S, D)
    assert attn.shape == (B, H, S, S)
    assert jnp.allclose(out, ref_out, **OUT_TOL)
    assert jnp.allclose(attn, ref_attn, **ATTN_TOL)

    # 2) causal mask exercises the masking path
    out_c, attn_c = multi_head_attention(x, mask_causal, params, num_heads=H)
    out_c, attn_c = jax.block_until_ready((out_c, attn_c))
    ref_out_c, ref_attn_c = reference(x, mask_causal, params, num_heads=H)
    assert jnp.allclose(out_c, ref_out_c, **OUT_TOL)
    assert jnp.allclose(attn_c, ref_attn_c, **ATTN_TOL)

    # 3) fast path: skip the (B, H, S, S) attention-weights writeback entirely
    out_fast, attn_none = multi_head_attention(x, mask_full, params,
                                               num_heads=H, return_attn=False)
    out_fast = jax.block_until_ready(out_fast)
    assert attn_none is None
    assert jnp.allclose(out_fast, ref_out, **OUT_TOL)

    # 4) bf16 attention-weights writeback (halves the dominant HBM store)
    out_b, attn_b = multi_head_attention(x, mask_causal, params, num_heads=H,
                                         attn_dtype=jnp.bfloat16)
    out_b, attn_b = jax.block_until_ready((out_b, attn_b))
    assert attn_b.dtype == jnp.bfloat16
    assert jnp.allclose(out_b, ref_out_c, **OUT_TOL)
    assert jnp.allclose(attn_b.astype(jnp.float32), ref_attn_c,
                        atol=5e-2, rtol=5e-2)

    print("KERNEL_OK")
</pallas_src>

<mosaic_0001>
module attributes {stable_mosaic.version = 11 : i64} {
  func.func @mha_kernel(%arg0: i32, %arg1: memref<32x128xbf16, #tpu.memory_space<vmem>>, %arg2: memref<2x16x16xbf16, #tpu.memory_space<vmem>>, %arg3: memref<128x384xbf16, #tpu.memory_space<vmem>>, %arg4: memref<1x384xf32, #tpu.memory_space<vmem>>, %arg5: memref<128x128xbf16, #tpu.memory_space<vmem>>, %arg6: memref<1x128xf32, #tpu.memory_space<vmem>>, %arg7: memref<32x128xf32, #tpu.memory_space<vmem>>, %arg8: memref<2x8x16x16xf32, #tpu.memory_space<vmem>>) attributes {dimension_semantics = [#tpu.dimension_semantics<parallel>], iteration_bounds = array<i64: 2>, scalar_prefetch = 0 : i64, scratch_operands = 0 : i64, tpu.core_type = #tpu.core_type<tc>, window_params = [{transform_indices = @transform_0, window_bounds = array<i64: 32, 128>}, {transform_indices = @transform_1, window_bounds = array<i64: 2, 16, 16>}, {pipeline_mode = #tpu.pipeline_mode<synchronous>, transform_indices = @transform_2, window_bounds = array<i64: 128, 384>}, {pipeline_mode = #tpu.pipeline_mode<synchronous>, transform_indices = @transform_3, window_bounds = array<i64: 1, 384>}, {pipeline_mode = #tpu.pipeline_mode<synchronous>, transform_indices = @transform_4, window_bounds = array<i64: 128, 128>}, {pipeline_mode = #tpu.pipeline_mode<synchronous>, transform_indices = @transform_5, window_bounds = array<i64: 1, 128>}, {transform_indices = @transform_6, window_bounds = array<i64: 32, 128>}, {transform_indices = @transform_7, window_bounds = array<i64: 2, 8, 16, 16>}]} {
    %c0 = arith.constant 0 : index
    %c0_0 = arith.constant 0 : index
    %0 = vector.load %arg1[%c0, %c0_0] : memref<32x128xbf16, #tpu.memory_space<vmem>>, vector<32x128xbf16>
    %c0_1 = arith.constant 0 : index
    %c0_2 = arith.constant 0 : index
    %1 = vector.load %arg3[%c0_1, %c0_2] : memref<128x384xbf16, #tpu.memory_space<vmem>>, vector<128x384xbf16>
    %cst = arith.constant dense<0.000000e+00> : vector<32x384xf32>
    %2 = tpu.matmul %0, %1, %cst {dimension_numbers = #tpu.dot_dimension_numbers<[1], [0], [0], [1], [0, 0, 1, 1], [], []>} : vector<32x128xbf16>, vector<128x384xbf16>, vector<32x384xf32> -> vector<32x384xf32>
    %c0_3 = arith.constant 0 : index
    %c0_4 = arith.constant 0 : index
    %3 = vector.load %arg4[%c0_3, %c0_4] : memref<1x384xf32, #tpu.memory_space<vmem>>, vector<1x384xf32>
    %4 = vector.broadcast %3 : vector<1x384xf32> to vector<32x384xf32>
    %5 = arith.addf %2, %4 : vector<32x384xf32>
    %6 = vector.extract_strided_slice %5 {offsets = [0, 0], sizes = [32, 16], strides = [1, 1]} : vector<32x384xf32> to vector<32x16xf32>
    %7 = arith.truncf %6 : vector<32x16xf32> to vector<32x16xbf16>
    %8 = vector.extract_strided_slice %5 {offsets = [0, 16], sizes = [32, 16], strides = [1, 1]} : vector<32x384xf32> to vector<32x16xf32>
    %9 = arith.truncf %8 : vector<32x16xf32> to vector<32x16xbf16>
    %10 = vector.extract_strided_slice %5 {offsets = [0, 32], sizes = [32, 16], strides = [1, 1]} : vector<32x384xf32> to vector<32x16xf32>
    %11 = arith.truncf %10 : vector<32x16xf32> to vector<32x16xbf16>
    %12 = vector.extract_strided_slice %5 {offsets = [0, 48], sizes = [32, 16], strides = [1, 1]} : vector<32x384xf32> to vector<32x16xf32>
    %13 = arith.truncf %12 : vector<32x16xf32> to vector<32x16xbf16>
    %14 = vector.extract_strided_slice %5 {offsets = [0, 64], sizes = [32, 16], strides = [1, 1]} : vector<32x384xf32> to vector<32x16xf32>
    %15 = arith.truncf %14 : vector<32x16xf32> to vector<32x16xbf16>
    %16 = vector.extract_strided_slice %5 {offsets = [0, 80], sizes = [32, 16], strides = [1, 1]} : vector<32x384xf32> to vector<32x16xf32>
    %17 = arith.truncf %16 : vector<32x16xf32> to vector<32x16xbf16>
    %18 = vector.extract_strided_slice %5 {offsets = [0, 96], sizes = [32, 16], strides = [1, 1]} : vector<32x384xf32> to vector<32x16xf32>
    %19 = arith.truncf %18 : vector<32x16xf32> to vector<32x16xbf16>
    %20 = vector.extract_strided_slice %5 {offsets = [0, 112], sizes = [32, 16], strides = [1, 1]} : vector<32x384xf32> to vector<32x16xf32>
    %21 = arith.truncf %20 : vector<32x16xf32> to vector<32x16xbf16>
    %22 = vector.shape_cast %7 : vector<32x16xbf16> to vector<1x32x16xbf16>
    %23 = vector.shape_cast %9 : vector<32x16xbf16> to vector<1x32x16xbf16>
    %24 = vector.shape_cast %11 : vector<32x16xbf16> to vector<1x32x16xbf16>
    %25 = vector.shape_cast %13 : vector<32x16xbf16> to vector<1x32x16xbf16>
    %26 = vector.shape_cast %15 : vector<32x16xbf16> to vector<1x32x16xbf16>
    %27 = vector.shape_cast %17 : vector<32x16xbf16> to vector<1x32x16xbf16>
    %28 = vector.shape_cast %19 : vector<32x16xbf16> to vector<1x32x16xbf16>
    %29 = vector.shape_cast %21 : vector<32x16xbf16> to vector<1x32x16xbf16>
    %30 = tpu.concatenate %22, %23, %24, %25, %26, %27, %28, %29 in 0 : vector<1x32x16xbf16>, vector<1x32x16xbf16>, vector<1x32x16xbf16>, vector<1x32x16xbf16>, vector<1x32x16xbf16>, vector<1x32x16xbf16>, vector<1x32x16xbf16>, vector<1x32x16xbf16> -> vector<8x32x16xbf16>
    %31 = vector.extract_strided_slice %30 {offsets = [0, 0, 0], sizes = [8, 16, 16], strides = [1, 1, 1]} : vector<8x32x16xbf16> to vector<8x16x16xbf16>
    %32 = vector.extract_strided_slice %30 {offsets = [0, 16, 0], sizes = [8, 16, 16], strides = [1, 1, 1]} : vector<8x32x16xbf16> to vector<8x16x16xbf16>
    %33 = tpu.concatenate %31, %32 in 0 : vector<8x16x16xbf16>, vector<8x16x16xbf16> -> vector<16x16x16xbf16>
    %34 = vector.extract_strided_slice %5 {offsets = [0, 128], sizes = [32, 16], strides = [1, 1]} : vector<32x384xf32> to vector<32x16xf32>
    %35 = arith.truncf %34 : vector<32x16xf32> to vector<32x16xbf16>
    %36 = vector.extract_strided_slice %5 {offsets = [0, 144], sizes = [32, 16], strides = [1, 1]} : vector<32x384xf32> to vector<32x16xf32>
    %37 = arith.truncf %36 : vector<32x16xf32> to vector<32x16xbf16>
    %38 = vector.extract_strided_slice %5 {offsets = [0, 160], sizes = [32, 16], strides = [1, 1]} : vector<32x384xf32> to vector<32x16xf32>
    %39 = arith.truncf %38 : vector<32x16xf32> to vector<32x16xbf16>
    %40 = vector.extract_strided_slice %5 {offsets = [0, 176], sizes = [32, 16], strides = [1, 1]} : vector<32x384xf32> to vector<32x16xf32>
    %41 = arith.truncf %40 : vector<32x16xf32> to vector<32x16xbf16>
    %42 = vector.extract_strided_slice %5 {offsets = [0, 192], sizes = [32, 16], strides = [1, 1]} : vector<32x384xf32> to vector<32x16xf32>
    %43 = arith.truncf %42 : vector<32x16xf32> to vector<32x16xbf16>
    %44 = vector.extract_strided_slice %5 {offsets = [0, 208], sizes = [32, 16], strides = [1, 1]} : vector<32x384xf32> to vector<32x16xf32>
    %45 = arith.truncf %44 : vector<32x16xf32> to vector<32x16xbf16>
    %46 = vector.extract_strided_slice %5 {offsets = [0, 224], sizes = [32, 16], strides = [1, 1]} : vector<32x384xf32> to vector<32x16xf32>
    %47 = arith.truncf %46 : vector<32x16xf32> to vector<32x16xbf16>
    %48 = vector.extract_strided_slice %5 {offsets = [0, 240], sizes = [32, 16], strides = [1, 1]} : vector<32x384xf32> to vector<32x16xf32>
    %49 = arith.truncf %48 : vector<32x16xf32> to vector<32x16xbf16>
    %50 = vector.shape_cast %35 : vector<32x16xbf16> to vector<1x32x16xbf16>
    %51 = vector.shape_cast %37 : vector<32x16xbf16> to vector<1x32x16xbf16>
    %52 = vector.shape_cast %39 : vector<32x16xbf16> to vector<1x32x16xbf16>
    %53 = vector.shape_cast %41 : vector<32x16xbf16> to vector<1x32x16xbf16>
    %54 = vector.shape_cast %43 : vector<32x16xbf16> to vector<1x32x16xbf16>
    %55 = vector.shape_cast %45 : vector<32x16xbf16> to vector<1x32x16xbf16>
    %56 = vector.shape_cast %47 : vector<32x16xbf16> to vector<1x32x16xbf16>
    %57 = vector.shape_cast %49 : vector<32x16xbf16> to vector<1x32x16xbf16>
    %58 = tpu.concatenate %50, %51, %52, %53, %54, %55, %56, %57 in 0 : vector<1x32x16xbf16>, vector<1x32x16xbf16>, vector<1x32x16xbf16>, vector<1x32x16xbf16>, vector<1x32x16xbf16>, vector<1x32x16xbf16>, vector<1x32x16xbf16>, vector<1x32x16xbf16> -> vector<8x32x16xbf16>
    %59 = vector.extract_strided_slice %58 {offsets = [0, 0, 0], sizes = [8, 16, 16], strides = [1, 1, 1]} : vector<8x32x16xbf16> to vector<8x16x16xbf16>
    %60 = vector.extract_strided_slice %58 {offsets = [0, 16, 0], sizes = [8, 16, 16], strides = [1, 1, 1]} : vector<8x32x16xbf16> to vector<8x16x16xbf16>
    %61 = tpu.concatenate %59, %60 in 0 : vector<8x16x16xbf16>, vector<8x16x16xbf16> -> vector<16x16x16xbf16>
    %62 = vector.extract_strided_slice %5 {offsets = [0, 256], sizes = [32, 16], strides = [1, 1]} : vector<32x384xf32> to vector<32x16xf32>
    %63 = arith.truncf %62 : vector<32x16xf32> to vector<32x16xbf16>
    %64 = vector.extract_strided_slice %5 {offsets = [0, 272], sizes = [32, 16], strides = [1, 1]} : vector<32x384xf32> to vector<32x16xf32>
    %65 = arith.truncf %64 : vector<32x16xf32> to vector<32x16xbf16>
    %66 = vector.extract_strided_slice %5 {offsets = [0, 288], sizes = [32, 16], strides = [1, 1]} : vector<32x384xf32> to vector<32x16xf32>
    %67 = arith.truncf %66 : vector<32x16xf32> to vector<32x16xbf16>
    %68 = vector.extract_strided_slice %5 {offsets = [0, 304], sizes = [32, 16], strides = [1, 1]} : vector<32x384xf32> to vector<32x16xf32>
    %69 = arith.truncf %68 : vector<32x16xf32> to vector<32x16xbf16>
    %70 = vector.extract_strided_slice %5 {offsets = [0, 320], sizes = [32, 16], strides = [1, 1]} : vector<32x384xf32> to vector<32x16xf32>
    %71 = arith.truncf %70 : vector<32x16xf32> to vector<32x16xbf16>
    %72 = vector.extract_strided_slice %5 {offsets = [0, 336], sizes = [32, 16], strides = [1, 1]} : vector<32x384xf32> to vector<32x16xf32>
    %73 = arith.truncf %72 : vector<32x16xf32> to vector<32x16xbf16>
    %74 = vector.extract_strided_slice %5 {offsets = [0, 352], sizes = [32, 16], strides = [1, 1]} : vector<32x384xf32> to vector<32x16xf32>
    %75 = arith.truncf %74 : vector<32x16xf32> to vector<32x16xbf16>
    %76 = vector.extract_strided_slice %5 {offsets = [0, 368], sizes = [32, 16], strides = [1, 1]} : vector<32x384xf32> to vector<32x16xf32>
    %77 = arith.truncf %76 : vector<32x16xf32> to vector<32x16xbf16>
    %78 = vector.shape_cast %63 : vector<32x16xbf16> to vector<1x32x16xbf16>
    %79 = vector.shape_cast %65 : vector<32x16xbf16> to vector<1x32x16xbf16>
    %80 = vector.shape_cast %67 : vector<32x16xbf16> to vector<1x32x16xbf16>
    %81 = vector.shape_cast %69 : vector<32x16xbf16> to vector<1x32x16xbf16>
    %82 = vector.shape_cast %71 : vector<32x16xbf16> to vector<1x32x16xbf16>
    %83 = vector.shape_cast %73 : vector<32x16xbf16> to vector<1x32x16xbf16>
    %84 = vector.shape_cast %75 : vector<32x16xbf16> to vector<1x32x16xbf16>
    %85 = vector.shape_cast %77 : vector<32x16xbf16> to vector<1x32x16xbf16>
    %86 = tpu.concatenate %78, %79, %80, %81, %82, %83, %84, %85 in 0 : vector<1x32x16xbf16>, vector<1x32x16xbf16>, vector<1x32x16xbf16>, vector<1x32x16xbf16>, vector<1x32x16xbf16>, vector<1x32x16xbf16>, vector<1x32x16xbf16>, vector<1x32x16xbf16> -> vector<8x32x16xbf16>
    %87 = vector.extract_strided_slice %86 {offsets = [0, 0, 0], sizes = [8, 16, 16], strides = [1, 1, 1]} : vector<8x32x16xbf16> to vector<8x16x16xbf16>
    %88 = vector.extract_strided_slice %86 {offsets = [0, 16, 0], sizes = [8, 16, 16], strides = [1, 1, 1]} : vector<8x32x16xbf16> to vector<8x16x16xbf16>
    %89 = tpu.concatenate %87, %88 in 0 : vector<8x16x16xbf16>, vector<8x16x16xbf16> -> vector<16x16x16xbf16>
    "tpu.trace_start"() <{level = 10 : i32, message = "gqe,gke->gqk"}> : () -> ()
    %cst_5 = arith.constant dense<0.000000e+00> : vector<16x16x16xf32>
    %90 = tpu.matmul %33, %61, %cst_5 {dimension_numbers = #tpu.dot_dimension_numbers<[2], [2], [1], [1], [0, 0, 0, 1, 1, 1], [0], [0]>} : vector<16x16x16xbf16>, vector<16x16x16xbf16>, vector<16x16x16xf32> -> vector<16x16x16xf32>
    "tpu.trace_stop"() : () -> ()
    %91 = vector.shape_cast %90 : vector<16x16x16xf32> to vector<2x8x16x16xf32>
    %c0_6 = arith.constant 0 : index
    %c0_7 = arith.constant 0 : index
    %c0_8 = arith.constant 0 : index
    %92 = vector.load %arg2[%c0_6, %c0_7, %c0_8] : memref<2x16x16xbf16, #tpu.memory_space<vmem>>, vector<2x16x16xbf16>
    %93 = vector.shape_cast %92 : vector<2x16x16xbf16> to vector<2x1x16x16xbf16>
    %94 = arith.extf %93 : vector<2x1x16x16xbf16> to vector<2x1x16x16xf32>
    %95 = vector.broadcast %94 : vector<2x1x16x16xf32> to vector<2x8x16x16xf32>
    %96 = arith.addf %91, %95 : vector<2x8x16x16xf32>
    %cst_9 = arith.constant dense<0xFF800000> : vector<2x8x16xf32>
    %97 = vector.multi_reduction <maximumf>, %96, %cst_9 [3] : vector<2x8x16x16xf32> to vector<2x8x16xf32>
    %98 = vector.shape_cast %97 : vector<2x8x16xf32> to vector<2x8x16x1xf32>
    %99 = vector.broadcast %98 : vector<2x8x16x1xf32> to vector<2x8x16x16xf32>
    %100 = arith.subf %96, %99 : vector<2x8x16x16xf32>
    %101 = math.exp %100 : vector<2x8x16x16xf32>
    %cst_10 = arith.constant dense<0.000000e+00> : vector<2x8x16xf32>
    %102 = vector.multi_reduction <add>, %101, %cst_10 [3] : vector<2x8x16x16xf32> to vector<2x8x16xf32>
    %103 = vector.shape_cast %102 : vector<2x8x16xf32> to vector<2x8x16x1xf32>
    %104 = vector.broadcast %103 : vector<2x8x16x1xf32> to vector<2x8x16x16xf32>
    %105 = arith.divf %101, %104 : vector<2x8x16x16xf32>
    %c0_11 = arith.constant 0 : index
    %c0_12 = arith.constant 0 : index
    %c0_13 = arith.constant 0 : index
    %c0_14 = arith.constant 0 : index
    %106 = vector.load %arg8[%c0_11, %c0_12, %c0_13, %c0_14] : memref<2x8x16x16xf32, #tpu.memory_space<vmem>>, vector<2x8x16x16xf32>
    tpu.vector_store %arg8[%c0_11, %c0_12, %c0_13, %c0_14], %105 {strides = array<i32>} : memref<2x8x16x16xf32, #tpu.memory_space<vmem>>, vector<2x8x16x16xf32>,
    %107 = vector.shape_cast %105 : vector<2x8x16x16xf32> to vector<16x16x16xf32>
    %108 = arith.truncf %107 : vector<16x16x16xf32> to vector<16x16x16xbf16>
    "tpu.trace_start"() <{level = 10 : i32, message = "gqk,gke->gqe"}> : () -> ()
    %cst_15 = arith.constant dense<0.000000e+00> : vector<16x16x16xf32>
    %109 = tpu.matmul %108, %89, %cst_15 {dimension_numbers = #tpu.dot_dimension_numbers<[2], [1], [1], [2], [0, 0, 0, 1, 1, 2], [0], [0]>} : vector<16x16x16xbf16>, vector<16x16x16xbf16>, vector<16x16x16xf32> -> vector<16x16x16xf32>
    "tpu.trace_stop"() : () -> ()
    %110 = vector.shape_cast %109 : vector<16x16x16xf32> to vector<2x8x16x16xf32>
    %111 = vector.extract_strided_slice %110 {offsets = [0, 0, 0, 0], sizes = [1, 1, 16, 16], strides = [1, 1, 1, 1]} : vector<2x8x16x16xf32> to vector<1x1x16x16xf32>
    %112 = vector.shape_cast %111 : vector<1x1x16x16xf32> to vector<16x16xf32>
    %113 = vector.extract_strided_slice %110 {offsets = [0, 1, 0, 0], sizes = [1, 1, 16, 16], strides = [1, 1, 1, 1]} : vector<2x8x16x16xf32> to vector<1x1x16x16xf32>
    %114 = vector.shape_cast %113 : vector<1x1x16x16xf32> to vector<16x16xf32>
    %115 = vector.extract_strided_slice %110 {offsets = [0, 2, 0, 0], sizes = [1, 1, 16, 16], strides = [1, 1, 1, 1]} : vector<2x8x16x16xf32> to vector<1x1x16x16xf32>
    %116 = vector.shape_cast %115 : vector<1x1x16x16xf32> to vector<16x16xf32>
    %117 = vector.extract_strided_slice %110 {offsets = [0, 3, 0, 0], sizes = [1, 1, 16, 16], strides = [1, 1, 1, 1]} : vector<2x8x16x16xf32> to vector<1x1x16x16xf32>
    %118 = vector.shape_cast %117 : vector<1x1x16x16xf32> to vector<16x16xf32>
    %119 = vector.extract_strided_slice %110 {offsets = [0, 4, 0, 0], sizes = [1, 1, 16, 16], strides = [1, 1, 1, 1]} : vector<2x8x16x16xf32> to vector<1x1x16x16xf32>
    %120 = vector.shape_cast %119 : vector<1x1x16x16xf32> to vector<16x16xf32>
    %121 = vector.extract_strided_slice %110 {offsets = [0, 5, 0, 0], sizes = [1, 1, 16, 16], strides = [1, 1, 1, 1]} : vector<2x8x16x16xf32> to vector<1x1x16x16xf32>
    %122 = vector.shape_cast %121 : vector<1x1x16x16xf32> to vector<16x16xf32>
    %123 = vector.extract_strided_slice %110 {offsets = [0, 6, 0, 0], sizes = [1, 1, 16, 16], strides = [1, 1, 1, 1]} : vector<2x8x16x16xf32> to vector<1x1x16x16xf32>
    %124 = vector.shape_cast %123 : vector<1x1x16x16xf32> to vector<16x16xf32>
    %125 = vector.extract_strided_slice %110 {offsets = [0, 7, 0, 0], sizes = [1, 1, 16, 16], strides = [1, 1, 1, 1]} : vector<2x8x16x16xf32> to vector<1x1x16x16xf32>
    %126 = vector.shape_cast %125 : vector<1x1x16x16xf32> to vector<16x16xf32>
    %127 = tpu.concatenate %112, %114, %116, %118, %120, %122, %124, %126 in 1 : vector<16x16xf32>, vector<16x16xf32>, vector<16x16xf32>, vector<16x16xf32>, vector<16x16xf32>, vector<16x16xf32>, vector<16x16xf32>, vector<16x16xf32> -> vector<16x128xf32>
    %128 = vector.extract_strided_slice %110 {offsets = [1, 0, 0, 0], sizes = [1, 1, 16, 16], strides = [1, 1, 1, 1]} : vector<2x8x16x16xf32> to vector<1x1x16x16xf32>
    %129 = vector.shape_cast %128 : vector<1x1x16x16xf32> to vector<16x16xf32>
    %130 = vector.extract_strided_slice %110 {offsets = [1, 1, 0, 0], sizes = [1, 1, 16, 16], strides = [1, 1, 1, 1]} : vector<2x8x16x16xf32> to vector<1x1x16x16xf32>
    %131 = vector.shape_cast %130 : vector<1x1x16x16xf32> to vector<16x16xf32>
    %132 = vector.extract_strided_slice %110 {offsets = [1, 2, 0, 0], sizes = [1, 1, 16, 16], strides = [1, 1, 1, 1]} : vector<2x8x16x16xf32> to vector<1x1x16x16xf32>
    %133 = vector.shape_cast %132 : vector<1x1x16x16xf32> to vector<16x16xf32>
    %134 = vector.extract_strided_slice %110 {offsets = [1, 3, 0, 0], sizes = [1, 1, 16, 16], strides = [1, 1, 1, 1]} : vector<2x8x16x16xf32> to vector<1x1x16x16xf32>
    %135 = vector.shape_cast %134 : vector<1x1x16x16xf32> to vector<16x16xf32>
    %136 = vector.extract_strided_slice %110 {offsets = [1, 4, 0, 0], sizes = [1, 1, 16, 16], strides = [1, 1, 1, 1]} : vector<2x8x16x16xf32> to vector<1x1x16x16xf32>
    %137 = vector.shape_cast %136 : vector<1x1x16x16xf32> to vector<16x16xf32>
    %138 = vector.extract_strided_slice %110 {offsets = [1, 5, 0, 0], sizes = [1, 1, 16, 16], strides = [1, 1, 1, 1]} : vector<2x8x16x16xf32> to vector<1x1x16x16xf32>
    %139 = vector.shape_cast %138 : vector<1x1x16x16xf32> to vector<16x16xf32>
    %140 = vector.extract_strided_slice %110 {offsets = [1, 6, 0, 0], sizes = [1, 1, 16, 16], strides = [1, 1, 1, 1]} : vector<2x8x16x16xf32> to vector<1x1x16x16xf32>
    %141 = vector.shape_cast %140 : vector<1x1x16x16xf32> to vector<16x16xf32>
    %142 = vector.extract_strided_slice %110 {offsets = [1, 7, 0, 0], sizes = [1, 1, 16, 16], strides = [1, 1, 1, 1]} : vector<2x8x16x16xf32> to vector<1x1x16x16xf32>
    %143 = vector.shape_cast %142 : vector<1x1x16x16xf32> to vector<16x16xf32>
    %144 = tpu.concatenate %129, %131, %133, %135, %137, %139, %141, %143 in 1 : vector<16x16xf32>, vector<16x16xf32>, vector<16x16xf32>, vector<16x16xf32>, vector<16x16xf32>, vector<16x16xf32>, vector<16x16xf32>, vector<16x16xf32> -> vector<16x128xf32>
    %145 = tpu.concatenate %127, %144 in 0 : vector<16x128xf32>, vector<16x128xf32> -> vector<32x128xf32>
    %146 = arith.truncf %145 : vector<32x128xf32> to vector<32x128xbf16>
    %c0_16 = arith.constant 0 : index
    %c0_17 = arith.constant 0 : index
    %147 = vector.load %arg5[%c0_16, %c0_17] : memref<128x128xbf16, #tpu.memory_space<vmem>>, vector<128x128xbf16>
    %cst_18 = arith.constant dense<0.000000e+00> : vector<32x128xf32>
    %148 = tpu.matmul %146, %147, %cst_18 {dimension_numbers = #tpu.dot_dimension_numbers<[1], [0], [0], [1], [0, 0, 1, 1], [], []>} : vector<32x128xbf16>, vector<128x128xbf16>, vector<32x128xf32> -> vector<32x128xf32>
    %c0_19 = arith.constant 0 : index
    %c0_20 = arith.constant 0 : index
    %149 = vector.load %arg6[%c0_19, %c0_20] : memref<1x128xf32, #tpu.memory_space<vmem>>, vector<1x128xf32>
    %150 = vector.broadcast %149 : vector<1x128xf32> to vector<32x128xf32>
    %151 = arith.addf %148, %150 : vector<32x128xf32>
    %c0_21 = arith.constant 0 : index
    %c0_22 = arith.constant 0 : index
    %152 = vector.load %arg7[%c0_21, %c0_22] : memref<32x128xf32, #tpu.memory_space<vmem>>, vector<32x128xf32>
    tpu.vector_store %arg7[%c0_21, %c0_22], %151 {strides = array<i32>} : memref<32x128xf32, #tpu.memory_space<vmem>>, vector<32x128xf32>,
    return
  }
  func.func @transform_0(%arg0: i32) -> (i32, i32) {
    %c0_i32 = arith.constant 0 : i32
    %c0_i32_0 = arith.constant 0 : i32
    return %arg0, %c0_i32 : i32, i32
  }
  func.func @transform_1(%arg0: i32) -> (i32, i32, i32) {
    %c0_i32 = arith.constant 0 : i32
    %c0_i32_0 = arith.constant 0 : i32
    %c0_i32_1 = arith.constant 0 : i32
    return %arg0, %c0_i32, %c0_i32_0 : i32, i32, i32
  }
  func.func @transform_2(%arg0: i32) -> (i32, i32) {
    %c0_i32 = arith.constant 0 : i32
    %c0_i32_0 = arith.constant 0 : i32
    %c0_i32_1 = arith.constant 0 : i32
    return %c0_i32, %c0_i32_0 : i32, i32
  }
  func.func @transform_3(%arg0: i32) -> (i32, i32) {
    %c0_i32 = arith.constant 0 : i32
    %c0_i32_0 = arith.constant 0 : i32
    %c0_i32_1 = arith.constant 0 : i32
    return %c0_i32, %c0_i32_0 : i32, i32
  }
  func.func @transform_4(%arg0: i32) -> (i32, i32) {
    %c0_i32 = arith.constant 0 : i32
    %c0_i32_0 = arith.constant 0 : i32
    %c0_i32_1 = arith.constant 0 : i32
    return %c0_i32, %c0_i32_0 : i32, i32
  }
  func.func @transform_5(%arg0: i32) -> (i32, i32) {
    %c0_i32 = arith.constant 0 : i32
    %c0_i32_0 = arith.constant 0 : i32
    %c0_i32_1 = arith.constant 0 : i32
    return %c0_i32, %c0_i32_0 : i32, i32
  }
  func.func @transform_6(%arg0: i32) -> (i32, i32) {
    %c0_i32 = arith.constant 0 : i32
    %c0_i32_0 = arith.constant 0 : i32
    return %arg0, %c0_i32 : i32, i32
  }
  func.func @transform_7(%arg0: i32) -> (i32, i32, i32, i32) {
    %c0_i32 = arith.constant 0 : i32
    %c0_i32_0 = arith.constant 0 : i32
    %c0_i32_1 = arith.constant 0 : i32
    %c0_i32_2 = arith.constant 0 : i32
    return %arg0, %c0_i32, %c0_i32_0, %c0_i32_1 : i32, i32, i32, i32
  }
}

</mosaic_0001>

<llo_original>
// kernel: tpu_custom_call.1
$region0: #{tpu_custom_call.1}
  #allocation0 [shape = 'u32[]', space=smem, size = 0x4, offset = 0x4, fixed_abs, tag = 'smem constant byte address 0x4 - core index']
  #allocation1 [shape = 'u32[144,128]{1,0:T(1,128)}', space=vmem, size = 0x12000, scoped, tag = 'internal scratch']
  %s0 = inlined_call_operand.hbm [shape: bf16[64,128], index: 0, kind: input, shape index: {}]
  %s1 = inlined_call_operand.hbm [shape: bf16[4,16,16], index: 1, kind: input, shape index: {}]
  %s2 = inlined_call_operand.hbm [shape: bf16[128,384], index: 2, kind: input, shape index: {}]
  %s3 = inlined_call_operand.vmem [shape: f32[1,384], index: 3, kind: input, shape index: {}]
  %s4 = inlined_call_operand.hbm [shape: bf16[128,128], index: 4, kind: input, shape index: {}]
  %s5 = inlined_call_operand.vmem [shape: f32[1,128], index: 5, kind: input, shape index: {}]
  %s6 = inlined_call_operand.hbm [shape: f32[64,128], index: 6, kind: output, shape index: {0}]
  %s7 = inlined_call_operand.hbm [shape: f32[4,8,16,16], index: 7, kind: output, shape index: {1}]
  %8 = xla_tuple %s6, %s7
  %s9 = sld [smem:[#allocation0]]
  $region81: #{tpu_custom_call.1} parent=0
    _
  %s11 = ssub.s32 1, %s9
  %s12 = scalar_select 0, %s11, %s9
  $region1: #{tpu_custom_call.1} parent=0
    #allocation2 [shape = 'u8[16384]{0}', space=vmem, size = 0x4000, scoped, tag = 'input window, operand 0']
    #allocation3 [shape = 's32[2]{0}', space=sflag, size = 0x8, scoped, tag = 'scoped memory for tpu_custom_call.1']
    #allocation4 [shape = 's32[2]{0}', space=sflag, size = 0x8, scoped, tag = 'scoped memory for tpu_custom_call.1']
    #allocation5 [shape = 'u8[16384]{0}', space=vmem, size = 0x4000, scoped, tag = 'input window, operand 1']
    #allocation6 [shape = 's32[2]{0}', space=sflag, size = 0x8, scoped, tag = 'scoped memory for tpu_custom_call.1']
    #allocation7 [shape = 'u8[98304]{0}', space=vmem, size = 0x18000, scoped, tag = 'input window, operand 2, single buffered']
    #allocation8 [shape = 'u8[32768]{0}', space=vmem, size = 0x8000, scoped, tag = 'input window, operand 4, single buffered']
    #allocation9 [shape = 's32[1]{0}', space=sflag, size = 0x4, scoped, tag = 'scoped memory for tpu_custom_call.1']
    #allocation10 [shape = 'u8[32768]{0}', space=vmem, size = 0x8000, scoped, tag = 'output window, operand 0']
    #allocation11 [shape = 'u8[262144]{0}', space=vmem, size = 0x40000, scoped, tag = 'output window, operand 1']
    #allocation12 [shape = 's32[2]{0}', space=sflag, size = 0x8, scoped, tag = 'scoped memory for tpu_custom_call.1']
    %13 = vsyncpa [#allocation3], 0
    %s14 = scalar_lea.sflag [#allocation3], 1
    %15 = vsyncpa %s14, 0
    %16 = vsyncpa [#allocation6], 0
    %s17 = scalar_lea.sflag [#allocation6], 1
    %18 = vsyncpa %s17, 0
    %19 = vsyncpa [#allocation9], 0
    %20 = vsyncpa [#allocation4], 0
    %s21 = scalar_lea.sflag [#allocation4], 1
    %22 = vsyncpa %s21, 0
    %23 = vsyncpa [#allocation12], 0
    %s24 = scalar_lea.sflag [#allocation12], 1
    %25 = vsyncpa %s24, 0
    loop: start=0, step=1, limit=4
    $region2: #{tpu_custom_call.1} parent=1 // loop_pre_header
      _
    $region3: #{tpu_custom_call.1} parent=1 // loop_header
      %s27 = sphi 0, %s31
      %p28 = scmp.ge.s32.totalorder %s27, 4
      %s37 = sphi 0, %s39
      %s40 = sphi 0, %s37
      %s41 = sphi 0, %s40
      %s57 = sphi 0, %s41
      %s63 = sphi 0, %s65
      %s66 = sphi 0, %s63
      %s67 = sphi 0, %s66
      %s83 = sphi 0, %s67
      %s87 = sphi 0, %s87
      %s89 = sphi 0, %s87
      %s90 = sphi 0, %s89
      %s104 = sphi 0, %s90
      %s108 = sphi 0, %s108
      %s110 = sphi 0, %s108
      %s111 = sphi 0, %s110
      %s125 = sphi 0, %s111
      %s129 = sphi 0, %s129
      %s131 = sphi 0, %s129
      %s132 = sphi 0, %s131
      %s146 = sphi 0, %s132
      %s150 = sphi 0, %s150
      %s152 = sphi 0, %s150
      %s153 = sphi 0, %s152
      %s167 = sphi 0, %s153
      %s173 = sphi 0, %s175
      %s176 = sphi 0, %s173
      %s177 = sphi 0, %s176
      %s193 = sphi 0, %s177
      %s199 = sphi 0, %s201
      %s202 = sphi 0, %s199
      %s203 = sphi 0, %s202
      %s219 = sphi 0, %s203
    $region4: #{tpu_custom_call.1} parent=1 // loop_header_branch
      %30 = sbr.rel (%p28) target = $region8
    $region5: #{tpu_custom_call.1} parent=1 // loop_body
      %s32 = ssub.s32 %s27, 1
      %s33 = ssub.s32 %s27, 2
      %s34 = sadd.s32 %s27, 1
      %s35 = ssub.s32 %s27, %s34
      %p36 = scmp.eq.s32.totalorder %s35, 0
      %s38 = sadd.s32 %s37, 1
      %s39 = scalar_select %p36, %s37, %s38
      %p42 = pneg %p36
      %p43 = scmp.eq.s32.totalorder %s27, 1
      %p44 = por %p42, %p43
      %p45 = scmp.ne.s32.totalorder %s37, %s40
      %p46 = scmp.eq.s32.totalorder %s27, 0
      %p47 = por %p45, %p46
      %p48 = scmp.ne.s32.totalorder %s37, %s40
      %p49 = scmp.eq.s32.totalorder %s32, 1
      %p50 = por %p48, %p49
      %p51 = scmp.ne.s32.totalorder %s40, %s41
      %p52 = scmp.eq.s32.totalorder %s32, 0
      %p53 = por %p51, %p52
      %p54 = scmp.ne.s32.totalorder %s40, %s41
      %p55 = scmp.eq.s32.totalorder %s33, 1
      %p56 = por %p54, %p55
      %p58 = scmp.ne.s32.totalorder %s41, %s57
      %p59 = scmp.eq.s32.totalorder %s33, 0
      %p60 = por %p58, %p59
      %s61 = ssub.s32 %s27, %s34
      %p62 = scmp.eq.s32.totalorder %s61, 0
      %s64 = sadd.s32 %s63, 1
      %s65 = scalar_select %p62, %s63, %s64
      %p68 = pneg %p62
      %p69 = scmp.eq.s32.totalorder %s27, 1
      %p70 = por %p68, %p69
      %p71 = scmp.ne.s32.totalorder %s63, %s66
      %p72 = scmp.eq.s32.totalorder %s27, 0
      %p73 = por %p71, %p72
      %p74 = scmp.ne.s32.totalorder %s63, %s66
      %p75 = scmp.eq.s32.totalorder %s32, 1
      %p76 = por %p74, %p75
      %p77 = scmp.ne.s32.totalorder %s66, %s67
      %p78 = scmp.eq.s32.totalorder %s32, 0
      %p79 = por %p77, %p78
      %p80 = scmp.ne.s32.totalorder %s66, %s67
      %p81 = scmp.eq.s32.totalorder %s33, 1
      %p82 = por %p80, %p81
      %p84 = scmp.ne.s32.totalorder %s67, %s83
      %p85 = scmp.eq.s32.totalorder %s33, 0
      %p86 = por %p84, %p85
      %s88 = sadd.s32 %s87, 1
      %p91 = scmp.eq.s32.totalorder %s27, 1
      %p92 = scmp.ne.s32.totalorder %s87, %s89
      %p93 = scmp.eq.s32.totalorder %s27, 0
      %p94 = por %p92, %p93
      %p95 = scmp.ne.s32.totalorder %s87, %s89
      %p96 = scmp.eq.s32.totalorder %s32, 1
      %p97 = por %p95, %p96
      %p98 = scmp.ne.s32.totalorder %s89, %s90
      %p99 = scmp.eq.s32.totalorder %s32, 0
      %p100 = por %p98, %p99
      %p101 = scmp.ne.s32.totalorder %s89, %s90
      %p102 = scmp.eq.s32.totalorder %s33, 1
      %p103 = por %p101, %p102
      %p105 = scmp.ne.s32.totalorder %s90, %s104
      %p106 = scmp.eq.s32.totalorder %s33, 0
      %p107 = por %p105, %p106
      %s109 = sadd.s32 %s108, 1
      %p112 = scmp.eq.s32.totalorder %s27, 1
      %p113 = scmp.ne.s32.totalorder %s108, %s110
      %p114 = scmp.eq.s32.totalorder %s27, 0
      %p115 = por %p113, %p114
      %p116 = scmp.ne.s32.totalorder %s108, %s110
      %p117 = scmp.eq.s32.totalorder %s32, 1
      %p118 = por %p116, %p117
      %p119 = scmp.ne.s32.totalorder %s110, %s111
      %p120 = scmp.eq.s32.totalorder %s32, 0
      %p121 = por %p119, %p120
      %p122 = scmp.ne.s32.totalorder %s110, %s111
      %p123 = scmp.eq.s32.totalorder %s33, 1
      %p124 = por %p122, %p123
      %p126 = scmp.ne.s32.totalorder %s111, %s125
      %p127 = scmp.eq.s32.totalorder %s33, 0
      %p128 = por %p126, %p127
      %s130 = sadd.s32 %s129, 1
      %p133 = scmp.eq.s32.totalorder %s27, 1
      %p134 = scmp.ne.s32.totalorder %s129, %s131
      %p135 = scmp.eq.s32.totalorder %s27, 0
      %p136 = por %p134, %p135
      %p137 = scmp.ne.s32.totalorder %s129, %s131
      %p138 = scmp.eq.s32.totalorder %s32, 1
      %p139 = por %p137, %p138
      %p140 = scmp.ne.s32.totalorder %s131, %s132
      %p141 = scmp.eq.s32.totalorder %s32, 0
      %p142 = por %p140, %p141
      %p143 = scmp.ne.s32.totalorder %s131, %s132
      %p144 = scmp.eq.s32.totalorder %s33, 1
      %p145 = por %p143, %p144
      %p147 = scmp.ne.s32.totalorder %s132, %s146
      %p148 = scmp.eq.s32.totalorder %s33, 0
      %p149 = por %p147, %p148
      %s151 = sadd.s32 %s150, 1
      %p154 = scmp.eq.s32.totalorder %s27, 1
      %p155 = scmp.ne.s32.totalorder %s150, %s152
      %p156 = scmp.eq.s32.totalorder %s27, 0
      %p157 = por %p155, %p156
      %p158 = scmp.ne.s32.totalorder %s150, %s152
      %p159 = scmp.eq.s32.totalorder %s32, 1
      %p160 = por %p158, %p159
      %p161 = scmp.ne.s32.totalorder %s152, %s153
      %p162 = scmp.eq.s32.totalorder %s32, 0
      %p163 = por %p161, %p162
      %p164 = scmp.ne.s32.totalorder %s152, %s153
      %p165 = scmp.eq.s32.totalorder %s33, 1
      %p166 = por %p164, %p165
      %p168 = scmp.ne.s32.totalorder %s153, %s167
      %p169 = scmp.eq.s32.totalorder %s33, 0
      %p170 = por %p168, %p169
      %s171 = ssub.s32 %s27, %s34
      %p172 = scmp.eq.s32.totalorder %s171, 0
      %s174 = sadd.s32 %s173, 1
      %s175 = scalar_select %p172, %s173, %s174
      %p178 = pneg %p172
      %p179 = scmp.eq.s32.totalorder %s27, 1
      %p180 = por %p178, %p179
      %p181 = scmp.ne.s32.totalorder %s173, %s176
      %p182 = scmp.eq.s32.totalorder %s27, 0
      %p183 = por %p181, %p182
      %p184 = scmp.ne.s32.totalorder %s173, %s176
      %p185 = scmp.eq.s32.totalorder %s32, 1
      %p186 = por %p184, %p185
      %p187 = scmp.ne.s32.totalorder %s176, %s177
      %p188 = scmp.eq.s32.totalorder %s32, 0
      %p189 = por %p187, %p188
      %p190 = scmp.ne.s32.totalorder %s176, %s177
      %p191 = scmp.eq.s32.totalorder %s33, 1
      %p192 = por %p190, %p191
      %p194 = scmp.ne.s32.totalorder %s177, %s193
      %p195 = scmp.eq.s32.totalorder %s33, 0
      %p196 = por %p194, %p195
      %s197 = ssub.s32 %s27, %s34
      %p198 = scmp.eq.s32.totalorder %s197, 0
      %s200 = sadd.s32 %s199, 1
      %s201 = scalar_select %p198, %s199, %s200
      %p204 = pneg %p198
      %p205 = scmp.eq.s32.totalorder %s27, 1
      %p206 = por %p204, %p205
      %p207 = scmp.ne.s32.totalorder %s199, %s202
      %p208 = scmp.eq.s32.totalorder %s27, 0
      %p209 = por %p207, %p208
      %p210 = scmp.ne.s32.totalorder %s199, %s202
      %p211 = scmp.eq.s32.totalorder %s32, 1
      %p212 = por %p210, %p211
      %p213 = scmp.ne.s32.totalorder %s202, %s203
      %p214 = scmp.eq.s32.totalorder %s32, 0
      %p215 = por %p213, %p214
      %p216 = scmp.ne.s32.totalorder %s202, %s203
      %p217 = scmp.eq.s32.totalorder %s33, 1
      %p218 = por %p216, %p217
      %p220 = scmp.ne.s32.totalorder %s203, %s219
      %p221 = scmp.eq.s32.totalorder %s33, 0
      %p222 = por %p220, %p221
      %p223 = scmp.le.s32.totalorder 1, %s27
      %p224 = scmp.lt.s32.totalorder %s27, 3
      %p225 = pnand %p223, %p224
      %p226 = pneg %p225
      // Predicated region
      $region9: #{tpu_custom_call.1} parent=5 // pred_check
        _
      $region10: #{tpu_custom_call.1} parent=5 // pred_check_branch
        %228 = sbr.rel (%p225) target = $region12
      $region11: #{tpu_custom_call.1} parent=5 // pred_region
        %s229 = ssub.s32 %s27, 1
        // Predicated region
        $region13: #{tpu_custom_call.1} parent=11 // pred_check
          %p230 = pneg %p100
        $region14: #{tpu_custom_call.1} parent=11 // pred_check_branch
          %232 = sbr.rel (%p230) target = $region16
        $region15: #{tpu_custom_call.1} parent=11 // pred_region
          %s234 = ssub.s32 3072, 3072
          %235 = vsyncadd [#allocation6], %s234
          %s236 = sshll.u32 [#allocation7], 4
          %s237 = int_to_ptr.vmem [resolvable:$true] %s236
          %242 = dma.hbm_to_vmem [thread:$0]  %s2, 3072, %s237, [#allocation6], 192, 192, 12
        $region16: #{tpu_custom_call.1} parent=11 // pred_fallthru
          _
        // Predicated region
        $region17: #{tpu_custom_call.1} parent=11 // pred_check
          %p243 = pneg %p121
        $region18: #{tpu_custom_call.1} parent=11 // pred_check_branch
          %245 = sbr.rel (%p243) target = $region20
        $region19: #{tpu_custom_call.1} parent=11 // pred_region
          _
        $region20: #{tpu_custom_call.1} parent=11 // pred_fallthru
          _
        // Predicated region
        $region21: #{tpu_custom_call.1} parent=11 // pred_check
          %p246 = pneg %p142
        $region22: #{tpu_custom_call.1} parent=11 // pred_check_branch
          %248 = sbr.rel (%p246) target = $region24
        $region23: #{tpu_custom_call.1} parent=11 // pred_region
          %s250 = ssub.s32 1024, 1024
          %251 = vsyncadd [#allocation9], %s250
          %s252 = sshll.u32 [#allocation8], 4
          %s253 = int_to_ptr.vmem [resolvable:$true] %s252
          %258 = dma.hbm_to_vmem [thread:$0]  %s4, 1024, %s253, [#allocation9], 64, 64, 4
        $region24: #{tpu_custom_call.1} parent=11 // pred_fallthru
          _
        // Predicated region
        $region25: #{tpu_custom_call.1} parent=11 // pred_check
          %p259 = pneg %p163
        $region26: #{tpu_custom_call.1} parent=11 // pred_check_branch
          %261 = sbr.rel (%p259) target = $region28
        $region27: #{tpu_custom_call.1} parent=11 // pred_region
          _
        $region28: #{tpu_custom_call.1} parent=11 // pred_fallthru
          _
      $region12: #{tpu_custom_call.1} parent=5 // pred_fallthru
        _
      %p262 = scmp.lt.s32.totalorder %s27, 2
      // Predicated region
      $region29: #{tpu_custom_call.1} parent=5 // pred_check
        %p263 = pneg %p262
      $region30: #{tpu_custom_call.1} parent=5 // pred_check_branch
        %265 = sbr.rel (%p263) target = $region32
      $region31: #{tpu_custom_call.1} parent=5 // pred_region
        // Predicated region
        $region33: #{tpu_custom_call.1} parent=31 // pred_check
          %p266 = pneg %p47
        $region34: #{tpu_custom_call.1} parent=31 // pred_check_branch
          %268 = sbr.rel (%p266) target = $region36
        $region35: #{tpu_custom_call.1} parent=31 // pred_region
          %s269 = sand.u32 %s37, 1
          %s270 = scalar_lea.sflag [#allocation3], %s269
          %s271 = sand.u32 %s37, 1
          %s272 = smul.addr %s271, 16
          %s273 = scalar_lea.vmem [#allocation2], %s272
          %s274 = smul.u32 4, %s27
          %s276 = ssub.s32 256, 256
          %277 = vsyncadd %s270, %s276
          %s278 = smul.addr %s274, 64
          %s279 = scalar_lea.hbm %s0, %s278
          %s280 = sshll.u32 %s273, 4
          %s281 = int_to_ptr.vmem [resolvable:$true] %s280
          %286 = dma.hbm_to_vmem [thread:$0]  %s279, 256, %s281, %s270, 64, 64, 4
        $region36: #{tpu_custom_call.1} parent=31 // pred_fallthru
          _
        // Predicated region
        $region37: #{tpu_custom_call.1} parent=31 // pred_check
          %p287 = pneg %p73
        $region38: #{tpu_custom_call.1} parent=31 // pred_check_branch
          %289 = sbr.rel (%p287) target = $region40
        $region39: #{tpu_custom_call.1} parent=31 // pred_region
          %s290 = sand.u32 %s27, 1
          %s291 = scalar_lea.sflag [#allocation6], %s290
          %s292 = sand.u32 %s63, 1
          %s293 = smul.addr %s292, 16
          %s294 = scalar_lea.vmem [#allocation5], %s293
          %s295 = smul.u32 2, %s27
          %s297 = ssub.s32 256, 256
          %298 = vsyncadd %s291, %s297
          %s299 = smul.addr %s295, 2
          %s300 = smul.addr %s299, 64
          %s301 = scalar_lea.hbm %s1, %s300
          %s302 = sshll.u32 %s294, 4
          %s303 = int_to_ptr.vmem [resolvable:$true] %s302
          %308 = dma.hbm_to_vmem [thread:$0]  %s301, 256, %s303, %s291, 64, 64, 4
        $region40: #{tpu_custom_call.1} parent=31 // pred_fallthru
          _
      $region32: #{tpu_custom_call.1} parent=5 // pred_fallthru
        _
      %p309 = scmp.le.s32.totalorder 1, %s27
      %p310 = scmp.lt.s32.totalorder %s27, 3
      %p311 = pnand %p309, %p310
      %p312 = pneg %p311
      // Predicated region
      $region41: #{tpu_custom_call.1} parent=5 // pred_check
        _
      $region42: #{tpu_custom_call.1} parent=5 // pred_check_branch
        %314 = sbr.rel (%p311) target = $region44
      $region43: #{tpu_custom_call.1} parent=5 // pred_region
        %s315 = ssub.s32 %s27, 1
        %s316 = sand.u32 %s40, 1
        %s317 = scalar_lea.sflag [#allocation3], %s316
        %s318 = sand.u32 %s40, 1
        %s319 = smul.addr %s318, 16
        %s320 = scalar_lea.vmem [#allocation2], %s319
        // Predicated region
        $region45: #{tpu_custom_call.1} parent=43 // pred_check
          %p321 = pneg %p53
        $region46: #{tpu_custom_call.1} parent=43 // pred_check_branch
          %323 = sbr.rel (%p321) target = $region48
        $region47: #{tpu_custom_call.1} parent=43 // pred_region
          %324 = dma.done %s317, 256
        $region48: #{tpu_custom_call.1} parent=43 // pred_fallthru
          _
        %s325 = sand.u32 %s32, 1
        %s326 = scalar_lea.sflag [#allocation6], %s325
        %s327 = sand.u32 %s66, 1
        %s328 = smul.addr %s327, 16
        %s329 = scalar_lea.vmem [#allocation5], %s328
        // Predicated region
        $region49: #{tpu_custom_call.1} parent=43 // pred_check
          %p330 = pneg %p79
        $region50: #{tpu_custom_call.1} parent=43 // pred_check_branch
          %332 = sbr.rel (%p330) target = $region52
        $region51: #{tpu_custom_call.1} parent=43 // pred_region
          %333 = dma.done %s326, 256
        $region52: #{tpu_custom_call.1} parent=43 // pred_fallthru
          _
        // Predicated region
        $region53: #{tpu_custom_call.1} parent=43 // pred_check
          %p334 = pneg %p100
        $region54: #{tpu_custom_call.1} parent=43 // pred_check_branch
          %336 = sbr.rel (%p334) target = $region56
        $region55: #{tpu_custom_call.1} parent=43 // pred_region
          %337 = dma.done [#allocation6], 3072
        $region56: #{tpu_custom_call.1} parent=43 // pred_fallthru
          _
        // Predicated region
        $region57: #{tpu_custom_call.1} parent=43 // pred_check
          %p338 = pneg %p142
        $region58: #{tpu_custom_call.1} parent=43 // pred_check_branch
          %340 = sbr.rel (%p338) target = $region60
        $region59: #{tpu_custom_call.1} parent=43 // pred_region
          %341 = dma.done [#allocation9], 1024
        $region60: #{tpu_custom_call.1} parent=43 // pred_fallthru
          _
        %s342 = sand.u32 %s40, 1
        %s343 = scalar_lea.sflag [#allocation3], %s342
        %s344 = sand.u32 %s40, 1
        %s345 = smul.addr %s344, 16
        %s346 = scalar_lea.vmem [#allocation2], %s345
        %p347 = pneg %p53
        %p348 = pneg %p50
        %s349 = sand.u32 %s32, 1
        %s350 = scalar_lea.sflag [#allocation6], %s349
        %s351 = sand.u32 %s66, 1
        %s352 = smul.addr %s351, 16
        %s353 = scalar_lea.vmem [#allocation5], %s352
        %p354 = pneg %p79
        %p355 = pneg %p76
        %p356 = pneg %p100
        %p357 = pneg %p97
        %p358 = pneg %p121
        %p359 = pneg %p118
        %p360 = pneg %p142
        %p361 = pneg %p139
        %p362 = pneg %p163
        %p363 = pneg %p160
        %p364 = pneg %p189
        %p365 = pneg %p186
        %s366 = sand.u32 %s176, 1
        %s367 = scalar_lea.sflag [#allocation4], %s366
        %s368 = sand.u32 %s176, 1
        %s369 = smul.addr %s368, 32
        %s370 = scalar_lea.vmem [#allocation10], %s369
        %p371 = pneg %p215
        %p372 = pneg %p212
        %s373 = sand.u32 %s202, 1
        %s374 = scalar_lea.sflag [#allocation12], %s373
        %s375 = sand.u32 %s202, 1
        %s376 = smul.addr %s375, 256
        %s377 = scalar_lea.vmem [#allocation11], %s376
        %s378 = smul.u32 4, %s32
        %s379 = smul.u32 2, %s32
        %s380 = smul.u32 4, %s32
        %s381 = smul.u32 2, %s32
        %v383 = vld [vmem:[%s320] sm:$0xf]
        %v384 = vld [vmem:[%s320 + $0x4] sm:$0xf]
        %v385 = vld [vmem:[%s320 + $0x8] sm:$0xf]
        %v386 = vld [vmem:[%s320 + $0xc] sm:$0xf]
        %v387 = vld [vmem:[#allocation7] sm:$0xff]
        %v388 = vld [vmem:[#allocation7 + $0x8] sm:$0xf]
        %v389 = vld [vmem:[#allocation7 + $0xc] sm:$0xff]
        %v390 = vld [vmem:[#allocation7 + $0x14] sm:$0xf]
        %v391 = vld [vmem:[#allocation7 + $0x18] sm:$0xff]
        %v392 = vld [vmem:[#allocation7 + $0x20] sm:$0xf]
        %v393 = vld [vmem:[#allocation7 + $0x24] sm:$0xff]
        %v394 = vld [vmem:[#allocation7 + $0x2c] sm:$0xf]
        %v395 = vld [vmem:[#allocation7 + $0x30] sm:$0xff]
        %v396 = vld [vmem:[#allocation7 + $0x38] sm:$0xf]
        %v397 = vld [vmem:[#allocation7 + $0x3c] sm:$0xff]
        %v398 = vld [vmem:[#allocation7 + $0x44] sm:$0xf]
        %v399 = vld [vmem:[#allocation7 + $0x48] sm:$0xff]
        %v400 = vld [vmem:[#allocation7 + $0x50] sm:$0xf]
        %v401 = vld [vmem:[#allocation7 + $0x54] sm:$0xff]
        %v402 = vld [vmem:[#allocation7 + $0x5c] sm:$0xf]
        %v403 = vld [vmem:[#allocation7 + $0x60] sm:$0xff]
        %v404 = vld [vmem:[#allocation7 + $0x68] sm:$0xf]
        %v405 = vld [vmem:[#allocation7 + $0x6c] sm:$0xff]
        %v406 = vld [vmem:[#allocation7 + $0x74] sm:$0xf]
        %v407 = vld [vmem:[#allocation7 + $0x78] sm:$0xff]
        %v408 = vld [vmem:[#allocation7 + $0x80] sm:$0xf]
        %v409 = vld [vmem:[#allocation7 + $0x84] sm:$0xff]
        %v410 = vld [vmem:[#allocation7 + $0x8c] sm:$0xf]
        %v411 = vld [vmem:[#allocation7 + $0x90] sm:$0xff]
        %v412 = vld [vmem:[#allocation7 + $0x98] sm:$0xf]
        %v413 = vld [vmem:[#allocation7 + $0x9c] sm:$0xff]
        %v414 = vld [vmem:[#allocation7 + $0xa4] sm:$0xf]
        %v415 = vld [vmem:[#allocation7 + $0xa8] sm:$0xff]
        %v416 = vld [vmem:[#allocation7 + $0xb0] sm:$0xf]
        %v417 = vld [vmem:[#allocation7 + $0xb4] sm:$0xff]
        %v418 = vld [vmem:[#allocation7 + $0xbc] sm:$0xf]
        %v419 = vld [vmem:[%s3] sm:$0x7]
        %v421 = vlaneseq
        %v422 = vshrl.u32 %v421, 7
        %v423 = vsub.s32 0, %v422
        %v424 = vrot.slane %v419, %v423
        %v425 = vlaneseq
        %v426 = vshrl.u32 %v425, 7
        %v427 = vsub.s32 1, %v426
        %v428 = vrot.slane %v419, %v427
        %v429 = vlaneseq
        %v430 = vshrl.u32 %v429, 7
        %v431 = vsub.s32 2, %v430
        %v432 = vrot.slane %v419, %v431
        %v440 = vunpack.c.l.b16 %v383
        %v441 = vunpack.c.l.b16 %v384
        %v442 = vunpack.c.l.b16 %v385
        %v443 = vunpack.c.l.b16 %v386
        %v444 = vpack.c.b16 %v441, %v440
        %v445 = vpack.c.b16 %v443, %v442
        %v480 = vunpack.c.l.b16 %v387
        %v481 = vunpack.c.h.b16 %v387
        %v482 = vunpack.c.l.b16 %v388
        %v483 = vunpack.c.l.b16 %v389
        %v484 = vunpack.c.h.b16 %v389
        %v485 = vunpack.c.l.b16 %v390
        %v486 = vunpack.c.l.b16 %v391
        %v487 = vunpack.c.h.b16 %v391
        %v488 = vunpack.c.l.b16 %v392
        %v489 = vunpack.c.l.b16 %v393
        %v490 = vunpack.c.h.b16 %v393
        %v491 = vunpack.c.l.b16 %v394
        %v492 = vunpack.c.l.b16 %v395
        %v493 = vunpack.c.h.b16 %v395
        %v494 = vunpack.c.l.b16 %v396
        %v495 = vunpack.c.l.b16 %v397
        %v496 = vunpack.c.h.b16 %v397
        %v497 = vunpack.c.l.b16 %v398
        %v498 = vunpack.c.l.b16 %v399
        %v499 = vunpack.c.h.b16 %v399
        %v500 = vunpack.c.l.b16 %v400
        %v501 = vunpack.c.l.b16 %v401
        %v502 = vunpack.c.h.b16 %v401
        %v503 = vunpack.c.l.b16 %v402
        %v504 = vunpack.c.l.b16 %v403
        %v505 = vunpack.c.h.b16 %v403
        %v506 = vunpack.c.l.b16 %v404
        %v507 = vunpack.c.l.b16 %v405
        %v508 = vunpack.c.h.b16 %v405
        %v509 = vunpack.c.l.b16 %v406
        %v510 = vunpack.c.l.b16 %v407
        %v511 = vunpack.c.h.b16 %v407
        %v512 = vunpack.c.l.b16 %v408
        %v513 = vunpack.c.l.b16 %v409
        %v514 = vunpack.c.h.b16 %v409
        %v515 = vunpack.c.l.b16 %v410
        %v516 = vunpack.c.l.b16 %v411
        %v517 = vunpack.c.h.b16 %v411
        %v518 = vunpack.c.l.b16 %v412
        %v519 = vunpack.c.l.b16 %v413
        %v520 = vunpack.c.h.b16 %v413
        %v521 = vunpack.c.l.b16 %v414
        %v522 = vunpack.c.l.b16 %v415
        %v523 = vunpack.c.h.b16 %v415
        %v524 = vunpack.c.l.b16 %v416
        %v525 = vunpack.c.l.b16 %v417
        %v526 = vunpack.c.h.b16 %v417
        %v527 = vunpack.c.l.b16 %v418
        %v528 = vpack.c.b16 %v483, %v480
        %v529 = vpack.c.b16 %v484, %v481
        %v530 = vpack.c.b16 %v485, %v482
        %v531 = vpack.c.b16 %v489, %v486
        %v532 = vpack.c.b16 %v490, %v487
        %v533 = vpack.c.b16 %v491, %v488
        %v534 = vpack.c.b16 %v495, %v492
        %v535 = vpack.c.b16 %v496, %v493
        %v536 = vpack.c.b16 %v497, %v494
        %v537 = vpack.c.b16 %v501, %v498
        %v538 = vpack.c.b16 %v502, %v499
        %v539 = vpack.c.b16 %v503, %v500
        %v540 = vpack.c.b16 %v507, %v504
        %v541 = vpack.c.b16 %v508, %v505
        %v542 = vpack.c.b16 %v509, %v506
        %v543 = vpack.c.b16 %v513, %v510
        %v544 = vpack.c.b16 %v514, %v511
        %v545 = vpack.c.b16 %v515, %v512
        %v546 = vpack.c.b16 %v519, %v516
        %v547 = vpack.c.b16 %v520, %v517
        %v548 = vpack.c.b16 %v521, %v518
        %v549 = vpack.c.b16 %v525, %v522
        %v550 = vpack.c.b16 %v526, %v523
        %v551 = vpack.c.b16 %v527, %v524
        %576 = vmatprep.subr.bf16.mxu0 %v550
        %577 = vmatpush1.bf16.msra.mxu0 %v549
        %578 = vmatprep.subr.bf16.mxu0 %v547
        %579 = vmatpush1.bf16.msra.mxu0 %v546
        %580 = vmatprep.subr.bf16.mxu0 %v544
        %581 = vmatpush1.bf16.msra.mxu0 %v543
        %582 = vmatprep.subr.bf16.mxu0 %v541
        %583 = vmatpush1.bf16.msra.mxu0 %v540
        %584 = vmatprep.subr.bf16.mxu0 %v538
        %585 = vmatpush1.bf16.msra.mxu0 %v537
        %586 = vmatprep.subr.bf16.mxu0 %v535
        %587 = vmatpush1.bf16.msra.mxu0 %v534
        %588 = vmatprep.subr.bf16.mxu0 %v532
        %589 = vmatpush1.bf16.msra.mxu0 %v531
        %590 = vmatprep.subr.bf16.mxu0 %v529
        %591 = vmatpush1.bf16.msra.mxu0 %v528
        %592 = vmatprep.subr.bf16.mxu0 0
        %593 = vmatpush2.bf16.msra.mxu0 0
        %594 = vmatprep.subr.bf16.mxu0 0
        %595 = vmatpush2.bf16.msra.mxu0 0
        %596 = vmatprep.subr.bf16.mxu0 0
        %597 = vmatpush2.bf16.msra.mxu0 0
        %598 = vmatprep.subr.bf16.mxu0 0
        %599 = vmatpush2.bf16.msra.mxu0 0
        %600 = vmatprep.subr.bf16.mxu0 0
        %601 = vmatpush2.bf16.msra.mxu0 0
        %602 = vmatprep.subr.bf16.mxu0 0
        %603 = vmatpush2.bf16.msra.mxu0 0
        %604 = vmatprep.subr.bf16.mxu0 0
        %605 = vmatpush2.bf16.msra.mxu0 0
        %606 = vmatprep.subr.bf16.mxu0 0
        %607 = vmatpush2.bf16.msra.mxu0 0
        %608 = vmatprep.mubr.bf16.mxu0 0
        %609 = vmatmul.mubr.bf16.gmra.mxu0 %v444
        %v610 = vpop.f32.mrf.mxu0
        %v611 = vadd.f32 %v424, %v610
        %v612 = vpop.f32.mrf.mxu0
        %v613 = vadd.f32 %v428, %v612
        %v614 = vpop.f32.mrf.mxu0
        %v615 = vadd.f32 %v424, %v614
        %v616 = vpop.f32.mrf.mxu0
        %v617 = vadd.f32 %v428, %v616
        %618 = vmatprep.mubr.bf16.mxu0 0
        %619 = vmatmul.mubr.bf16.gmra.mxu0 %v445
        %v620 = vpop.f32.mrf.mxu0
        %v621 = vadd.f32 %v424, %v620
        %v622 = vpop.f32.mrf.mxu0
        %v623 = vadd.f32 %v428, %v622
        %v624 = vpop.f32.mrf.mxu0
        %v625 = vadd.f32 %v424, %v624
        %v626 = vpop.f32.mrf.mxu0
        %v627 = vadd.f32 %v428, %v626
        %628 = vdwg.mxu0
        %629 = vmatprep.subr.bf16.mxu0 0
        %630 = vmatpush1.bf16.msra.mxu0 %v551
        %631 = vmatprep.subr.bf16.mxu0 0
        %632 = vmatpush1.bf16.msra.mxu0 %v548
        %633 = vmatprep.subr.bf16.mxu0 0
        %634 = vmatpush1.bf16.msra.mxu0 %v545
        %635 = vmatprep.subr.bf16.mxu0 0
        %636 = vmatpush1.bf16.msra.mxu0 %v542
        %637 = vmatprep.subr.bf16.mxu0 0
        %638 = vmatpush1.bf16.msra.mxu0 %v539
        %639 = vmatprep.subr.bf16.mxu0 0
        %640 = vmatpush1.bf16.msra.mxu0 %v536
        %641 = vmatprep.subr.bf16.mxu0 0
        %642 = vmatpush1.bf16.msra.mxu0 %v533
        %643 = vmatprep.subr.bf16.mxu0 0
        %644 = vmatpush1.bf16.msra.mxu0 %v530
        %645 = vmatprep.subr.bf16.mxu0 0
        %646 = vmatpush2.bf16.msra.mxu0 0
        %647 = vmatprep.subr.bf16.mxu0 0
        %648 = vmatpush2.bf16.msra.mxu0 0
        %649 = vmatprep.subr.bf16.mxu0 0
        %650 = vmatpush2.bf16.msra.mxu0 0
        %651 = vmatprep.subr.bf16.mxu0 0
        %652 = vmatpush2.bf16.msra.mxu0 0
        %653 = vmatprep.subr.bf16.mxu0 0
        %654 = vmatpush2.bf16.msra.mxu0 0
        %655 = vmatprep.subr.bf16.mxu0 0
        %656 = vmatpush2.bf16.msra.mxu0 0
        %657 = vmatprep.subr.bf16.mxu0 0
        %658 = vmatpush2.bf16.msra.mxu0 0
        %659 = vmatprep.subr.bf16.mxu0 0
        %660 = vmatpush2.bf16.msra.mxu0 0
        %661 = vmatprep.mubr.bf16.mxu0 0
        %662 = vmatmul.mubr.bf16.gmra.mxu0 %v444
        %v663 = vpop.f32.mrf.mxu0
        %v664 = vadd.f32 %v432, %v663
        %v665 = vpop.f32.mrf.mxu0
        %v666 = vpop.f32.mrf.mxu0
        %v667 = vadd.f32 %v432, %v666
        %v668 = vpop.f32.mrf.mxu0
        %669 = vmatprep.mubr.bf16.mxu0 0
        %670 = vmatmul.mubr.bf16.gmra.mxu0 %v445
        %v671 = vpop.f32.mrf.mxu0
        %v672 = vadd.f32 %v432, %v671
        %v673 = vpop.f32.mrf.mxu0
        %v674 = vpop.f32.mrf.mxu0
        %v675 = vadd.f32 %v432, %v674
        %v676 = vpop.f32.mrf.mxu0
        %677 = vdwg.mxu0
        %v678 = vpack.c.bf16 %v615, %v611
        %v679 = vpack.c.bf16 %v625, %v621
        %682 = vrot.lane.b32.xlu0 %v678, 112
        %v683 = vpop.permute.xlu0 %682
        %684 = vrot.lane.b32.xlu0 %v679, 112
        %v685 = vpop.permute.xlu0 %684
        %686 = vrot.lane.b32.xlu0 %v678, 96
        %v687 = vpop.permute.xlu0 %686
        %688 = vrot.lane.b32.xlu0 %v679, 96
        %v689 = vpop.permute.xlu0 %688
        %690 = vrot.lane.b32.xlu0 %v678, 80
        %v691 = vpop.permute.xlu0 %690
        %692 = vrot.lane.b32.xlu0 %v679, 80
        %v693 = vpop.permute.xlu0 %692
        %694 = vrot.lane.b32.xlu0 %v678, 64
        %v695 = vpop.permute.xlu0 %694
        %696 = vrot.lane.b32.xlu0 %v679, 64
        %v697 = vpop.permute.xlu0 %696
        %698 = vrot.lane.b32.xlu0 %v678, 48
        %v699 = vpop.permute.xlu0 %698
        %700 = vrot.lane.b32.xlu0 %v679, 48
        %v701 = vpop.permute.xlu0 %700
        %702 = vrot.lane.b32.xlu0 %v678, 32
        %v703 = vpop.permute.xlu0 %702
        %704 = vrot.lane.b32.xlu0 %v679, 32
        %v705 = vpop.permute.xlu0 %704
        %706 = vrot.lane.b32.xlu0 %v678, 16
        %v707 = vpop.permute.xlu0 %706
        %708 = vrot.lane.b32.xlu0 %v679, 16
        %v709 = vpop.permute.xlu0 %708
        %v710 = vpack.c.bf16 %v617, %v613
        %v711 = vpack.c.bf16 %v627, %v623
        %714 = vrot.lane.b32.xlu0 %v710, 112
        %v715 = vpop.permute.xlu0 %714
        %716 = vrot.lane.b32.xlu0 %v711, 112
        %v717 = vpop.permute.xlu0 %716
        %718 = vrot.lane.b32.xlu0 %v710, 96
        %v719 = vpop.permute.xlu0 %718
        %720 = vrot.lane.b32.xlu0 %v711, 96
        %v721 = vpop.permute.xlu0 %720
        %722 = vrot.lane.b32.xlu0 %v710, 80
        %v723 = vpop.permute.xlu0 %722
        %724 = vrot.lane.b32.xlu0 %v711, 80
        %v725 = vpop.permute.xlu0 %724
        %726 = vrot.lane.b32.xlu0 %v710, 64
        %v727 = vpop.permute.xlu0 %726
        %728 = vrot.lane.b32.xlu0 %v711, 64
        %v729 = vpop.permute.xlu0 %728
        %730 = vrot.lane.b32.xlu0 %v710, 48
        %v731 = vpop.permute.xlu0 %730
        %732 = vrot.lane.b32.xlu0 %v711, 48
        %v733 = vpop.permute.xlu0 %732
        %734 = vrot.lane.b32.xlu0 %v710, 32
        %v735 = vpop.permute.xlu0 %734
        %736 = vrot.lane.b32.xlu0 %v711, 32
        %v737 = vpop.permute.xlu0 %736
        %738 = vrot.lane.b32.xlu0 %v710, 16
        %v739 = vpop.permute.xlu0 %738
        %740 = vrot.lane.b32.xlu0 %v711, 16
        %v741 = vpop.permute.xlu0 %740
        %v742 = vpack.c.bf16 %v667, %v664
        %v743 = vpack.c.bf16 %v675, %v672
        %746 = vrot.lane.b32.xlu0 %v742, 112
        %v747 = vpop.permute.xlu0 %746
        %748 = vrot.lane.b32.xlu0 %v743, 112
        %v749 = vpop.permute.xlu0 %748
        %752 = vrot.lane.b32.xlu0 %v742, 96
        %v753 = vpop.permute.xlu0 %752
        %754 = vrot.lane.b32.xlu0 %v743, 96
        %v755 = vpop.permute.xlu0 %754
        %758 = vrot.lane.b32.xlu0 %v742, 80
        %v759 = vpop.permute.xlu0 %758
        %760 = vrot.lane.b32.xlu0 %v743, 80
        %v761 = vpop.permute.xlu0 %760
        %764 = vrot.lane.b32.xlu0 %v742, 64
        %v765 = vpop.permute.xlu0 %764
        %766 = vrot.lane.b32.xlu0 %v743, 64
        %v767 = vpop.permute.xlu0 %766
        %770 = vrot.lane.b32.xlu0 %v742, 48
        %v771 = vpop.permute.xlu0 %770
        %772 = vrot.lane.b32.xlu0 %v743, 48
        %v773 = vpop.permute.xlu0 %772
        %776 = vrot.lane.b32.xlu0 %v742, 32
        %v777 = vpop.permute.xlu0 %776
        %778 = vrot.lane.b32.xlu0 %v743, 32
        %v779 = vpop.permute.xlu0 %778
        %782 = vrot.lane.b32.xlu0 %v742, 16
        %v783 = vpop.permute.xlu0 %782
        %784 = vrot.lane.b32.xlu0 %v743, 16
        %v785 = vpop.permute.xlu0 %784
        %vm788 = vcmask 130048
        %v790 = vsel %vm788, %v678, 0
        %v793 = vsel %vm788, %v710, 0
        %795 = vmatprep.subr.bf16.mxu0 0
        %796 = vmatpush1.bf16.xpose.msra.mxu0 0
        %797 = vmatprep.subr.bf16.mxu0 0
        %798 = vmatpush1.bf16.xpose.msra.mxu0 0
        %799 = vmatprep.subr.bf16.mxu0 0
        %800 = vmatpush1.bf16.xpose.msra.mxu0 0
        %801 = vmatprep.subr.bf16.mxu0 0
        %802 = vmatpush1.bf16.xpose.msra.mxu0 0
        %803 = vmatprep.subr.bf16.mxu0 0
        %804 = vmatpush1.bf16.xpose.msra.mxu0 0
        %805 = vmatprep.subr.bf16.mxu0 0
        %806 = vmatpush1.bf16.xpose.msra.mxu0 0
        %807 = vmatprep.subr.bf16.mxu0 0
        %808 = vmatpush1.bf16.xpose.msra.mxu0 0
        %809 = vmatprep.subr.bf16.mxu0 0
        %810 = vmatpush1.bf16.xpose.msra.mxu0 %v793
        %811 = vmatprep.subr.bf16.mxu0 0
        %812 = vmatpush2.bf16.xpose.msra.mxu0 0
        %813 = vmatprep.subr.bf16.mxu0 0
        %814 = vmatpush2.bf16.xpose.msra.mxu0 0
        %815 = vmatprep.subr.bf16.mxu0 0
        %816 = vmatpush2.bf16.xpose.msra.mxu0 0
        %817 = vmatprep.subr.bf16.mxu0 0
        %818 = vmatpush2.bf16.xpose.msra.mxu0 0
        %819 = vmatprep.subr.bf16.mxu0 0
        %820 = vmatpush2.bf16.xpose.msra.mxu0 0
        %821 = vmatprep.subr.bf16.mxu0 0
        %822 = vmatpush2.bf16.xpose.msra.mxu0 0
        %823 = vmatprep.subr.bf16.mxu0 0
        %824 = vmatpush2.bf16.xpose.msra.mxu0 0
        %825 = vmatprep.subr.bf16.mxu0 0
        %826 = vmatpush2.bf16.xpose.msra.mxu0 0
        %827 = vmatprep.mubr.bf16.mxu0 0
        %828 = vmatmul.mubr.bf16.gmra.mxu0 %v790
        %v829 = vpop.f32.mrf.mxu0
        %v830 = vadd.f32 0.0, %v829
        %v831 = vpop.f32.mrf.mxu0
        %v832 = vpop.f32.mrf.mxu0
        %v833 = vadd.f32 0.0, %v832
        %v834 = vpop.f32.mrf.mxu0
        %835 = vdwg.mxu0
        %v837 = vsel %vm788, %v683, 0
        %v840 = vsel %vm788, %v715, 0
        %842 = vmatprep.subr.bf16.mxu0 0
        %843 = vmatpush1.bf16.xpose.msra.mxu0 0
        %844 = vmatprep.subr.bf16.mxu0 0
        %845 = vmatpush1.bf16.xpose.msra.mxu0 0
        %846 = vmatprep.subr.bf16.mxu0 0
        %847 = vmatpush1.bf16.xpose.msra.mxu0 0
        %848 = vmatprep.subr.bf16.mxu0 0
        %849 = vmatpush1.bf16.xpose.msra.mxu0 0
        %850 = vmatprep.subr.bf16.mxu0 0
        %851 = vmatpush1.bf16.xpose.msra.mxu0 0
        %852 = vmatprep.subr.bf16.mxu0 0
        %853 = vmatpush1.bf16.xpose.msra.mxu0 0
        %854 = vmatprep.subr.bf16.mxu0 0
        %855 = vmatpush1.bf16.xpose.msra.mxu0 0
        %856 = vmatprep.subr.bf16.mxu0 0
        %857 = vmatpush1.bf16.xpose.msra.mxu0 %v840
        %858 = vmatprep.subr.bf16.mxu0 0
        %859 = vmatpush2.bf16.xpose.msra.mxu0 0
        %860 = vmatprep.subr.bf16.mxu0 0
        %861 = vmatpush2.bf16.xpose.msra.mxu0 0
        %862 = vmatprep.subr.bf16.mxu0 0
        %863 = vmatpush2.bf16.xpose.msra.mxu0 0
        %864 = vmatprep.subr.bf16.mxu0 0
        %865 = vmatpush2.bf16.xpose.msra.mxu0 0
        %866 = vmatprep.subr.bf16.mxu0 0
        %867 = vmatpush2.bf16.xpose.msra.mxu0 0
        %868 = vmatprep.subr.bf16.mxu0 0
        %869 = vmatpush2.bf16.xpose.msra.mxu0 0
        %870 = vmatprep.subr.bf16.mxu0 0
        %871 = vmatpush2.bf16.xpose.msra.mxu0 0
        %872 = vmatprep.subr.bf16.mxu0 0
        %873 = vmatpush2.bf16.xpose.msra.mxu0 0
        %874 = vmatprep.mubr.bf16.mxu0 0
        %875 = vmatmul.mubr.bf16.gmra.mxu0 %v837
        %v876 = vpop.f32.mrf.mxu0
        %v877 = vadd.f32 0.0, %v876
        %v878 = vpop.f32.mrf.mxu0
        %v879 = vpop.f32.mrf.mxu0
        %v880 = vadd.f32 0.0, %v879
        %v881 = vpop.f32.mrf.mxu0
        %882 = vdwg.mxu0
        %v884 = vsel %vm788, %v687, 0
        %v887 = vsel %vm788, %v719, 0
        %889 = vmatprep.subr.bf16.mxu0 0
        %890 = vmatpush1.bf16.xpose.msra.mxu0 0
        %891 = vmatprep.subr.bf16.mxu0 0
        %892 = vmatpush1.bf16.xpose.msra.mxu0 0
        %893 = vmatprep.subr.bf16.mxu0 0
        %894 = vmatpush1.bf16.xpose.msra.mxu0 0
        %895 = vmatprep.subr.bf16.mxu0 0
        %896 = vmatpush1.bf16.xpose.msra.mxu0 0
        %897 = vmatprep.subr.bf16.mxu0 0
        %898 = vmatpush1.bf16.xpose.msra.mxu0 0
        %899 = vmatprep.subr.bf16.mxu0 0
        %900 = vmatpush1.bf16.xpose.msra.mxu0 0
        %901 = vmatprep.subr.bf16.mxu0 0
        %902 = vmatpush1.bf16.xpose.msra.mxu0 0
        %903 = vmatprep.subr.bf16.mxu0 0
        %904 = vmatpush1.bf16.xpose.msra.mxu0 %v887
        %905 = vmatprep.subr.bf16.mxu0 0
        %906 = vmatpush2.bf16.xpose.msra.mxu0 0
        %907 = vmatprep.subr.bf16.mxu0 0
        %908 = vmatpush2.bf16.xpose.msra.mxu0 0
        %909 = vmatprep.subr.bf16.mxu0 0
        %910 = vmatpush2.bf16.xpose.msra.mxu0 0
        %911 = vmatprep.subr.bf16.mxu0 0
        %912 = vmatpush2.bf16.xpose.msra.mxu0 0
        %913 = vmatprep.subr.bf16.mxu0 0
        %914 = vmatpush2.bf16.xpose.msra.mxu0 0
        %915 = vmatprep.subr.bf16.mxu0 0
        %916 = vmatpush2.bf16.xpose.msra.mxu0 0
        %917 = vmatprep.subr.bf16.mxu0 0
        %918 = vmatpush2.bf16.xpose.msra.mxu0 0
        %919 = vmatprep.subr.bf16.mxu0 0
        %920 = vmatpush2.bf16.xpose.msra.mxu0 0
        %921 = vmatprep.mubr.bf16.mxu0 0
        %922 = vmatmul.mubr.bf16.gmra.mxu0 %v884
        %v923 = vpop.f32.mrf.mxu0
        %v924 = vadd.f32 0.0, %v923
        %v925 = vpop.f32.mrf.mxu0
        %v926 = vpop.f32.mrf.mxu0
        %v927 = vadd.f32 0.0, %v926
        %v928 = vpop.f32.mrf.mxu0
        %929 = vdwg.mxu0
        %v931 = vsel %vm788, %v691, 0
        %v934 = vsel %vm788, %v723, 0
        %936 = vmatprep.subr.bf16.mxu0 0
        %937 = vmatpush1.bf16.xpose.msra.mxu0 0
        %938 = vmatprep.subr.bf16.mxu0 0
        %939 = vmatpush1.bf16.xpose.msra.mxu0 0
        %940 = vmatprep.subr.bf16.mxu0 0
        %941 = vmatpush1.bf16.xpose.msra.mxu0 0
        %942 = vmatprep.subr.bf16.mxu0 0
        %943 = vmatpush1.bf16.xpose.msra.mxu0 0
        %944 = vmatprep.subr.bf16.mxu0 0
        %945 = vmatpush1.bf16.xpose.msra.mxu0 0
        %946 = vmatprep.subr.bf16.mxu0 0
        %947 = vmatpush1.bf16.xpose.msra.mxu0 0
        %948 = vmatprep.subr.bf16.mxu0 0
        %949 = vmatpush1.bf16.xpose.msra.mxu0 0
        %950 = vmatprep.subr.bf16.mxu0 0
        %951 = vmatpush1.bf16.xpose.msra.mxu0 %v934
        %952 = vmatprep.subr.bf16.mxu0 0
        %953 = vmatpush2.bf16.xpose.msra.mxu0 0
        %954 = vmatprep.subr.bf16.mxu0 0
        %955 = vmatpush2.bf16.xpose.msra.mxu0 0
        %956 = vmatprep.subr.bf16.mxu0 0
        %957 = vmatpush2.bf16.xpose.msra.mxu0 0
        %958 = vmatprep.subr.bf16.mxu0 0
        %959 = vmatpush2.bf16.xpose.msra.mxu0 0
        %960 = vmatprep.subr.bf16.mxu0 0
        %961 = vmatpush2.bf16.xpose.msra.mxu0 0
        %962 = vmatprep.subr.bf16.mxu0 0
        %963 = vmatpush2.bf16.xpose.msra.mxu0 0
        %964 = vmatprep.subr.bf16.mxu0 0
        %965 = vmatpush2.bf16.xpose.msra.mxu0 0
        %966 = vmatprep.subr.bf16.mxu0 0
        %967 = vmatpush2.bf16.xpose.msra.mxu0 0
        %968 = vmatprep.mubr.bf16.mxu0 0
        %969 = vmatmul.mubr.bf16.gmra.mxu0 %v931
        %v970 = vpop.f32.mrf.mxu0
        %v971 = vadd.f32 0.0, %v970
        %v972 = vpop.f32.mrf.mxu0
        %v973 = vpop.f32.mrf.mxu0
        %v974 = vadd.f32 0.0, %v973
        %v975 = vpop.f32.mrf.mxu0
        %976 = vdwg.mxu0
        %v978 = vsel %vm788, %v695, 0
        %v981 = vsel %vm788, %v727, 0
        %983 = vmatprep.subr.bf16.mxu0 0
        %984 = vmatpush1.bf16.xpose.msra.mxu0 0
        %985 = vmatprep.subr.bf16.mxu0 0
        %986 = vmatpush1.bf16.xpose.msra.mxu0 0
        %987 = vmatprep.subr.bf16.mxu0 0
        %988 = vmatpush1.bf16.xpose.msra.mxu0 0
        %989 = vmatprep.subr.bf16.mxu0 0
        %990 = vmatpush1.bf16.xpose.msra.mxu0 0
        %991 = vmatprep.subr.bf16.mxu0 0
        %992 = vmatpush1.bf16.xpose.msra.mxu0 0
        %993 = vmatprep.subr.bf16.mxu0 0
        %994 = vmatpush1.bf16.xpose.msra.mxu0 0
        %995 = vmatprep.subr.bf16.mxu0 0
        %996 = vmatpush1.bf16.xpose.msra.mxu0 0
        %997 = vmatprep.subr.bf16.mxu0 0
        %998 = vmatpush1.bf16.xpose.msra.mxu0 %v981
        %999 = vmatprep.subr.bf16.mxu0 0
        %1000 = vmatpush2.bf16.xpose.msra.mxu0 0
        %1001 = vmatprep.subr.bf16.mxu0 0
        %1002 = vmatpush2.bf16.xpose.msra.mxu0 0
        %1003 = vmatprep.subr.bf16.mxu0 0
        %1004 = vmatpush2.bf16.xpose.msra.mxu0 0
        %1005 = vmatprep.subr.bf16.mxu0 0
        %1006 = vmatpush2.bf16.xpose.msra.mxu0 0
        %1007 = vmatprep.subr.bf16.mxu0 0
        %1008 = vmatpush2.bf16.xpose.msra.mxu0 0
        %1009 = vmatprep.subr.bf16.mxu0 0
        %1010 = vmatpush2.bf16.xpose.msra.mxu0 0
        %1011 = vmatprep.subr.bf16.mxu0 0
        %1012 = vmatpush2.bf16.xpose.msra.mxu0 0
        %1013 = vmatprep.subr.bf16.mxu0 0
        %1014 = vmatpush2.bf16.xpose.msra.mxu0 0
        %1015 = vmatprep.mubr.bf16.mxu0 0
        %1016 = vmatmul.mubr.bf16.gmra.mxu0 %v978
        %v1017 = vpop.f32.mrf.mxu0
        %v1018 = vadd.f32 0.0, %v1017
        %v1019 = vpop.f32.mrf.mxu0
        %v1020 = vpop.f32.mrf.mxu0
        %v1021 = vadd.f32 0.0, %v1020
        %v1022 = vpop.f32.mrf.mxu0
        %1023 = vdwg.mxu0
        %v1025 = vsel %vm788, %v699, 0
        %v1028 = vsel %vm788, %v731, 0
        %1030 = vmatprep.subr.bf16.mxu0 0
        %1031 = vmatpush1.bf16.xpose.msra.mxu0 0
        %1032 = vmatprep.subr.bf16.mxu0 0
        %1033 = vmatpush1.bf16.xpose.msra.mxu0 0
        %1034 = vmatprep.subr.bf16.mxu0 0
        %1035 = vmatpush1.bf16.xpose.msra.mxu0 0
        %1036 = vmatprep.subr.bf16.mxu0 0
        %1037 = vmatpush1.bf16.xpose.msra.mxu0 0
        %1038 = vmatprep.subr.bf16.mxu0 0
        %1039 = vmatpush1.bf16.xpose.msra.mxu0 0
        %1040 = vmatprep.subr.bf16.mxu0 0
        %1041 = vmatpush1.bf16.xpose.msra.mxu0 0
        %1042 = vmatprep.subr.bf16.mxu0 0
        %1043 = vmatpush1.bf16.xpose.msra.mxu0 0
        %1044 = vmatprep.subr.bf16.mxu0 0
        %1045 = vmatpush1.bf16.xpose.msra.mxu0 %v1028
        %1046 = vmatprep.subr.bf16.mxu0 0
        %1047 = vmatpush2.bf16.xpose.msra.mxu0 0
        %1048 = vmatprep.subr.bf16.mxu0 0
        %1049 = vmatpush2.bf16.xpose.msra.mxu0 0
        %1050 = vmatprep.subr.bf16.mxu0 0
        %1051 = vmatpush2.bf16.xpose.msra.mxu0 0
        %1052 = vmatprep.subr.bf16.mxu0 0
        %1053 = vmatpush2.bf16.xpose.msra.mxu0 0
        %1054 = vmatprep.subr.bf16.mxu0 0
        %1055 = vmatpush2.bf16.xpose.msra.mxu0 0
        %1056 = vmatprep.subr.bf16.mxu0 0
        %1057 = vmatpush2.bf16.xpose.msra.mxu0 0
        %1058 = vmatprep.subr.bf16.mxu0 0
        %1059 = vmatpush2.bf16.xpose.msra.mxu0 0
        %1060 = vmatprep.subr.bf16.mxu0 0
        %1061 = vmatpush2.bf16.xpose.msra.mxu0 0
        %1062 = vmatprep.mubr.bf16.mxu0 0
        %1063 = vmatmul.mubr.bf16.gmra.mxu0 %v1025
        %v1064 = vpop.f32.mrf.mxu0
        %v1065 = vadd.f32 0.0, %v1064
        %v1066 = vpop.f32.mrf.mxu0
        %v1067 = vpop.f32.mrf.mxu0
        %v1068 = vadd.f32 0.0, %v1067
        %v1069 = vpop.f32.mrf.mxu0
        %1070 = vdwg.mxu0
        %v1072 = vsel %vm788, %v703, 0
        %v1075 = vsel %vm788, %v735, 0
        %1077 = vmatprep.subr.bf16.mxu0 0
        %1078 = vmatpush1.bf16.xpose.msra.mxu0 0
        %1079 = vmatprep.subr.bf16.mxu0 0
        %1080 = vmatpush1.bf16.xpose.msra.mxu0 0
        %1081 = vmatprep.subr.bf16.mxu0 0
        %1082 = vmatpush1.bf16.xpose.msra.mxu0 0
        %1083 = vmatprep.subr.bf16.mxu0 0
        %1084 = vmatpush1.bf16.xpose.msra.mxu0 0
        %1085 = vmatprep.subr.bf16.mxu0 0
        %1086 = vmatpush1.bf16.xpose.msra.mxu0 0
        %1087 = vmatprep.subr.bf16.mxu0 0
        %1088 = vmatpush1.bf16.xpose.msra.mxu0 0
        %1089 = vmatprep.subr.bf16.mxu0 0
        %1090 = vmatpush1.bf16.xpose.msra.mxu0 0
        %1091 = vmatprep.subr.bf16.mxu0 0
        %1092 = vmatpush1.bf16.xpose.msra.mxu0 %v1075
        %1093 = vmatprep.subr.bf16.mxu0 0
        %1094 = vmatpush2.bf16.xpose.msra.mxu0 0
        %1095 = vmatprep.subr.bf16.mxu0 0
        %1096 = vmatpush2.bf16.xpose.msra.mxu0 0
        %1097 = vmatprep.subr.bf16.mxu0 0
        %1098 = vmatpush2.bf16.xpose.msra.mxu0 0
        %1099 = vmatprep.subr.bf16.mxu0 0
        %1100 = vmatpush2.bf16.xpose.msra.mxu0 0
        %1101 = vmatprep.subr.bf16.mxu0 0
        %1102 = vmatpush2.bf16.xpose.msra.mxu0 0
        %1103 = vmatprep.subr.bf16.mxu0 0
        %1104 = vmatpush2.bf16.xpose.msra.mxu0 0
        %1105 = vmatprep.subr.bf16.mxu0 0
        %1106 = vmatpush2.bf16.xpose.msra.mxu0 0
        %1107 = vmatprep.subr.bf16.mxu0 0
        %1108 = vmatpush2.bf16.xpose.msra.mxu0 0
        %1109 = vmatprep.mubr.bf16.mxu0 0
        %1110 = vmatmul.mubr.bf16.gmra.mxu0 %v1072
        %v1111 = vpop.f32.mrf.mxu0
        %v1112 = vadd.f32 0.0, %v1111
        %v1113 = vpop.f32.mrf.mxu0
        %v1114 = vpop.f32.mrf.mxu0
        %v1115 = vadd.f32 0.0, %v1114
        %v1116 = vpop.f32.mrf.mxu0
        %1117 = vdwg.mxu0
        %v1119 = vsel %vm788, %v707, 0
        %v1122 = vsel %vm788, %v739, 0
        %1124 = vmatprep.subr.bf16.mxu0 0
        %1125 = vmatpush1.bf16.xpose.msra.mxu0 0
        %1126 = vmatprep.subr.bf16.mxu0 0
        %1127 = vmatpush1.bf16.xpose.msra.mxu0 0
        %1128 = vmatprep.subr.bf16.mxu0 0
        %1129 = vmatpush1.bf16.xpose.msra.mxu0 0
        %1130 = vmatprep.subr.bf16.mxu0 0
        %1131 = vmatpush1.bf16.xpose.msra.mxu0 0
        %1132 = vmatprep.subr.bf16.mxu0 0
        %1133 = vmatpush1.bf16.xpose.msra.mxu0 0
        %1134 = vmatprep.subr.bf16.mxu0 0
        %1135 = vmatpush1.bf16.xpose.msra.mxu0 0
        %1136 = vmatprep.subr.bf16.mxu0 0
        %1137 = vmatpush1.bf16.xpose.msra.mxu0 0
        %1138 = vmatprep.subr.bf16.mxu0 0
        %1139 = vmatpush1.bf16.xpose.msra.mxu0 %v1122
        %1140 = vmatprep.subr.bf16.mxu0 0
        %1141 = vmatpush2.bf16.xpose.msra.mxu0 0
        %1142 = vmatprep.subr.bf16.mxu0 0
        %1143 = vmatpush2.bf16.xpose.msra.mxu0 0
        %1144 = vmatprep.subr.bf16.mxu0 0
        %1145 = vmatpush2.bf16.xpose.msra.mxu0 0
        %1146 = vmatprep.subr.bf16.mxu0 0
        %1147 = vmatpush2.bf16.xpose.msra.mxu0 0
        %1148 = vmatprep.subr.bf16.mxu0 0
        %1149 = vmatpush2.bf16.xpose.msra.mxu0 0
        %1150 = vmatprep.subr.bf16.mxu0 0
        %1151 = vmatpush2.bf16.xpose.msra.mxu0 0
        %1152 = vmatprep.subr.bf16.mxu0 0
        %1153 = vmatpush2.bf16.xpose.msra.mxu0 0
        %1154 = vmatprep.subr.bf16.mxu0 0
        %1155 = vmatpush2.bf16.xpose.msra.mxu0 0
        %1156 = vmatprep.mubr.bf16.mxu0 0
        %1157 = vmatmul.mubr.bf16.gmra.mxu0 %v1119
        %v1158 = vpop.f32.mrf.mxu0
        %v1159 = vadd.f32 0.0, %v1158
        %v1160 = vpop.f32.mrf.mxu0
        %v1161 = vpop.f32.mrf.mxu0
        %v1162 = vadd.f32 0.0, %v1161
        %v1163 = vpop.f32.mrf.mxu0
        %1164 = vdwg.mxu0
        %v1166 = vsel %vm788, %v679, 0
        %v1169 = vsel %vm788, %v711, 0
        %1171 = vmatprep.subr.bf16.mxu0 0
        %1172 = vmatpush1.bf16.xpose.msra.mxu0 0
        %1173 = vmatprep.subr.bf16.mxu0 0
        %1174 = vmatpush1.bf16.xpose.msra.mxu0 0
        %1175 = vmatprep.subr.bf16.mxu0 0
        %1176 = vmatpush1.bf16.xpose.msra.mxu0 0
        %1177 = vmatprep.subr.bf16.mxu0 0
        %1178 = vmatpush1.bf16.xpose.msra.mxu0 0
        %1179 = vmatprep.subr.bf16.mxu0 0
        %1180 = vmatpush1.bf16.xpose.msra.mxu0 0
        %1181 = vmatprep.subr.bf16.mxu0 0
        %1182 = vmatpush1.bf16.xpose.msra.mxu0 0
        %1183 = vmatprep.subr.bf16.mxu0 0
        %1184 = vmatpush1.bf16.xpose.msra.mxu0 0
        %1185 = vmatprep.subr.bf16.mxu0 0
        %1186 = vmatpush1.bf16.xpose.msra.mxu0 %v1169
        %1187 = vmatprep.subr.bf16.mxu0 0
        %1188 = vmatpush2.bf16.xpose.msra.mxu0 0
        %1189 = vmatprep.subr.bf16.mxu0 0
        %1190 = vmatpush2.bf16.xpose.msra.mxu0 0
        %1191 = vmatprep.subr.bf16.mxu0 0
        %1192 = vmatpush2.bf16.xpose.msra.mxu0 0
        %1193 = vmatprep.subr.bf16.mxu0 0
        %1194 = vmatpush2.bf16.xpose.msra.mxu0 0
        %1195 = vmatprep.subr.bf16.mxu0 0
        %1196 = vmatpush2.bf16.xpose.msra.mxu0 0
        %1197 = vmatprep.subr.bf16.mxu0 0
        %1198 = vmatpush2.bf16.xpose.msra.mxu0 0
        %1199 = vmatprep.subr.bf16.mxu0 0
        %1200 = vmatpush2.bf16.xpose.msra.mxu0 0
        %1201 = vmatprep.subr.bf16.mxu0 0
        %1202 = vmatpush2.bf16.xpose.msra.mxu0 0
        %1203 = vmatprep.mubr.bf16.mxu0 0
        %1204 = vmatmul.mubr.bf16.gmra.mxu0 %v1166
        %v1205 = vpop.f32.mrf.mxu0
        %v1206 = vadd.f32 0.0, %v1205
        %v1207 = vpop.f32.mrf.mxu0
        %v1208 = vpop.f32.mrf.mxu0
        %v1209 = vadd.f32 0.0, %v1208
        %v1210 = vpop.f32.mrf.mxu0
        %1211 = vdwg.mxu0
        %v1213 = vsel %vm788, %v685, 0
        %v1216 = vsel %vm788, %v717, 0
        %1218 = vmatprep.subr.bf16.mxu0 0
        %1219 = vmatpush1.bf16.xpose.msra.mxu0 0
        %1220 = vmatprep.subr.bf16.mxu0 0
        %1221 = vmatpush1.bf16.xpose.msra.mxu0 0
        %1222 = vmatprep.subr.bf16.mxu0 0
        %1223 = vmatpush1.bf16.xpose.msra.mxu0 0
        %1224 = vmatprep.subr.bf16.mxu0 0
        %1225 = vmatpush1.bf16.xpose.msra.mxu0 0
        %1226 = vmatprep.subr.bf16.mxu0 0
        %1227 = vmatpush1.bf16.xpose.msra.mxu0 0
        %1228 = vmatprep.subr.bf16.mxu0 0
        %1229 = vmatpush1.bf16.xpose.msra.mxu0 0
        %1230 = vmatprep.subr.bf16.mxu0 0
        %1231 = vmatpush1.bf16.xpose.msra.mxu0 0
        %1232 = vmatprep.subr.bf16.mxu0 0
        %1233 = vmatpush1.bf16.xpose.msra.mxu0 %v1216
        %1234 = vmatprep.subr.bf16.mxu0 0
        %1235 = vmatpush2.bf16.xpose.msra.mxu0 0
        %1236 = vmatprep.subr.bf16.mxu0 0
        %1237 = vmatpush2.bf16.xpose.msra.mxu0 0
        %1238 = vmatprep.subr.bf16.mxu0 0
        %1239 = vmatpush2.bf16.xpose.msra.mxu0 0
        %1240 = vmatprep.subr.bf16.mxu0 0
        %1241 = vmatpush2.bf16.xpose.msra.mxu0 0
        %1242 = vmatprep.subr.bf16.mxu0 0
        %1243 = vmatpush2.bf16.xpose.msra.mxu0 0
        %1244 = vmatprep.subr.bf16.mxu0 0
        %1245 = vmatpush2.bf16.xpose.msra.mxu0 0
        %1246 = vmatprep.subr.bf16.mxu0 0
        %1247 = vmatpush2.bf16.xpose.msra.mxu0 0
        %1248 = vmatprep.subr.bf16.mxu0 0
        %1249 = vmatpush2.bf16.xpose.msra.mxu0 0
        %1250 = vmatprep.mubr.bf16.mxu0 0
        %1251 = vmatmul.mubr.bf16.gmra.mxu0 %v1213
        %v1252 = vpop.f32.mrf.mxu0
        %v1253 = vadd.f32 0.0, %v1252
        %v1254 = vpop.f32.mrf.mxu0
        %v1255 = vpop.f32.mrf.mxu0
        %v1256 = vadd.f32 0.0, %v1255
        %v1257 = vpop.f32.mrf.mxu0
        %1258 = vdwg.mxu0
        %v1260 = vsel %vm788, %v689, 0
        %v1263 = vsel %vm788, %v721, 0
        %1265 = vmatprep.subr.bf16.mxu0 0
        %1266 = vmatpush1.bf16.xpose.msra.mxu0 0
        %1267 = vmatprep.subr.bf16.mxu0 0
        %1268 = vmatpush1.bf16.xpose.msra.mxu0 0
        %1269 = vmatprep.subr.bf16.mxu0 0
        %1270 = vmatpush1.bf16.xpose.msra.mxu0 0
        %1271 = vmatprep.subr.bf16.mxu0 0
        %1272 = vmatpush1.bf16.xpose.msra.mxu0 0
        %1273 = vmatprep.subr.bf16.mxu0 0
        %1274 = vmatpush1.bf16.xpose.msra.mxu0 0
        %1275 = vmatprep.subr.bf16.mxu0 0
        %1276 = vmatpush1.bf16.xpose.msra.mxu0 0
        %1277 = vmatprep.subr.bf16.mxu0 0
        %1278 = vmatpush1.bf16.xpose.msra.mxu0 0
        %1279 = vmatprep.subr.bf16.mxu0 0
        %1280 = vmatpush1.bf16.xpose.msra.mxu0 %v1263
        %1281 = vmatprep.subr.bf16.mxu0 0
        %1282 = vmatpush2.bf16.xpose.msra.mxu0 0
        %1283 = vmatprep.subr.bf16.mxu0 0
        %1284 = vmatpush2.bf16.xpose.msra.mxu0 0
        %1285 = vmatprep.subr.bf16.mxu0 0
        %1286 = vmatpush2.bf16.xpose.msra.mxu0 0
        %1287 = vmatprep.subr.bf16.mxu0 0
        %1288 = vmatpush2.bf16.xpose.msra.mxu0 0
        %1289 = vmatprep.subr.bf16.mxu0 0
        %1290 = vmatpush2.bf16.xpose.msra.mxu0 0
        %1291 = vmatprep.subr.bf16.mxu0 0
        %1292 = vmatpush2.bf16.xpose.msra.mxu0 0
        %1293 = vmatprep.subr.bf16.mxu0 0
        %1294 = vmatpush2.bf16.xpose.msra.mxu0 0
        %1295 = vmatprep.subr.bf16.mxu0 0
        %1296 = vmatpush2.bf16.xpose.msra.mxu0 0
        %1297 = vmatprep.mubr.bf16.mxu0 0
        %1298 = vmatmul.mubr.bf16.gmra.mxu0 %v1260
        %v1299 = vpop.f32.mrf.mxu0
        %v1300 = vadd.f32 0.0, %v1299
        %v1301 = vpop.f32.mrf.mxu0
        %v1302 = vpop.f32.mrf.mxu0
        %v1303 = vadd.f32 0.0, %v1302
        %v1304 = vpop.f32.mrf.mxu0
        %1305 = vdwg.mxu0
        %v1307 = vsel %vm788, %v693, 0
        %v1310 = vsel %vm788, %v725, 0
        %1312 = vmatprep.subr.bf16.mxu0 0
        %1313 = vmatpush1.bf16.xpose.msra.mxu0 0
        %1314 = vmatprep.subr.bf16.mxu0 0
        %1315 = vmatpush1.bf16.xpose.msra.mxu0 0
        %1316 = vmatprep.subr.bf16.mxu0 0
        %1317 = vmatpush1.bf16.xpose.msra.mxu0 0
        %1318 = vmatprep.subr.bf16.mxu0 0
        %1319 = vmatpush1.bf16.xpose.msra.mxu0 0
        %1320 = vmatprep.subr.bf16.mxu0 0
        %1321 = vmatpush1.bf16.xpose.msra.mxu0 0
        %1322 = vmatprep.subr.bf16.mxu0 0
        %1323 = vmatpush1.bf16.xpose.msra.mxu0 0
        %1324 = vmatprep.subr.bf16.mxu0 0
        %1325 = vmatpush1.bf16.xpose.msra.mxu0 0
        %1326 = vmatprep.subr.bf16.mxu0 0
        %1327 = vmatpush1.bf16.xpose.msra.mxu0 %v1310
        %1328 = vmatprep.subr.bf16.mxu0 0
        %1329 = vmatpush2.bf16.xpose.msra.mxu0 0
        %1330 = vmatprep.subr.bf16.mxu0 0
        %1331 = vmatpush2.bf16.xpose.msra.mxu0 0
        %1332 = vmatprep.subr.bf16.mxu0 0
        %1333 = vmatpush2.bf16.xpose.msra.mxu0 0
        %1334 = vmatprep.subr.bf16.mxu0 0
        %1335 = vmatpush2.bf16.xpose.msra.mxu0 0
        %1336 = vmatprep.subr.bf16.mxu0 0
        %1337 = vmatpush2.bf16.xpose.msra.mxu0 0
        %1338 = vmatprep.subr.bf16.mxu0 0
        %1339 = vmatpush2.bf16.xpose.msra.mxu0 0
        %1340 = vmatprep.subr.bf16.mxu0 0
        %1341 = vmatpush2.bf16.xpose.msra.mxu0 0
        %1342 = vmatprep.subr.bf16.mxu0 0
        %1343 = vmatpush2.bf16.xpose.msra.mxu0 0
        %1344 = vmatprep.mubr.bf16.mxu0 0
        %1345 = vmatmul.mubr.bf16.gmra.mxu0 %v1307
        %v1346 = vpop.f32.mrf.mxu0
        %v1347 = vadd.f32 0.0, %v1346
        %v1348 = vpop.f32.mrf.mxu0
        %v1349 = vpop.f32.mrf.mxu0
        %v1350 = vadd.f32 0.0, %v1349
        %v1351 = vpop.f32.mrf.mxu0
        %1352 = vdwg.mxu0
        %v1354 = vsel %vm788, %v697, 0
        %v1357 = vsel %vm788, %v729, 0
        %1359 = vmatprep.subr.bf16.mxu0 0
        %1360 = vmatpush1.bf16.xpose.msra.mxu0 0
        %1361 = vmatprep.subr.bf16.mxu0 0
        %1362 = vmatpush1.bf16.xpose.msra.mxu0 0
        %1363 = vmatprep.subr.bf16.mxu0 0
        %1364 = vmatpush1.bf16.xpose.msra.mxu0 0
        %1365 = vmatprep.subr.bf16.mxu0 0
        %1366 = vmatpush1.bf16.xpose.msra.mxu0 0
        %1367 = vmatprep.subr.bf16.mxu0 0
        %1368 = vmatpush1.bf16.xpose.msra.mxu0 0
        %1369 = vmatprep.subr.bf16.mxu0 0
        %1370 = vmatpush1.bf16.xpose.msra.mxu0 0
        %1371 = vmatprep.subr.bf16.mxu0 0
        %1372 = vmatpush1.bf16.xpose.msra.mxu0 0
        %1373 = vmatprep.subr.bf16.mxu0 0
        %1374 = vmatpush1.bf16.xpose.msra.mxu0 %v1357
        %1375 = vmatprep.subr.bf16.mxu0 0
        %1376 = vmatpush2.bf16.xpose.msra.mxu0 0
        %1377 = vmatprep.subr.bf16.mxu0 0
        %1378 = vmatpush2.bf16.xpose.msra.mxu0 0
        %1379 = vmatprep.subr.bf16.mxu0 0
        %1380 = vmatpush2.bf16.xpose.msra.mxu0 0
        %1381 = vmatprep.subr.bf16.mxu0 0
        %1382 = vmatpush2.bf16.xpose.msra.mxu0 0
        %1383 = vmatprep.subr.bf16.mxu0 0
        %1384 = vmatpush2.bf16.xpose.msra.mxu0 0
        %1385 = vmatprep.subr.bf16.mxu0 0
        %1386 = vmatpush2.bf16.xpose.msra.mxu0 0
        %1387 = vmatprep.subr.bf16.mxu0 0
        %1388 = vmatpush2.bf16.xpose.msra.mxu0 0
        %1389 = vmatprep.subr.bf16.mxu0 0
        %1390 = vmatpush2.bf16.xpose.msra.mxu0 0
        %1391 = vmatprep.mubr.bf16.mxu0 0
        %1392 = vmatmul.mubr.bf16.gmra.mxu0 %v1354
        %v1393 = vpop.f32.mrf.mxu0
        %v1394 = vadd.f32 0.0, %v1393
        %v1395 = vpop.f32.mrf.mxu0
        %v1396 = vpop.f32.mrf.mxu0
        %v1397 = vadd.f32 0.0, %v1396
        %v1398 = vpop.f32.mrf.mxu0
        %1399 = vdwg.mxu0
        %v1401 = vsel %vm788, %v701, 0
        %v1404 = vsel %vm788, %v733, 0
        %1406 = vmatprep.subr.bf16.mxu0 0
        %1407 = vmatpush1.bf16.xpose.msra.mxu0 0
        %1408 = vmatprep.subr.bf16.mxu0 0
        %1409 = vmatpush1.bf16.xpose.msra.mxu0 0
        %1410 = vmatprep.subr.bf16.mxu0 0
        %1411 = vmatpush1.bf16.xpose.msra.mxu0 0
        %1412 = vmatprep.subr.bf16.mxu0 0
        %1413 = vmatpush1.bf16.xpose.msra.mxu0 0
        %1414 = vmatprep.subr.bf16.mxu0 0
        %1415 = vmatpush1.bf16.xpose.msra.mxu0 0
        %1416 = vmatprep.subr.bf16.mxu0 0
        %1417 = vmatpush1.bf16.xpose.msra.mxu0 0
        %1418 = vmatprep.subr.bf16.mxu0 0
        %1419 = vmatpush1.bf16.xpose.msra.mxu0 0
        %1420 = vmatprep.subr.bf16.mxu0 0
        %1421 = vmatpush1.bf16.xpose.msra.mxu0 %v1404
        %1422 = vmatprep.subr.bf16.mxu0 0
        %1423 = vmatpush2.bf16.xpose.msra.mxu0 0
        %1424 = vmatprep.subr.bf16.mxu0 0
        %1425 = vmatpush2.bf16.xpose.msra.mxu0 0
        %1426 = vmatprep.subr.bf16.mxu0 0
        %1427 = vmatpush2.bf16.xpose.msra.mxu0 0
        %1428 = vmatprep.subr.bf16.mxu0 0
        %1429 = vmatpush2.bf16.xpose.msra.mxu0 0
        %1430 = vmatprep.subr.bf16.mxu0 0
        %1431 = vmatpush2.bf16.xpose.msra.mxu0 0
        %1432 = vmatprep.subr.bf16.mxu0 0
        %1433 = vmatpush2.bf16.xpose.msra.mxu0 0
        %1434 = vmatprep.subr.bf16.mxu0 0
        %1435 = vmatpush2.bf16.xpose.msra.mxu0 0
        %1436 = vmatprep.subr.bf16.mxu0 0
        %1437 = vmatpush2.bf16.xpose.msra.mxu0 0
        %1438 = vmatprep.mubr.bf16.mxu0 0
        %1439 = vmatmul.mubr.bf16.gmra.mxu0 %v1401
        %v1440 = vpop.f32.mrf.mxu0
        %v1441 = vadd.f32 0.0, %v1440
        %v1442 = vpop.f32.mrf.mxu0
        %v1443 = vpop.f32.mrf.mxu0
        %v1444 = vadd.f32 0.0, %v1443
        %v1445 = vpop.f32.mrf.mxu0
        %1446 = vdwg.mxu0
        %v1448 = vsel %vm788, %v705, 0
        %v1451 = vsel %vm788, %v737, 0
        %1453 = vmatprep.subr.bf16.mxu0 0
        %1454 = vmatpush1.bf16.xpose.msra.mxu0 0
        %1455 = vmatprep.subr.bf16.mxu0 0
        %1456 = vmatpush1.bf16.xpose.msra.mxu0 0
        %1457 = vmatprep.subr.bf16.mxu0 0
        %1458 = vmatpush1.bf16.xpose.msra.mxu0 0
        %1459 = vmatprep.subr.bf16.mxu0 0
        %1460 = vmatpush1.bf16.xpose.msra.mxu0 0
        %1461 = vmatprep.subr.bf16.mxu0 0
        %1462 = vmatpush1.bf16.xpose.msra.mxu0 0
        %1463 = vmatprep.subr.bf16.mxu0 0
        %1464 = vmatpush1.bf16.xpose.msra.mxu0 0
        %1465 = vmatprep.subr.bf16.mxu0 0
        %1466 = vmatpush1.bf16.xpose.msra.mxu0 0
        %1467 = vmatprep.subr.bf16.mxu0 0
        %1468 = vmatpush1.bf16.xpose.msra.mxu0 %v1451
        %1469 = vmatprep.subr.bf16.mxu0 0
        %1470 = vmatpush2.bf16.xpose.msra.mxu0 0
        %1471 = vmatprep.subr.bf16.mxu0 0
        %1472 = vmatpush2.bf16.xpose.msra.mxu0 0
        %1473 = vmatprep.subr.bf16.mxu0 0
        %1474 = vmatpush2.bf16.xpose.msra.mxu0 0
        %1475 = vmatprep.subr.bf16.mxu0 0
        %1476 = vmatpush2.bf16.xpose.msra.mxu0 0
        %1477 = vmatprep.subr.bf16.mxu0 0
        %1478 = vmatpush2.bf16.xpose.msra.mxu0 0
        %1479 = vmatprep.subr.bf16.mxu0 0
        %1480 = vmatpush2.bf16.xpose.msra.mxu0 0
        %1481 = vmatprep.subr.bf16.mxu0 0
        %1482 = vmatpush2.bf16.xpose.msra.mxu0 0
        %1483 = vmatprep.subr.bf16.mxu0 0
        %1484 = vmatpush2.bf16.xpose.msra.mxu0 0
        %1485 = vmatprep.mubr.bf16.mxu0 0
        %1486 = vmatmul.mubr.bf16.gmra.mxu0 %v1448
        %v1487 = vpop.f32.mrf.mxu0
        %v1488 = vadd.f32 0.0, %v1487
        %v1489 = vpop.f32.mrf.mxu0
        %v1490 = vpop.f32.mrf.mxu0
        %v1491 = vadd.f32 0.0, %v1490
        %v1492 = vpop.f32.mrf.mxu0
        %1493 = vdwg.mxu0
        %v1495 = vsel %vm788, %v709, 0
        %v1498 = vsel %vm788, %v741, 0
        %1500 = vmatprep.subr.bf16.mxu0 0
        %1501 = vmatpush1.bf16.xpose.msra.mxu0 0
        %1502 = vmatprep.subr.bf16.mxu0 0
        %1503 = vmatpush1.bf16.xpose.msra.mxu0 0
        %1504 = vmatprep.subr.bf16.mxu0 0
        %1505 = vmatpush1.bf16.xpose.msra.mxu0 0
        %1506 = vmatprep.subr.bf16.mxu0 0
        %1507 = vmatpush1.bf16.xpose.msra.mxu0 0
        %1508 = vmatprep.subr.bf16.mxu0 0
        %1509 = vmatpush1.bf16.xpose.msra.mxu0 0
        %1510 = vmatprep.subr.bf16.mxu0 0
        %1511 = vmatpush1.bf16.xpose.msra.mxu0 0
        %1512 = vmatprep.subr.bf16.mxu0 0
        %1513 = vmatpush1.bf16.xpose.msra.mxu0 0
        %1514 = vmatprep.subr.bf16.mxu0 0
        %1515 = vmatpush1.bf16.xpose.msra.mxu0 %v1498
        %1516 = vmatprep.subr.bf16.mxu0 0
        %1517 = vmatpush2.bf16.xpose.msra.mxu0 0
        %1518 = vmatprep.subr.bf16.mxu0 0
        %1519 = vmatpush2.bf16.xpose.msra.mxu0 0
        %1520 = vmatprep.subr.bf16.mxu0 0
        %1521 = vmatpush2.bf16.xpose.msra.mxu0 0
        %1522 = vmatprep.subr.bf16.mxu0 0
        %1523 = vmatpush2.bf16.xpose.msra.mxu0 0
        %1524 = vmatprep.subr.bf16.mxu0 0
        %1525 = vmatpush2.bf16.xpose.msra.mxu0 0
        %1526 = vmatprep.subr.bf16.mxu0 0
        %1527 = vmatpush2.bf16.xpose.msra.mxu0 0
        %1528 = vmatprep.subr.bf16.mxu0 0
        %1529 = vmatpush2.bf16.xpose.msra.mxu0 0
        %1530 = vmatprep.subr.bf16.mxu0 0
        %1531 = vmatpush2.bf16.xpose.msra.mxu0 0
        %1532 = vmatprep.mubr.bf16.mxu0 0
        %1533 = vmatmul.mubr.bf16.gmra.mxu0 %v1495
        %v1534 = vpop.f32.mrf.mxu0
        %v1535 = vadd.f32 0.0, %v1534
        %v1536 = vpop.f32.mrf.mxu0
        %v1537 = vpop.f32.mrf.mxu0
        %v1538 = vadd.f32 0.0, %v1537
        %v1539 = vpop.f32.mrf.mxu0
        %1540 = vdwg.mxu0
        %v1541 = vld [vmem:[%s329] sm:$0xf]
        %v1542 = vld [vmem:[%s329 + $0x4] sm:$0xf]
        %v1543 = vld [vmem:[%s329 + $0x8] sm:$0xf]
        %v1544 = vld [vmem:[%s329 + $0xc] sm:$0xf]
        %v1545 = vunpack.c.l.bf16 %v1541
        %v1546 = vunpack.c.l.bf16 %v1542
        %v1547 = vunpack.c.l.bf16 %v1543
        %v1548 = vunpack.c.l.bf16 %v1544
        %v1549 = vadd.f32 %v830, %v1545
        %v1550 = vadd.f32 %v833, %v1546
        %v1551 = vadd.f32 %v877, %v1545
        %v1552 = vadd.f32 %v880, %v1546
        %v1553 = vadd.f32 %v924, %v1545
        %v1554 = vadd.f32 %v927, %v1546
        %v1555 = vadd.f32 %v971, %v1545
        %v1556 = vadd.f32 %v974, %v1546
        %v1557 = vadd.f32 %v1018, %v1545
        %v1558 = vadd.f32 %v1021, %v1546
        %v1559 = vadd.f32 %v1065, %v1545
        %v1560 = vadd.f32 %v1068, %v1546
        %v1561 = vadd.f32 %v1112, %v1545
        %v1562 = vadd.f32 %v1115, %v1546
        %v1563 = vadd.f32 %v1159, %v1545
        %v1564 = vadd.f32 %v1162, %v1546
        %v1565 = vadd.f32 %v1206, %v1547
        %v1566 = vadd.f32 %v1209, %v1548
        %v1567 = vadd.f32 %v1253, %v1547
        %v1568 = vadd.f32 %v1256, %v1548
        %v1569 = vadd.f32 %v1300, %v1547
        %v1570 = vadd.f32 %v1303, %v1548
        %v1571 = vadd.f32 %v1347, %v1547
        %v1572 = vadd.f32 %v1350, %v1548
        %v1573 = vadd.f32 %v1394, %v1547
        %v1574 = vadd.f32 %v1397, %v1548
        %v1575 = vadd.f32 %v1441, %v1547
        %v1576 = vadd.f32 %v1444, %v1548
        %v1577 = vadd.f32 %v1488, %v1547
        %v1578 = vadd.f32 %v1491, %v1548
        %v1579 = vadd.f32 %v1535, %v1547
        %v1580 = vadd.f32 %v1538, %v1548
        %v1581 = vsel %vm788, %v1549, -inf
        %1582 = vmax.xlane.f32.xlu0 %v1581
        %v1583 = vpop.xlane.xlu0 %1582
        %v1584 = vsel %vm788, %v1550, -inf
        %1585 = vmax.xlane.f32.xlu0 %v1584
        %v1586 = vpop.xlane.xlu0 %1585
        %v1587 = vsel %vm788, %v1551, -inf
        %1588 = vmax.xlane.f32.xlu0 %v1587
        %v1589 = vpop.xlane.xlu0 %1588
        %v1590 = vsel %vm788, %v1552, -inf
        %1591 = vmax.xlane.f32.xlu0 %v1590
        %v1592 = vpop.xlane.xlu0 %1591
        %v1593 = vsel %vm788, %v1553, -inf
        %1594 = vmax.xlane.f32.xlu0 %v1593
        %v1595 = vpop.xlane.xlu0 %1594
        %v1596 = vsel %vm788, %v1554, -inf
        %1597 = vmax.xlane.f32.xlu0 %v1596
        %v1598 = vpop.xlane.xlu0 %1597
        %v1599 = vsel %vm788, %v1555, -inf
        %1600 = vmax.xlane.f32.xlu0 %v1599
        %v1601 = vpop.xlane.xlu0 %1600
        %v1602 = vsel %vm788, %v1556, -inf
        %1603 = vmax.xlane.f32.xlu0 %v1602
        %v1604 = vpop.xlane.xlu0 %1603
        %v1605 = vsel %vm788, %v1557, -inf
        %1606 = vmax.xlane.f32.xlu0 %v1605
        %v1607 = vpop.xlane.xlu0 %1606
        %v1608 = vsel %vm788, %v1558, -inf
        %1609 = vmax.xlane.f32.xlu0 %v1608
        %v1610 = vpop.xlane.xlu0 %1609
        %v1611 = vsel %vm788, %v1559, -inf
        %1612 = vmax.xlane.f32.xlu0 %v1611
        %v1613 = vpop.xlane.xlu0 %1612
        %v1614 = vsel %vm788, %v1560, -inf
        %1615 = vmax.xlane.f32.xlu0 %v1614
        %v1616 = vpop.xlane.xlu0 %1615
        %v1617 = vsel %vm788, %v1561, -inf
        %1618 = vmax.xlane.f32.xlu0 %v1617
        %v1619 = vpop.xlane.xlu0 %1618
        %v1620 = vsel %vm788, %v1562, -inf
        %1621 = vmax.xlane.f32.xlu0 %v1620
        %v1622 = vpop.xlane.xlu0 %1621
        %v1623 = vsel %vm788, %v1563, -inf
        %1624 = vmax.xlane.f32.xlu0 %v1623
        %v1625 = vpop.xlane.xlu0 %1624
        %v1626 = vsel %vm788, %v1564, -inf
        %1627 = vmax.xlane.f32.xlu0 %v1626
        %v1628 = vpop.xlane.xlu0 %1627
        %v1629 = vsel %vm788, %v1565, -inf
        %1630 = vmax.xlane.f32.xlu0 %v1629
        %v1631 = vpop.xlane.xlu0 %1630
        %v1632 = vsel %vm788, %v1566, -inf
        %1633 = vmax.xlane.f32.xlu0 %v1632
        %v1634 = vpop.xlane.xlu0 %1633
        %v1635 = vsel %vm788, %v1567, -inf
        %1636 = vmax.xlane.f32.xlu0 %v1635
        %v1637 = vpop.xlane.xlu0 %1636
        %v1638 = vsel %vm788, %v1568, -inf
        %1639 = vmax.xlane.f32.xlu0 %v1638
        %v1640 = vpop.xlane.xlu0 %1639
        %v1641 = vsel %vm788, %v1569, -inf
        %1642 = vmax.xlane.f32.xlu0 %v1641
        %v1643 = vpop.xlane.xlu0 %1642
        %v1644 = vsel %vm788, %v1570, -inf
        %1645 = vmax.xlane.f32.xlu0 %v1644
        %v1646 = vpop.xlane.xlu0 %1645
        %v1647 = vsel %vm788, %v1571, -inf
        %1648 = vmax.xlane.f32.xlu0 %v1647
        %v1649 = vpop.xlane.xlu0 %1648
        %v1650 = vsel %vm788, %v1572, -inf
        %1651 = vmax.xlane.f32.xlu0 %v1650
        %v1652 = vpop.xlane.xlu0 %1651
        %v1653 = vsel %vm788, %v1573, -inf
        %1654 = vmax.xlane.f32.xlu0 %v1653
        %v1655 = vpop.xlane.xlu0 %1654
        %v1656 = vsel %vm788, %v1574, -inf
        %1657 = vmax.xlane.f32.xlu0 %v1656
        %v1658 = vpop.xlane.xlu0 %1657
        %v1659 = vsel %vm788, %v1575, -inf
        %1660 = vmax.xlane.f32.xlu0 %v1659
        %v1661 = vpop.xlane.xlu0 %1660
        %v1662 = vsel %vm788, %v1576, -inf
        %1663 = vmax.xlane.f32.xlu0 %v1662
        %v1664 = vpop.xlane.xlu0 %1663
        %v1665 = vsel %vm788, %v1577, -inf
        %1666 = vmax.xlane.f32.xlu0 %v1665
        %v1667 = vpop.xlane.xlu0 %1666
        %v1668 = vsel %vm788, %v1578, -inf
        %1669 = vmax.xlane.f32.xlu0 %v1668
        %v1670 = vpop.xlane.xlu0 %1669
        %v1671 = vsel %vm788, %v1579, -inf
        %1672 = vmax.xlane.f32.xlu0 %v1671
        %v1673 = vpop.xlane.xlu0 %1672
        %v1674 = vsel %vm788, %v1580, -inf
        %1675 = vmax.xlane.f32.xlu0 %v1674
        %v1676 = vpop.xlane.xlu0 %1675
        %v1677 = vsub.f32 %v1549, %v1583
        %v1678 = vsub.f32 %v1550, %v1586
        %v1679 = vsub.f32 %v1551, %v1589
        %v1680 = vsub.f32 %v1552, %v1592
        %v1681 = vsub.f32 %v1553, %v1595
        %v1682 = vsub.f32 %v1554, %v1598
        %v1683 = vsub.f32 %v1555, %v1601
        %v1684 = vsub.f32 %v1556, %v1604
        %v1685 = vsub.f32 %v1557, %v1607
        %v1686 = vsub.f32 %v1558, %v1610
        %v1687 = vsub.f32 %v1559, %v1613
        %v1688 = vsub.f32 %v1560, %v1616
        %v1689 = vsub.f32 %v1561, %v1619
        %v1690 = vsub.f32 %v1562, %v1622
        %v1691 = vsub.f32 %v1563, %v1625
        %v1692 = vsub.f32 %v1564, %v1628
        %v1693 = vsub.f32 %v1565, %v1631
        %v1694 = vsub.f32 %v1566, %v1634
        %v1695 = vsub.f32 %v1567, %v1637
        %v1696 = vsub.f32 %v1568, %v1640
        %v1697 = vsub.f32 %v1569, %v1643
        %v1698 = vsub.f32 %v1570, %v1646
        %v1699 = vsub.f32 %v1571, %v1649
        %v1700 = vsub.f32 %v1572, %v1652
        %v1701 = vsub.f32 %v1573, %v1655
        %v1702 = vsub.f32 %v1574, %v1658
        %v1703 = vsub.f32 %v1575, %v1661
        %v1704 = vsub.f32 %v1576, %v1664
        %v1705 = vsub.f32 %v1577, %v1667
        %v1706 = vsub.f32 %v1578, %v1670
        %v1707 = vsub.f32 %v1579, %v1673
        %v1708 = vsub.f32 %v1580, %v1676
        %v1709 = vmul.f32 %v1677, 1.442695
        %v1710 = vpow.pop %v1709
        %v1711 = vmul.f32 %v1678, 1.442695
        %v1712 = vpow.pop %v1711
        %v1713 = vmul.f32 %v1679, 1.442695
        %v1714 = vpow.pop %v1713
        %v1715 = vmul.f32 %v1680, 1.442695
        %v1716 = vpow.pop %v1715
        %v1717 = vmul.f32 %v1681, 1.442695
        %v1718 = vpow.pop %v1717
        %v1719 = vmul.f32 %v1682, 1.442695
        %v1720 = vpow.pop %v1719
        %v1721 = vmul.f32 %v1683, 1.442695
        %v1722 = vpow.pop %v1721
        %v1723 = vmul.f32 %v1684, 1.442695
        %v1724 = vpow.pop %v1723
        %v1725 = vmul.f32 %v1685, 1.442695
        %v1726 = vpow.pop %v1725
        %v1727 = vmul.f32 %v1686, 1.442695
        %v1728 = vpow.pop %v1727
        %v1729 = vmul.f32 %v1687, 1.442695
        %v1730 = vpow.pop %v1729
        %v1731 = vmul.f32 %v1688, 1.442695
        %v1732 = vpow.pop %v1731
        %v1733 = vmul.f32 %v1689, 1.442695
        %v1734 = vpow.pop %v1733
        %v1735 = vmul.f32 %v1690, 1.442695
        %v1736 = vpow.pop %v1735
        %v1737 = vmul.f32 %v1691, 1.442695
        %v1738 = vpow.pop %v1737
        %v1739 = vmul.f32 %v1692, 1.442695
        %v1740 = vpow.pop %v1739
        %v1741 = vmul.f32 %v1693, 1.442695
        %v1742 = vpow.pop %v1741
        %v1743 = vmul.f32 %v1694, 1.442695
        %v1744 = vpow.pop %v1743
        %v1745 = vmul.f32 %v1695, 1.442695
        %v1746 = vpow.pop %v1745
        %v1747 = vmul.f32 %v1696, 1.442695
        %v1748 = vpow.pop %v1747
        %v1749 = vmul.f32 %v1697, 1.442695
        %v1750 = vpow.pop %v1749
        %v1751 = vmul.f32 %v1698, 1.442695
        %v1752 = vpow.pop %v1751
        %v1753 = vmul.f32 %v1699, 1.442695
        %v1754 = vpow.pop %v1753
        %v1755 = vmul.f32 %v1700, 1.442695
        %v1756 = vpow.pop %v1755
        %v1757 = vmul.f32 %v1701, 1.442695
        %v1758 = vpow.pop %v1757
        %v1759 = vmul.f32 %v1702, 1.442695
        %v1760 = vpow.pop %v1759
        %v1761 = vmul.f32 %v1703, 1.442695
        %v1762 = vpow.pop %v1761
        %v1763 = vmul.f32 %v1704, 1.442695
        %v1764 = vpow.pop %v1763
        %v1765 = vmul.f32 %v1705, 1.442695
        %v1766 = vpow.pop %v1765
        %v1767 = vmul.f32 %v1706, 1.442695
        %v1768 = vpow.pop %v1767
        %v1769 = vmul.f32 %v1707, 1.442695
        %v1770 = vpow.pop %v1769
        %v1771 = vmul.f32 %v1708, 1.442695
        %v1772 = vpow.pop %v1771
        %v1773 = vsel %vm788, %v1710, 0.0
        %1774 = vadd.xlane.f32.xlu0 %v1773
        %v1775 = vpop.xlane.xlu0 %1774
        %v1776 = vsel %vm788, %v1712, 0.0
        %1777 = vadd.xlane.f32.xlu0 %v1776
        %v1778 = vpop.xlane.xlu0 %1777
        %v1779 = vsel %vm788, %v1714, 0.0
        %1780 = vadd.xlane.f32.xlu0 %v1779
        %v1781 = vpop.xlane.xlu0 %1780
        %v1782 = vsel %vm788, %v1716, 0.0
        %1783 = vadd.xlane.f32.xlu0 %v1782
        %v1784 = vpop.xlane.xlu0 %1783
        %v1785 = vsel %vm788, %v1718, 0.0
        %1786 = vadd.xlane.f32.xlu0 %v1785
        %v1787 = vpop.xlane.xlu0 %1786
        %v1788 = vsel %vm788, %v1720, 0.0
        %1789 = vadd.xlane.f32.xlu0 %v1788
        %v1790 = vpop.xlane.xlu0 %1789
        %v1791 = vsel %vm788, %v1722, 0.0
        %1792 = vadd.xlane.f32.xlu0 %v1791
        %v1793 = vpop.xlane.xlu0 %1792
        %v1794 = vsel %vm788, %v1724, 0.0
        %1795 = vadd.xlane.f32.xlu0 %v1794
        %v1796 = vpop.xlane.xlu0 %1795
        %v1797 = vsel %vm788, %v1726, 0.0
        %1798 = vadd.xlane.f32.xlu0 %v1797
        %v1799 = vpop.xlane.xlu0 %1798
        %v1800 = vsel %vm788, %v1728, 0.0
        %1801 = vadd.xlane.f32.xlu0 %v1800
        %v1802 = vpop.xlane.xlu0 %1801
        %v1803 = vsel %vm788, %v1730, 0.0
        %1804 = vadd.xlane.f32.xlu0 %v1803
        %v1805 = vpop.xlane.xlu0 %1804
        %v1806 = vsel %vm788, %v1732, 0.0
        %1807 = vadd.xlane.f32.xlu0 %v1806
        %v1808 = vpop.xlane.xlu0 %1807
        %v1809 = vsel %vm788, %v1734, 0.0
        %1810 = vadd.xlane.f32.xlu0 %v1809
        %v1811 = vpop.xlane.xlu0 %1810
        %v1812 = vsel %vm788, %v1736, 0.0
        %1813 = vadd.xlane.f32.xlu0 %v1812
        %v1814 = vpop.xlane.xlu0 %1813
        %v1815 = vsel %vm788, %v1738, 0.0
        %1816 = vadd.xlane.f32.xlu0 %v1815
        %v1817 = vpop.xlane.xlu0 %1816
        %v1818 = vsel %vm788, %v1740, 0.0
        %1819 = vadd.xlane.f32.xlu0 %v1818
        %v1820 = vpop.xlane.xlu0 %1819
        %v1821 = vsel %vm788, %v1742, 0.0
        %1822 = vadd.xlane.f32.xlu0 %v1821
        %v1823 = vpop.xlane.xlu0 %1822
        %v1824 = vsel %vm788, %v1744, 0.0
        %1825 = vadd.xlane.f32.xlu0 %v1824
        %v1826 = vpop.xlane.xlu0 %1825
        %v1827 = vsel %vm788, %v1746, 0.0
        %1828 = vadd.xlane.f32.xlu0 %v1827
        %v1829 = vpop.xlane.xlu0 %1828
        %v1830 = vsel %vm788, %v1748, 0.0
        %1831 = vadd.xlane.f32.xlu0 %v1830
        %v1832 = vpop.xlane.xlu0 %1831
        %v1833 = vsel %vm788, %v1750, 0.0
        %1834 = vadd.xlane.f32.xlu0 %v1833
        %v1835 = vpop.xlane.xlu0 %1834
        %v1836 = vsel %vm788, %v1752, 0.0
        %1837 = vadd.xlane.f32.xlu0 %v1836
        %v1838 = vpop.xlane.xlu0 %1837
        %v1839 = vsel %vm788, %v1754, 0.0
        %1840 = vadd.xlane.f32.xlu0 %v1839
        %v1841 = vpop.xlane.xlu0 %1840
        %v1842 = vsel %vm788, %v1756, 0.0
        %1843 = vadd.xlane.f32.xlu0 %v1842
        %v1844 = vpop.xlane.xlu0 %1843
        %v1845 = vsel %vm788, %v1758, 0.0
        %1846 = vadd.xlane.f32.xlu0 %v1845
        %v1847 = vpop.xlane.xlu0 %1846
        %v1848 = vsel %vm788, %v1760, 0.0
        %1849 = vadd.xlane.f32.xlu0 %v1848
        %v1850 = vpop.xlane.xlu0 %1849
        %v1851 = vsel %vm788, %v1762, 0.0
        %1852 = vadd.xlane.f32.xlu0 %v1851
        %v1853 = vpop.xlane.xlu0 %1852
        %v1854 = vsel %vm788, %v1764, 0.0
        %1855 = vadd.xlane.f32.xlu0 %v1854
        %v1856 = vpop.xlane.xlu0 %1855
        %v1857 = vsel %vm788, %v1766, 0.0
        %1858 = vadd.xlane.f32.xlu0 %v1857
        %v1859 = vpop.xlane.xlu0 %1858
        %v1860 = vsel %vm788, %v1768, 0.0
        %1861 = vadd.xlane.f32.xlu0 %v1860
        %v1862 = vpop.xlane.xlu0 %1861
        %v1863 = vsel %vm788, %v1770, 0.0
        %1864 = vadd.xlane.f32.xlu0 %v1863
        %v1865 = vpop.xlane.xlu0 %1864
        %v1866 = vsel %vm788, %v1772, 0.0
        %1867 = vadd.xlane.f32.xlu0 %v1866
        %v1868 = vpop.xlane.xlu0 %1867
        %v1869 = vrcp.pop %v1775
        %v1870 = vmul.f32 %v1710, %v1869
        %v1871 = vrcp.pop %v1778
        %v1872 = vmul.f32 %v1712, %v1871
        %v1873 = vrcp.pop %v1781
        %v1874 = vmul.f32 %v1714, %v1873
        %v1875 = vrcp.pop %v1784
        %v1876 = vmul.f32 %v1716, %v1875
        %v1877 = vrcp.pop %v1787
        %v1878 = vmul.f32 %v1718, %v1877
        %v1879 = vrcp.pop %v1790
        %v1880 = vmul.f32 %v1720, %v1879
        %v1881 = vrcp.pop %v1793
        %v1882 = vmul.f32 %v1722, %v1881
        %v1883 = vrcp.pop %v1796
        %v1884 = vmul.f32 %v1724, %v1883
        %v1885 = vrcp.pop %v1799
        %v1886 = vmul.f32 %v1726, %v1885
        %v1887 = vrcp.pop %v1802
        %v1888 = vmul.f32 %v1728, %v1887
        %v1889 = vrcp.pop %v1805
        %v1890 = vmul.f32 %v1730, %v1889
        %v1891 = vrcp.pop %v1808
        %v1892 = vmul.f32 %v1732, %v1891
        %v1893 = vrcp.pop %v1811
        %v1894 = vmul.f32 %v1734, %v1893
        %v1895 = vrcp.pop %v1814
        %v1896 = vmul.f32 %v1736, %v1895
        %v1897 = vrcp.pop %v1817
        %v1898 = vmul.f32 %v1738, %v1897
        %v1899 = vrcp.pop %v1820
        %v1900 = vmul.f32 %v1740, %v1899
        %v1901 = vrcp.pop %v1823
        %v1902 = vmul.f32 %v1742, %v1901
        %v1903 = vrcp.pop %v1826
        %v1904 = vmul.f32 %v1744, %v1903
        %v1905 = vrcp.pop %v1829
        %v1906 = vmul.f32 %v1746, %v1905
        %v1907 = vrcp.pop %v1832
        %v1908 = vmul.f32 %v1748, %v1907
        %v1909 = vrcp.pop %v1835
        %v1910 = vmul.f32 %v1750, %v1909
        %v1911 = vrcp.pop %v1838
        %v1912 = vmul.f32 %v1752, %v1911
        %v1913 = vrcp.pop %v1841
        %v1914 = vmul.f32 %v1754, %v1913
        %v1915 = vrcp.pop %v1844
        %v1916 = vmul.f32 %v1756, %v1915
        %v1917 = vrcp.pop %v1847
        %v1918 = vmul.f32 %v1758, %v1917
        %v1919 = vrcp.pop %v1850
        %v1920 = vmul.f32 %v1760, %v1919
        %v1921 = vrcp.pop %v1853
        %v1922 = vmul.f32 %v1762, %v1921
        %v1923 = vrcp.pop %v1856
        %v1924 = vmul.f32 %v1764, %v1923
        %v1925 = vrcp.pop %v1859
        %v1926 = vmul.f32 %v1766, %v1925
        %v1927 = vrcp.pop %v1862
        %v1928 = vmul.f32 %v1768, %v1927
        %v1929 = vrcp.pop %v1865
        %v1930 = vmul.f32 %v1770, %v1929
        %v1931 = vrcp.pop %v1868
        %v1932 = vmul.f32 %v1772, %v1931
        %1933 = vst.msk [vmem:[%s377] sm:$0xff] %vm788, %v1870
        %1934 = vst.msk [vmem:[%s377 + $0x8] sm:$0xff] %vm788, %v1872
        %1935 = vst.msk [vmem:[%s377 + $0x10] sm:$0xff] %vm788, %v1874
        %1936 = vst.msk [vmem:[%s377 + $0x18] sm:$0xff] %vm788, %v1876
        %1937 = vst.msk [vmem:[%s377 + $0x20] sm:$0xff] %vm788, %v1878
        %1938 = vst.msk [vmem:[%s377 + $0x28] sm:$0xff] %vm788, %v1880
        %1939 = vst.msk [vmem:[%s377 + $0x30] sm:$0xff] %vm788, %v1882
        %1940 = vst.msk [vmem:[%s377 + $0x38] sm:$0xff] %vm788, %v1884
        %1941 = vst.msk [vmem:[%s377 + $0x40] sm:$0xff] %vm788, %v1886
        %1942 = vst.msk [vmem:[%s377 + $0x48] sm:$0xff] %vm788, %v1888
        %1943 = vst.msk [vmem:[%s377 + $0x50] sm:$0xff] %vm788, %v1890
        %1944 = vst.msk [vmem:[%s377 + $0x58] sm:$0xff] %vm788, %v1892
        %1945 = vst.msk [vmem:[%s377 + $0x60] sm:$0xff] %vm788, %v1894
        %1946 = vst.msk [vmem:[%s377 + $0x68] sm:$0xff] %vm788, %v1896
        %1947 = vst.msk [vmem:[%s377 + $0x70] sm:$0xff] %vm788, %v1898
        %1948 = vst.msk [vmem:[%s377 + $0x78] sm:$0xff] %vm788, %v1900
        %1949 = vst.msk [vmem:[%s377 + $0x80] sm:$0xff] %vm788, %v1902
        %1950 = vst.msk [vmem:[%s377 + $0x88] sm:$0xff] %vm788, %v1904
        %1951 = vst.msk [vmem:[%s377 + $0x90] sm:$0xff] %vm788, %v1906
        %1952 = vst.msk [vmem:[%s377 + $0x98] sm:$0xff] %vm788, %v1908
        %1953 = vst.msk [vmem:[%s377 + $0xa0] sm:$0xff] %vm788, %v1910
        %1954 = vst.msk [vmem:[%s377 + $0xa8] sm:$0xff] %vm788, %v1912
        %1955 = vst.msk [vmem:[%s377 + $0xb0] sm:$0xff] %vm788, %v1914
        %1956 = vst.msk [vmem:[%s377 + $0xb8] sm:$0xff] %vm788, %v1916
        %1957 = vst.msk [vmem:[%s377 + $0xc0] sm:$0xff] %vm788, %v1918
        %1958 = vst.msk [vmem:[%s377 + $0xc8] sm:$0xff] %vm788, %v1920
        %1959 = vst.msk [vmem:[%s377 + $0xd0] sm:$0xff] %vm788, %v1922
        %1960 = vst.msk [vmem:[%s377 + $0xd8] sm:$0xff] %vm788, %v1924
        %1961 = vst.msk [vmem:[%s377 + $0xe0] sm:$0xff] %vm788, %v1926
        %1962 = vst.msk [vmem:[%s377 + $0xe8] sm:$0xff] %vm788, %v1928
        %1963 = vst.msk [vmem:[%s377 + $0xf0] sm:$0xff] %vm788, %v1930
        %1964 = vst.msk [vmem:[%s377 + $0xf8] sm:$0xff] %vm788, %v1932
        %v1965 = vpack.c.bf16 %v1872, %v1870
        %v1966 = vpack.c.bf16 %v1876, %v1874
        %v1967 = vpack.c.bf16 %v1880, %v1878
        %v1968 = vpack.c.bf16 %v1884, %v1882
        %v1969 = vpack.c.bf16 %v1888, %v1886
        %v1970 = vpack.c.bf16 %v1892, %v1890
        %v1971 = vpack.c.bf16 %v1896, %v1894
        %v1972 = vpack.c.bf16 %v1900, %v1898
        %v1973 = vpack.c.bf16 %v1904, %v1902
        %v1974 = vpack.c.bf16 %v1908, %v1906
        %v1975 = vpack.c.bf16 %v1912, %v1910
        %v1976 = vpack.c.bf16 %v1916, %v1914
        %v1977 = vpack.c.bf16 %v1920, %v1918
        %v1978 = vpack.c.bf16 %v1924, %v1922
        %v1979 = vpack.c.bf16 %v1928, %v1926
        %v1980 = vpack.c.bf16 %v1932, %v1930
        %v1982 = vsel %vm788, %v1965, 0
        %1984 = vmatprep.subr.bf16.mxu0 0
        %1985 = vmatpush1.bf16.msra.mxu0 0
        %1986 = vmatprep.subr.bf16.mxu0 0
        %1987 = vmatpush1.bf16.msra.mxu0 0
        %1988 = vmatprep.subr.bf16.mxu0 0
        %1989 = vmatpush1.bf16.msra.mxu0 0
        %1990 = vmatprep.subr.bf16.mxu0 0
        %1991 = vmatpush1.bf16.msra.mxu0 0
        %1992 = vmatprep.subr.bf16.mxu0 0
        %1993 = vmatpush1.bf16.msra.mxu0 0
        %1994 = vmatprep.subr.bf16.mxu0 0
        %1995 = vmatpush1.bf16.msra.mxu0 0
        %1996 = vmatprep.subr.bf16.mxu0 0
        %1997 = vmatpush1.bf16.msra.mxu0 0
        %1998 = vmatprep.subr.bf16.mxu0 0
        %1999 = vmatpush1.bf16.msra.mxu0 %v742
        %2000 = vmatprep.subr.bf16.mxu0 0
        %2001 = vmatpush2.bf16.msra.mxu0 0
        %2002 = vmatprep.subr.bf16.mxu0 0
        %2003 = vmatpush2.bf16.msra.mxu0 0
        %2004 = vmatprep.subr.bf16.mxu0 0
        %2005 = vmatpush2.bf16.msra.mxu0 0
        %2006 = vmatprep.subr.bf16.mxu0 0
        %2007 = vmatpush2.bf16.msra.mxu0 0
        %2008 = vmatprep.subr.bf16.mxu0 0
        %2009 = vmatpush2.bf16.msra.mxu0 0
        %2010 = vmatprep.subr.bf16.mxu0 0
        %2011 = vmatpush2.bf16.msra.mxu0 0
        %2012 = vmatprep.subr.bf16.mxu0 0
        %2013 = vmatpush2.bf16.msra.mxu0 0
        %2014 = vmatprep.subr.bf16.mxu0 0
        %2015 = vmatpush2.bf16.msra.mxu0 0
        %2016 = vmatprep.mubr.bf16.mxu0 0
        %2017 = vmatmul.mubr.bf16.gmra.mxu0 %v1982
        %v2018 = vpop.f32.mrf.mxu0
        %v2019 = vadd.f32 0.0, %v2018
        %v2020 = vpop.f32.mrf.mxu0
        %v2021 = vpop.f32.mrf.mxu0
        %v2022 = vadd.f32 0.0, %v2021
        %v2023 = vpop.f32.mrf.mxu0
        %2024 = vdwg.mxu0
        %v2026 = vsel %vm788, %v1966, 0
        %2028 = vmatprep.subr.bf16.mxu0 0
        %2029 = vmatpush1.bf16.msra.mxu0 0
        %2030 = vmatprep.subr.bf16.mxu0 0
        %2031 = vmatpush1.bf16.msra.mxu0 0
        %2032 = vmatprep.subr.bf16.mxu0 0
        %2033 = vmatpush1.bf16.msra.mxu0 0
        %2034 = vmatprep.subr.bf16.mxu0 0
        %2035 = vmatpush1.bf16.msra.mxu0 0
        %2036 = vmatprep.subr.bf16.mxu0 0
        %2037 = vmatpush1.bf16.msra.mxu0 0
        %2038 = vmatprep.subr.bf16.mxu0 0
        %2039 = vmatpush1.bf16.msra.mxu0 0
        %2040 = vmatprep.subr.bf16.mxu0 0
        %2041 = vmatpush1.bf16.msra.mxu0 0
        %2042 = vmatprep.subr.bf16.mxu0 0
        %2043 = vmatpush1.bf16.msra.mxu0 %v747
        %2044 = vmatprep.subr.bf16.mxu0 0
        %2045 = vmatpush2.bf16.msra.mxu0 0
        %2046 = vmatprep.subr.bf16.mxu0 0
        %2047 = vmatpush2.bf16.msra.mxu0 0
        %2048 = vmatprep.subr.bf16.mxu0 0
        %2049 = vmatpush2.bf16.msra.mxu0 0
        %2050 = vmatprep.subr.bf16.mxu0 0
        %2051 = vmatpush2.bf16.msra.mxu0 0
        %2052 = vmatprep.subr.bf16.mxu0 0
        %2053 = vmatpush2.bf16.msra.mxu0 0
        %2054 = vmatprep.subr.bf16.mxu0 0
        %2055 = vmatpush2.bf16.msra.mxu0 0
        %2056 = vmatprep.subr.bf16.mxu0 0
        %2057 = vmatpush2.bf16.msra.mxu0 0
        %2058 = vmatprep.subr.bf16.mxu0 0
        %2059 = vmatpush2.bf16.msra.mxu0 0
        %2060 = vmatprep.mubr.bf16.mxu0 0
        %2061 = vmatmul.mubr.bf16.gmra.mxu0 %v2026
        %v2062 = vpop.f32.mrf.mxu0
        %v2063 = vadd.f32 0.0, %v2062
        %v2064 = vpop.f32.mrf.mxu0
        %v2065 = vpop.f32.mrf.mxu0
        %v2066 = vadd.f32 0.0, %v2065
        %v2067 = vpop.f32.mrf.mxu0
        %2068 = vdwg.mxu0
        %v2070 = vsel %vm788, %v1967, 0
        %2072 = vmatprep.subr.bf16.mxu0 0
        %2073 = vmatpush1.bf16.msra.mxu0 0
        %2074 = vmatprep.subr.bf16.mxu0 0
        %2075 = vmatpush1.bf16.msra.mxu0 0
        %2076 = vmatprep.subr.bf16.mxu0 0
        %2077 = vmatpush1.bf16.msra.mxu0 0
        %2078 = vmatprep.subr.bf16.mxu0 0
        %2079 = vmatpush1.bf16.msra.mxu0 0
        %2080 = vmatprep.subr.bf16.mxu0 0
        %2081 = vmatpush1.bf16.msra.mxu0 0
        %2082 = vmatprep.subr.bf16.mxu0 0
        %2083 = vmatpush1.bf16.msra.mxu0 0
        %2084 = vmatprep.subr.bf16.mxu0 0
        %2085 = vmatpush1.bf16.msra.mxu0 0
        %2086 = vmatprep.subr.bf16.mxu0 0
        %2087 = vmatpush1.bf16.msra.mxu0 %v753
        %2088 = vmatprep.subr.bf16.mxu0 0
        %2089 = vmatpush2.bf16.msra.mxu0 0
        %2090 = vmatprep.subr.bf16.mxu0 0
        %2091 = vmatpush2.bf16.msra.mxu0 0
        %2092 = vmatprep.subr.bf16.mxu0 0
        %2093 = vmatpush2.bf16.msra.mxu0 0
        %2094 = vmatprep.subr.bf16.mxu0 0
        %2095 = vmatpush2.bf16.msra.mxu0 0
        %2096 = vmatprep.subr.bf16.mxu0 0
        %2097 = vmatpush2.bf16.msra.mxu0 0
        %2098 = vmatprep.subr.bf16.mxu0 0
        %2099 = vmatpush2.bf16.msra.mxu0 0
        %2100 = vmatprep.subr.bf16.mxu0 0
        %2101 = vmatpush2.bf16.msra.mxu0 0
        %2102 = vmatprep.subr.bf16.mxu0 0
        %2103 = vmatpush2.bf16.msra.mxu0 0
        %2104 = vmatprep.mubr.bf16.mxu0 0
        %2105 = vmatmul.mubr.bf16.gmra.mxu0 %v2070
        %v2106 = vpop.f32.mrf.mxu0
        %v2107 = vadd.f32 0.0, %v2106
        %v2108 = vpop.f32.mrf.mxu0
        %v2109 = vpop.f32.mrf.mxu0
        %v2110 = vadd.f32 0.0, %v2109
        %v2111 = vpop.f32.mrf.mxu0
        %2112 = vdwg.mxu0
        %v2114 = vsel %vm788, %v1968, 0
        %2116 = vmatprep.subr.bf16.mxu0 0
        %2117 = vmatpush1.bf16.msra.mxu0 0
        %2118 = vmatprep.subr.bf16.mxu0 0
        %2119 = vmatpush1.bf16.msra.mxu0 0
        %2120 = vmatprep.subr.bf16.mxu0 0
        %2121 = vmatpush1.bf16.msra.mxu0 0
        %2122 = vmatprep.subr.bf16.mxu0 0
        %2123 = vmatpush1.bf16.msra.mxu0 0
        %2124 = vmatprep.subr.bf16.mxu0 0
        %2125 = vmatpush1.bf16.msra.mxu0 0
        %2126 = vmatprep.subr.bf16.mxu0 0
        %2127 = vmatpush1.bf16.msra.mxu0 0
        %2128 = vmatprep.subr.bf16.mxu0 0
        %2129 = vmatpush1.bf16.msra.mxu0 0
        %2130 = vmatprep.subr.bf16.mxu0 0
        %2131 = vmatpush1.bf16.msra.mxu0 %v759
        %2132 = vmatprep.subr.bf16.mxu0 0
        %2133 = vmatpush2.bf16.msra.mxu0 0
        %2134 = vmatprep.subr.bf16.mxu0 0
        %2135 = vmatpush2.bf16.msra.mxu0 0
        %2136 = vmatprep.subr.bf16.mxu0 0
        %2137 = vmatpush2.bf16.msra.mxu0 0
        %2138 = vmatprep.subr.bf16.mxu0 0
        %2139 = vmatpush2.bf16.msra.mxu0 0
        %2140 = vmatprep.subr.bf16.mxu0 0
        %2141 = vmatpush2.bf16.msra.mxu0 0
        %2142 = vmatprep.subr.bf16.mxu0 0
        %2143 = vmatpush2.bf16.msra.mxu0 0
        %2144 = vmatprep.subr.bf16.mxu0 0
        %2145 = vmatpush2.bf16.msra.mxu0 0
        %2146 = vmatprep.subr.bf16.mxu0 0
        %2147 = vmatpush2.bf16.msra.mxu0 0
        %2148 = vmatprep.mubr.bf16.mxu0 0
        %2149 = vmatmul.mubr.bf16.gmra.mxu0 %v2114
        %v2150 = vpop.f32.mrf.mxu0
        %v2151 = vadd.f32 0.0, %v2150
        %v2152 = vpop.f32.mrf.mxu0
        %v2153 = vpop.f32.mrf.mxu0
        %v2154 = vadd.f32 0.0, %v2153
        %v2155 = vpop.f32.mrf.mxu0
        %2156 = vdwg.mxu0
        %v2158 = vsel %vm788, %v1969, 0
        %2160 = vmatprep.subr.bf16.mxu0 0
        %2161 = vmatpush1.bf16.msra.mxu0 0
        %2162 = vmatprep.subr.bf16.mxu0 0
        %2163 = vmatpush1.bf16.msra.mxu0 0
        %2164 = vmatprep.subr.bf16.mxu0 0
        %2165 = vmatpush1.bf16.msra.mxu0 0
        %2166 = vmatprep.subr.bf16.mxu0 0
        %2167 = vmatpush1.bf16.msra.mxu0 0
        %2168 = vmatprep.subr.bf16.mxu0 0
        %2169 = vmatpush1.bf16.msra.mxu0 0
        %2170 = vmatprep.subr.bf16.mxu0 0
        %2171 = vmatpush1.bf16.msra.mxu0 0
        %2172 = vmatprep.subr.bf16.mxu0 0
        %2173 = vmatpush1.bf16.msra.mxu0 0
        %2174 = vmatprep.subr.bf16.mxu0 0
        %2175 = vmatpush1.bf16.msra.mxu0 %v765
        %2176 = vmatprep.subr.bf16.mxu0 0
        %2177 = vmatpush2.bf16.msra.mxu0 0
        %2178 = vmatprep.subr.bf16.mxu0 0
        %2179 = vmatpush2.bf16.msra.mxu0 0
        %2180 = vmatprep.subr.bf16.mxu0 0
        %2181 = vmatpush2.bf16.msra.mxu0 0
        %2182 = vmatprep.subr.bf16.mxu0 0
        %2183 = vmatpush2.bf16.msra.mxu0 0
        %2184 = vmatprep.subr.bf16.mxu0 0
        %2185 = vmatpush2.bf16.msra.mxu0 0
        %2186 = vmatprep.subr.bf16.mxu0 0
        %2187 = vmatpush2.bf16.msra.mxu0 0
        %2188 = vmatprep.subr.bf16.mxu0 0
        %2189 = vmatpush2.bf16.msra.mxu0 0
        %2190 = vmatprep.subr.bf16.mxu0 0
        %2191 = vmatpush2.bf16.msra.mxu0 0
        %2192 = vmatprep.mubr.bf16.mxu0 0
        %2193 = vmatmul.mubr.bf16.gmra.mxu0 %v2158
        %v2194 = vpop.f32.mrf.mxu0
        %v2195 = vadd.f32 0.0, %v2194
        %v2196 = vpop.f32.mrf.mxu0
        %v2197 = vpop.f32.mrf.mxu0
        %v2198 = vadd.f32 0.0, %v2197
        %v2199 = vpop.f32.mrf.mxu0
        %2200 = vdwg.mxu0
        %v2202 = vsel %vm788, %v1970, 0
        %2204 = vmatprep.subr.bf16.mxu0 0
        %2205 = vmatpush1.bf16.msra.mxu0 0
        %2206 = vmatprep.subr.bf16.mxu0 0
        %2207 = vmatpush1.bf16.msra.mxu0 0
        %2208 = vmatprep.subr.bf16.mxu0 0
        %2209 = vmatpush1.bf16.msra.mxu0 0
        %2210 = vmatprep.subr.bf16.mxu0 0
        %2211 = vmatpush1.bf16.msra.mxu0 0
        %2212 = vmatprep.subr.bf16.mxu0 0
        %2213 = vmatpush1.bf16.msra.mxu0 0
        %2214 = vmatprep.subr.bf16.mxu0 0
        %2215 = vmatpush1.bf16.msra.mxu0 0
        %2216 = vmatprep.subr.bf16.mxu0 0
        %2217 = vmatpush1.bf16.msra.mxu0 0
        %2218 = vmatprep.subr.bf16.mxu0 0
        %2219 = vmatpush1.bf16.msra.mxu0 %v771
        %2220 = vmatprep.subr.bf16.mxu0 0
        %2221 = vmatpush2.bf16.msra.mxu0 0
        %2222 = vmatprep.subr.bf16.mxu0 0
        %2223 = vmatpush2.bf16.msra.mxu0 0
        %2224 = vmatprep.subr.bf16.mxu0 0
        %2225 = vmatpush2.bf16.msra.mxu0 0
        %2226 = vmatprep.subr.bf16.mxu0 0
        %2227 = vmatpush2.bf16.msra.mxu0 0
        %2228 = vmatprep.subr.bf16.mxu0 0
        %2229 = vmatpush2.bf16.msra.mxu0 0
        %2230 = vmatprep.subr.bf16.mxu0 0
        %2231 = vmatpush2.bf16.msra.mxu0 0
        %2232 = vmatprep.subr.bf16.mxu0 0
        %2233 = vmatpush2.bf16.msra.mxu0 0
        %2234 = vmatprep.subr.bf16.mxu0 0
        %2235 = vmatpush2.bf16.msra.mxu0 0
        %2236 = vmatprep.mubr.bf16.mxu0 0
        %2237 = vmatmul.mubr.bf16.gmra.mxu0 %v2202
        %v2238 = vpop.f32.mrf.mxu0
        %v2239 = vadd.f32 0.0, %v2238
        %v2240 = vpop.f32.mrf.mxu0
        %v2241 = vpop.f32.mrf.mxu0
        %v2242 = vadd.f32 0.0, %v2241
        %v2243 = vpop.f32.mrf.mxu0
        %2244 = vdwg.mxu0
        %v2246 = vsel %vm788, %v1971, 0
        %2248 = vmatprep.subr.bf16.mxu0 0
        %2249 = vmatpush1.bf16.msra.mxu0 0
        %2250 = vmatprep.subr.bf16.mxu0 0
        %2251 = vmatpush1.bf16.msra.mxu0 0
        %2252 = vmatprep.subr.bf16.mxu0 0
        %2253 = vmatpush1.bf16.msra.mxu0 0
        %2254 = vmatprep.subr.bf16.mxu0 0
        %2255 = vmatpush1.bf16.msra.mxu0 0
        %2256 = vmatprep.subr.bf16.mxu0 0
        %2257 = vmatpush1.bf16.msra.mxu0 0
        %2258 = vmatprep.subr.bf16.mxu0 0
        %2259 = vmatpush1.bf16.msra.mxu0 0
        %2260 = vmatprep.subr.bf16.mxu0 0
        %2261 = vmatpush1.bf16.msra.mxu0 0
        %2262 = vmatprep.subr.bf16.mxu0 0
        %2263 = vmatpush1.bf16.msra.mxu0 %v777
        %2264 = vmatprep.subr.bf16.mxu0 0
        %2265 = vmatpush2.bf16.msra.mxu0 0
        %2266 = vmatprep.subr.bf16.mxu0 0
        %2267 = vmatpush2.bf16.msra.mxu0 0
        %2268 = vmatprep.subr.bf16.mxu0 0
        %2269 = vmatpush2.bf16.msra.mxu0 0
        %2270 = vmatprep.subr.bf16.mxu0 0
        %2271 = vmatpush2.bf16.msra.mxu0 0
        %2272 = vmatprep.subr.bf16.mxu0 0
        %2273 = vmatpush2.bf16.msra.mxu0 0
        %2274 = vmatprep.subr.bf16.mxu0 0
        %2275 = vmatpush2.bf16.msra.mxu0 0
        %2276 = vmatprep.subr.bf16.mxu0 0
        %2277 = vmatpush2.bf16.msra.mxu0 0
        %2278 = vmatprep.subr.bf16.mxu0 0
        %2279 = vmatpush2.bf16.msra.mxu0 0
        %2280 = vmatprep.mubr.bf16.mxu0 0
        %2281 = vmatmul.mubr.bf16.gmra.mxu0 %v2246
        %v2282 = vpop.f32.mrf.mxu0
        %v2283 = vadd.f32 0.0, %v2282
        %v2284 = vpop.f32.mrf.mxu0
        %v2285 = vpop.f32.mrf.mxu0
        %v2286 = vadd.f32 0.0, %v2285
        %v2287 = vpop.f32.mrf.mxu0
        %2288 = vdwg.mxu0
        %v2290 = vsel %vm788, %v1972, 0
        %2292 = vmatprep.subr.bf16.mxu0 0
        %2293 = vmatpush1.bf16.msra.mxu0 0
        %2294 = vmatprep.subr.bf16.mxu0 0
        %2295 = vmatpush1.bf16.msra.mxu0 0
        %2296 = vmatprep.subr.bf16.mxu0 0
        %2297 = vmatpush1.bf16.msra.mxu0 0
        %2298 = vmatprep.subr.bf16.mxu0 0
        %2299 = vmatpush1.bf16.msra.mxu0 0
        %2300 = vmatprep.subr.bf16.mxu0 0
        %2301 = vmatpush1.bf16.msra.mxu0 0
        %2302 = vmatprep.subr.bf16.mxu0 0
        %2303 = vmatpush1.bf16.msra.mxu0 0
        %2304 = vmatprep.subr.bf16.mxu0 0
        %2305 = vmatpush1.bf16.msra.mxu0 0
        %2306 = vmatprep.subr.bf16.mxu0 0
        %2307 = vmatpush1.bf16.msra.mxu0 %v783
        %2308 = vmatprep.subr.bf16.mxu0 0
        %2309 = vmatpush2.bf16.msra.mxu0 0
        %2310 = vmatprep.subr.bf16.mxu0 0
        %2311 = vmatpush2.bf16.msra.mxu0 0
        %2312 = vmatprep.subr.bf16.mxu0 0
        %2313 = vmatpush2.bf16.msra.mxu0 0
        %2314 = vmatprep.subr.bf16.mxu0 0
        %2315 = vmatpush2.bf16.msra.mxu0 0
        %2316 = vmatprep.subr.bf16.mxu0 0
        %2317 = vmatpush2.bf16.msra.mxu0 0
        %2318 = vmatprep.subr.bf16.mxu0 0
        %2319 = vmatpush2.bf16.msra.mxu0 0
        %2320 = vmatprep.subr.bf16.mxu0 0
        %2321 = vmatpush2.bf16.msra.mxu0 0
        %2322 = vmatprep.subr.bf16.mxu0 0
        %2323 = vmatpush2.bf16.msra.mxu0 0
        %2324 = vmatprep.mubr.bf16.mxu0 0
        %2325 = vmatmul.mubr.bf16.gmra.mxu0 %v2290
        %v2326 = vpop.f32.mrf.mxu0
        %v2327 = vadd.f32 0.0, %v2326
        %v2328 = vpop.f32.mrf.mxu0
        %v2329 = vpop.f32.mrf.mxu0
        %v2330 = vadd.f32 0.0, %v2329
        %v2331 = vpop.f32.mrf.mxu0
        %2332 = vdwg.mxu0
        %v2334 = vsel %vm788, %v1973, 0
        %2336 = vmatprep.subr.bf16.mxu0 0
        %2337 = vmatpush1.bf16.msra.mxu0 0
        %2338 = vmatprep.subr.bf16.mxu0 0
        %2339 = vmatpush1.bf16.msra.mxu0 0
        %2340 = vmatprep.subr.bf16.mxu0 0
        %2341 = vmatpush1.bf16.msra.mxu0 0
        %2342 = vmatprep.subr.bf16.mxu0 0
        %2343 = vmatpush1.bf16.msra.mxu0 0
        %2344 = vmatprep.subr.bf16.mxu0 0
        %2345 = vmatpush1.bf16.msra.mxu0 0
        %2346 = vmatprep.subr.bf16.mxu0 0
        %2347 = vmatpush1.bf16.msra.mxu0 0
        %2348 = vmatprep.subr.bf16.mxu0 0
        %2349 = vmatpush1.bf16.msra.mxu0 0
        %2350 = vmatprep.subr.bf16.mxu0 0
        %2351 = vmatpush1.bf16.msra.mxu0 %v743
        %2352 = vmatprep.subr.bf16.mxu0 0
        %2353 = vmatpush2.bf16.msra.mxu0 0
        %2354 = vmatprep.subr.bf16.mxu0 0
        %2355 = vmatpush2.bf16.msra.mxu0 0
        %2356 = vmatprep.subr.bf16.mxu0 0
        %2357 = vmatpush2.bf16.msra.mxu0 0
        %2358 = vmatprep.subr.bf16.mxu0 0
        %2359 = vmatpush2.bf16.msra.mxu0 0
        %2360 = vmatprep.subr.bf16.mxu0 0
        %2361 = vmatpush2.bf16.msra.mxu0 0
        %2362 = vmatprep.subr.bf16.mxu0 0
        %2363 = vmatpush2.bf16.msra.mxu0 0
        %2364 = vmatprep.subr.bf16.mxu0 0
        %2365 = vmatpush2.bf16.msra.mxu0 0
        %2366 = vmatprep.subr.bf16.mxu0 0
        %2367 = vmatpush2.bf16.msra.mxu0 0
        %2368 = vmatprep.mubr.bf16.mxu0 0
        %2369 = vmatmul.mubr.bf16.gmra.mxu0 %v2334
        %v2370 = vpop.f32.mrf.mxu0
        %v2371 = vadd.f32 0.0, %v2370
        %v2372 = vpop.f32.mrf.mxu0
        %v2373 = vpop.f32.mrf.mxu0
        %v2374 = vadd.f32 0.0, %v2373
        %v2375 = vpop.f32.mrf.mxu0
        %2376 = vdwg.mxu0
        %v2378 = vsel %vm788, %v1974, 0
        %2380 = vmatprep.subr.bf16.mxu0 0
        %2381 = vmatpush1.bf16.msra.mxu0 0
        %2382 = vmatprep.subr.bf16.mxu0 0
        %2383 = vmatpush1.bf16.msra.mxu0 0
        %2384 = vmatprep.subr.bf16.mxu0 0
        %2385 = vmatpush1.bf16.msra.mxu0 0
        %2386 = vmatprep.subr.bf16.mxu0 0
        %2387 = vmatpush1.bf16.msra.mxu0 0
        %2388 = vmatprep.subr.bf16.mxu0 0
        %2389 = vmatpush1.bf16.msra.mxu0 0
        %2390 = vmatprep.subr.bf16.mxu0 0
        %2391 = vmatpush1.bf16.msra.mxu0 0
        %2392 = vmatprep.subr.bf16.mxu0 0
        %2393 = vmatpush1.bf16.msra.mxu0 0
        %2394 = vmatprep.subr.bf16.mxu0 0
        %2395 = vmatpush1.bf16.msra.mxu0 %v749
        %2396 = vmatprep.subr.bf16.mxu0 0
        %2397 = vmatpush2.bf16.msra.mxu0 0
        %2398 = vmatprep.subr.bf16.mxu0 0
        %2399 = vmatpush2.bf16.msra.mxu0 0
        %2400 = vmatprep.subr.bf16.mxu0 0
        %2401 = vmatpush2.bf16.msra.mxu0 0
        %2402 = vmatprep.subr.bf16.mxu0 0
        %2403 = vmatpush2.bf16.msra.mxu0 0
        %2404 = vmatprep.subr.bf16.mxu0 0
        %2405 = vmatpush2.bf16.msra.mxu0 0
        %2406 = vmatprep.subr.bf16.mxu0 0
        %2407 = vmatpush2.bf16.msra.mxu0 0
        %2408 = vmatprep.subr.bf16.mxu0 0
        %2409 = vmatpush2.bf16.msra.mxu0 0
        %2410 = vmatprep.subr.bf16.mxu0 0
        %2411 = vmatpush2.bf16.msra.mxu0 0
        %2412 = vmatprep.mubr.bf16.mxu0 0
        %2413 = vmatmul.mubr.bf16.gmra.mxu0 %v2378
        %v2414 = vpop.f32.mrf.mxu0
        %v2415 = vadd.f32 0.0, %v2414
        %v2416 = vpop.f32.mrf.mxu0
        %v2417 = vpop.f32.mrf.mxu0
        %v2418 = vadd.f32 0.0, %v2417
        %v2419 = vpop.f32.mrf.mxu0
        %2420 = vdwg.mxu0
        %v2422 = vsel %vm788, %v1975, 0
        %2424 = vmatprep.subr.bf16.mxu0 0
        %2425 = vmatpush1.bf16.msra.mxu0 0
        %2426 = vmatprep.subr.bf16.mxu0 0
        %2427 = vmatpush1.bf16.msra.mxu0 0
        %2428 = vmatprep.subr.bf16.mxu0 0
        %2429 = vmatpush1.bf16.msra.mxu0 0
        %2430 = vmatprep.subr.bf16.mxu0 0
        %2431 = vmatpush1.bf16.msra.mxu0 0
        %2432 = vmatprep.subr.bf16.mxu0 0
        %2433 = vmatpush1.bf16.msra.mxu0 0
        %2434 = vmatprep.subr.bf16.mxu0 0
        %2435 = vmatpush1.bf16.msra.mxu0 0
        %2436 = vmatprep.subr.bf16.mxu0 0
        %2437 = vmatpush1.bf16.msra.mxu0 0
        %2438 = vmatprep.subr.bf16.mxu0 0
        %2439 = vmatpush1.bf16.msra.mxu0 %v755
        %2440 = vmatprep.subr.bf16.mxu0 0
        %2441 = vmatpush2.bf16.msra.mxu0 0
        %2442 = vmatprep.subr.bf16.mxu0 0
        %2443 = vmatpush2.bf16.msra.mxu0 0
        %2444 = vmatprep.subr.bf16.mxu0 0
        %2445 = vmatpush2.bf16.msra.mxu0 0
        %2446 = vmatprep.subr.bf16.mxu0 0
        %2447 = vmatpush2.bf16.msra.mxu0 0
        %2448 = vmatprep.subr.bf16.mxu0 0
        %2449 = vmatpush2.bf16.msra.mxu0 0
        %2450 = vmatprep.subr.bf16.mxu0 0
        %2451 = vmatpush2.bf16.msra.mxu0 0
        %2452 = vmatprep.subr.bf16.mxu0 0
        %2453 = vmatpush2.bf16.msra.mxu0 0
        %2454 = vmatprep.subr.bf16.mxu0 0
        %2455 = vmatpush2.bf16.msra.mxu0 0
        %2456 = vmatprep.mubr.bf16.mxu0 0
        %2457 = vmatmul.mubr.bf16.gmra.mxu0 %v2422
        %v2458 = vpop.f32.mrf.mxu0
        %v2459 = vadd.f32 0.0, %v2458
        %v2460 = vpop.f32.mrf.mxu0
        %v2461 = vpop.f32.mrf.mxu0
        %v2462 = vadd.f32 0.0, %v2461
        %v2463 = vpop.f32.mrf.mxu0
        %2464 = vdwg.mxu0
        %v2466 = vsel %vm788, %v1976, 0
        %2468 = vmatprep.subr.bf16.mxu0 0
        %2469 = vmatpush1.bf16.msra.mxu0 0
        %2470 = vmatprep.subr.bf16.mxu0 0
        %2471 = vmatpush1.bf16.msra.mxu0 0
        %2472 = vmatprep.subr.bf16.mxu0 0
        %2473 = vmatpush1.bf16.msra.mxu0 0
        %2474 = vmatprep.subr.bf16.mxu0 0
        %2475 = vmatpush1.bf16.msra.mxu0 0
        %2476 = vmatprep.subr.bf16.mxu0 0
        %2477 = vmatpush1.bf16.msra.mxu0 0
        %2478 = vmatprep.subr.bf16.mxu0 0
        %2479 = vmatpush1.bf16.msra.mxu0 0
        %2480 = vmatprep.subr.bf16.mxu0 0
        %2481 = vmatpush1.bf16.msra.mxu0 0
        %2482 = vmatprep.subr.bf16.mxu0 0
        %2483 = vmatpush1.bf16.msra.mxu0 %v761
        %2484 = vmatprep.subr.bf16.mxu0 0
        %2485 = vmatpush2.bf16.msra.mxu0 0
        %2486 = vmatprep.subr.bf16.mxu0 0
        %2487 = vmatpush2.bf16.msra.mxu0 0
        %2488 = vmatprep.subr.bf16.mxu0 0
        %2489 = vmatpush2.bf16.msra.mxu0 0
        %2490 = vmatprep.subr.bf16.mxu0 0
        %2491 = vmatpush2.bf16.msra.mxu0 0
        %2492 = vmatprep.subr.bf16.mxu0 0
        %2493 = vmatpush2.bf16.msra.mxu0 0
        %2494 = vmatprep.subr.bf16.mxu0 0
        %2495 = vmatpush2.bf16.msra.mxu0 0
        %2496 = vmatprep.subr.bf16.mxu0 0
        %2497 = vmatpush2.bf16.msra.mxu0 0
        %2498 = vmatprep.subr.bf16.mxu0 0
        %2499 = vmatpush2.bf16.msra.mxu0 0
        %2500 = vmatprep.mubr.bf16.mxu0 0
        %2501 = vmatmul.mubr.bf16.gmra.mxu0 %v2466
        %v2502 = vpop.f32.mrf.mxu0
        %v2503 = vadd.f32 0.0, %v2502
        %v2504 = vpop.f32.mrf.mxu0
        %v2505 = vpop.f32.mrf.mxu0
        %v2506 = vadd.f32 0.0, %v2505
        %v2507 = vpop.f32.mrf.mxu0
        %2508 = vdwg.mxu0
        %v2510 = vsel %vm788, %v1977, 0
        %2512 = vmatprep.subr.bf16.mxu0 0
        %2513 = vmatpush1.bf16.msra.mxu0 0
        %2514 = vmatprep.subr.bf16.mxu0 0
        %2515 = vmatpush1.bf16.msra.mxu0 0
        %2516 = vmatprep.subr.bf16.mxu0 0
        %2517 = vmatpush1.bf16.msra.mxu0 0
        %2518 = vmatprep.subr.bf16.mxu0 0
        %2519 = vmatpush1.bf16.msra.mxu0 0
        %2520 = vmatprep.subr.bf16.mxu0 0
        %2521 = vmatpush1.bf16.msra.mxu0 0
        %2522 = vmatprep.subr.bf16.mxu0 0
        %2523 = vmatpush1.bf16.msra.mxu0 0
        %2524 = vmatprep.subr.bf16.mxu0 0
        %2525 = vmatpush1.bf16.msra.mxu0 0
        %2526 = vmatprep.subr.bf16.mxu0 0
        %2527 = vmatpush1.bf16.msra.mxu0 %v767
        %2528 = vmatprep.subr.bf16.mxu0 0
        %2529 = vmatpush2.bf16.msra.mxu0 0
        %2530 = vmatprep.subr.bf16.mxu0 0
        %2531 = vmatpush2.bf16.msra.mxu0 0
        %2532 = vmatprep.subr.bf16.mxu0 0
        %2533 = vmatpush2.bf16.msra.mxu0 0
        %2534 = vmatprep.subr.bf16.mxu0 0
        %2535 = vmatpush2.bf16.msra.mxu0 0
        %2536 = vmatprep.subr.bf16.mxu0 0
        %2537 = vmatpush2.bf16.msra.mxu0 0
        %2538 = vmatprep.subr.bf16.mxu0 0
        %2539 = vmatpush2.bf16.msra.mxu0 0
        %2540 = vmatprep.subr.bf16.mxu0 0
        %2541 = vmatpush2.bf16.msra.mxu0 0
        %2542 = vmatprep.subr.bf16.mxu0 0
        %2543 = vmatpush2.bf16.msra.mxu0 0
        %2544 = vmatprep.mubr.bf16.mxu0 0
        %2545 = vmatmul.mubr.bf16.gmra.mxu0 %v2510
        %v2546 = vpop.f32.mrf.mxu0
        %v2547 = vadd.f32 0.0, %v2546
        %v2548 = vpop.f32.mrf.mxu0
        %v2549 = vpop.f32.mrf.mxu0
        %v2550 = vadd.f32 0.0, %v2549
        %v2551 = vpop.f32.mrf.mxu0
        %2552 = vdwg.mxu0
        %v2554 = vsel %vm788, %v1978, 0
        %2556 = vmatprep.subr.bf16.mxu0 0
        %2557 = vmatpush1.bf16.msra.mxu0 0
        %2558 = vmatprep.subr.bf16.mxu0 0
        %2559 = vmatpush1.bf16.msra.mxu0 0
        %2560 = vmatprep.subr.bf16.mxu0 0
        %2561 = vmatpush1.bf16.msra.mxu0 0
        %2562 = vmatprep.subr.bf16.mxu0 0
        %2563 = vmatpush1.bf16.msra.mxu0 0
        %2564 = vmatprep.subr.bf16.mxu0 0
        %2565 = vmatpush1.bf16.msra.mxu0 0
        %2566 = vmatprep.subr.bf16.mxu0 0
        %2567 = vmatpush1.bf16.msra.mxu0 0
        %2568 = vmatprep.subr.bf16.mxu0 0
        %2569 = vmatpush1.bf16.msra.mxu0 0
        %2570 = vmatprep.subr.bf16.mxu0 0
        %2571 = vmatpush1.bf16.msra.mxu0 %v773
        %2572 = vmatprep.subr.bf16.mxu0 0
        %2573 = vmatpush2.bf16.msra.mxu0 0
        %2574 = vmatprep.subr.bf16.mxu0 0
        %2575 = vmatpush2.bf16.msra.mxu0 0
        %2576 = vmatprep.subr.bf16.mxu0 0
        %2577 = vmatpush2.bf16.msra.mxu0 0
        %2578 = vmatprep.subr.bf16.mxu0 0
        %2579 = vmatpush2.bf16.msra.mxu0 0
        %2580 = vmatprep.subr.bf16.mxu0 0
        %2581 = vmatpush2.bf16.msra.mxu0 0
        %2582 = vmatprep.subr.bf16.mxu0 0
        %2583 = vmatpush2.bf16.msra.mxu0 0
        %2584 = vmatprep.subr.bf16.mxu0 0
        %2585 = vmatpush2.bf16.msra.mxu0 0
        %2586 = vmatprep.subr.bf16.mxu0 0
        %2587 = vmatpush2.bf16.msra.mxu0 0
        %2588 = vmatprep.mubr.bf16.mxu0 0
        %2589 = vmatmul.mubr.bf16.gmra.mxu0 %v2554
        %v2590 = vpop.f32.mrf.mxu0
        %v2591 = vadd.f32 0.0, %v2590
        %v2592 = vpop.f32.mrf.mxu0
        %v2593 = vpop.f32.mrf.mxu0
        %v2594 = vadd.f32 0.0, %v2593
        %v2595 = vpop.f32.mrf.mxu0
        %2596 = vdwg.mxu0
        %v2598 = vsel %vm788, %v1979, 0
        %2600 = vmatprep.subr.bf16.mxu0 0
        %2601 = vmatpush1.bf16.msra.mxu0 0
        %2602 = vmatprep.subr.bf16.mxu0 0
        %2603 = vmatpush1.bf16.msra.mxu0 0
        %2604 = vmatprep.subr.bf16.mxu0 0
        %2605 = vmatpush1.bf16.msra.mxu0 0
        %2606 = vmatprep.subr.bf16.mxu0 0
        %2607 = vmatpush1.bf16.msra.mxu0 0
        %2608 = vmatprep.subr.bf16.mxu0 0
        %2609 = vmatpush1.bf16.msra.mxu0 0
        %2610 = vmatprep.subr.bf16.mxu0 0
        %2611 = vmatpush1.bf16.msra.mxu0 0
        %2612 = vmatprep.subr.bf16.mxu0 0
        %2613 = vmatpush1.bf16.msra.mxu0 0
        %2614 = vmatprep.subr.bf16.mxu0 0
        %2615 = vmatpush1.bf16.msra.mxu0 %v779
        %2616 = vmatprep.subr.bf16.mxu0 0
        %2617 = vmatpush2.bf16.msra.mxu0 0
        %2618 = vmatprep.subr.bf16.mxu0 0
        %2619 = vmatpush2.bf16.msra.mxu0 0
        %2620 = vmatprep.subr.bf16.mxu0 0
        %2621 = vmatpush2.bf16.msra.mxu0 0
        %2622 = vmatprep.subr.bf16.mxu0 0
        %2623 = vmatpush2.bf16.msra.mxu0 0
        %2624 = vmatprep.subr.bf16.mxu0 0
        %2625 = vmatpush2.bf16.msra.mxu0 0
        %2626 = vmatprep.subr.bf16.mxu0 0
        %2627 = vmatpush2.bf16.msra.mxu0 0
        %2628 = vmatprep.subr.bf16.mxu0 0
        %2629 = vmatpush2.bf16.msra.mxu0 0
        %2630 = vmatprep.subr.bf16.mxu0 0
        %2631 = vmatpush2.bf16.msra.mxu0 0
        %2632 = vmatprep.mubr.bf16.mxu0 0
        %2633 = vmatmul.mubr.bf16.gmra.mxu0 %v2598
        %v2634 = vpop.f32.mrf.mxu0
        %v2635 = vadd.f32 0.0, %v2634
        %v2636 = vpop.f32.mrf.mxu0
        %v2637 = vpop.f32.mrf.mxu0
        %v2638 = vadd.f32 0.0, %v2637
        %v2639 = vpop.f32.mrf.mxu0
        %2640 = vdwg.mxu0
        %v2642 = vsel %vm788, %v1980, 0
        %2644 = vmatprep.subr.bf16.mxu0 0
        %2645 = vmatpush1.bf16.msra.mxu0 0
        %2646 = vmatprep.subr.bf16.mxu0 0
        %2647 = vmatpush1.bf16.msra.mxu0 0
        %2648 = vmatprep.subr.bf16.mxu0 0
        %2649 = vmatpush1.bf16.msra.mxu0 0
        %2650 = vmatprep.subr.bf16.mxu0 0
        %2651 = vmatpush1.bf16.msra.mxu0 0
        %2652 = vmatprep.subr.bf16.mxu0 0
        %2653 = vmatpush1.bf16.msra.mxu0 0
        %2654 = vmatprep.subr.bf16.mxu0 0
        %2655 = vmatpush1.bf16.msra.mxu0 0
        %2656 = vmatprep.subr.bf16.mxu0 0
        %2657 = vmatpush1.bf16.msra.mxu0 0
        %2658 = vmatprep.subr.bf16.mxu0 0
        %2659 = vmatpush1.bf16.msra.mxu0 %v785
        %2660 = vmatprep.subr.bf16.mxu0 0
        %2661 = vmatpush2.bf16.msra.mxu0 0
        %2662 = vmatprep.subr.bf16.mxu0 0
        %2663 = vmatpush2.bf16.msra.mxu0 0
        %2664 = vmatprep.subr.bf16.mxu0 0
        %2665 = vmatpush2.bf16.msra.mxu0 0
        %2666 = vmatprep.subr.bf16.mxu0 0
        %2667 = vmatpush2.bf16.msra.mxu0 0
        %2668 = vmatprep.subr.bf16.mxu0 0
        %2669 = vmatpush2.bf16.msra.mxu0 0
        %2670 = vmatprep.subr.bf16.mxu0 0
        %2671 = vmatpush2.bf16.msra.mxu0 0
        %2672 = vmatprep.subr.bf16.mxu0 0
        %2673 = vmatpush2.bf16.msra.mxu0 0
        %2674 = vmatprep.subr.bf16.mxu0 0
        %2675 = vmatpush2.bf16.msra.mxu0 0
        %2676 = vmatprep.mubr.bf16.mxu0 0
        %2677 = vmatmul.mubr.bf16.gmra.mxu0 %v2642
        %v2678 = vpop.f32.mrf.mxu0
        %v2679 = vadd.f32 0.0, %v2678
        %v2680 = vpop.f32.mrf.mxu0
        %v2681 = vpop.f32.mrf.mxu0
        %v2682 = vadd.f32 0.0, %v2681
        %v2683 = vpop.f32.mrf.mxu0
        %2684 = vdwg.mxu0
        %2687 = vrot.lane.b32.xlu0 %v2063, 16
        %v2688 = vpop.permute.xlu0 %2687
        %2689 = vrot.lane.b32.xlu0 %v2066, 16
        %v2690 = vpop.permute.xlu0 %2689
        %2695 = vrot.lane.b32.xlu0 %v2107, 32
        %v2696 = vpop.permute.xlu0 %2695
        %2697 = vrot.lane.b32.xlu0 %v2110, 32
        %v2698 = vpop.permute.xlu0 %2697
        %2703 = vrot.lane.b32.xlu0 %v2151, 48
        %v2704 = vpop.permute.xlu0 %2703
        %2705 = vrot.lane.b32.xlu0 %v2154, 48
        %v2706 = vpop.permute.xlu0 %2705
        %2711 = vrot.lane.b32.xlu0 %v2195, 64
        %v2712 = vpop.permute.xlu0 %2711
        %2713 = vrot.lane.b32.xlu0 %v2198, 64
        %v2714 = vpop.permute.xlu0 %2713
        %2719 = vrot.lane.b32.xlu0 %v2239, 80
        %v2720 = vpop.permute.xlu0 %2719
        %2721 = vrot.lane.b32.xlu0 %v2242, 80
        %v2722 = vpop.permute.xlu0 %2721
        %2727 = vrot.lane.b32.xlu0 %v2283, 96
        %v2728 = vpop.permute.xlu0 %2727
        %2729 = vrot.lane.b32.xlu0 %v2286, 96
        %v2730 = vpop.permute.xlu0 %2729
        %2735 = vrot.lane.b32.xlu0 %v2327, 112
        %v2736 = vpop.permute.xlu0 %2735
        %2737 = vrot.lane.b32.xlu0 %v2330, 112
        %v2738 = vpop.permute.xlu0 %2737
        %v2741 = vsel %vm788, %v2019, %v2688
        %v2742 = vsel %vm788, %v2022, %v2690
        %vm2743 = vcmask 261120
        %v2744 = vsel %vm2743, %v2741, %v2696
        %v2745 = vsel %vm2743, %v2742, %v2698
        %vm2746 = vcmask 392192
        %v2747 = vsel %vm2746, %v2744, %v2704
        %v2748 = vsel %vm2746, %v2745, %v2706
        %vm2749 = vcmask 523264
        %v2750 = vsel %vm2749, %v2747, %v2712
        %v2751 = vsel %vm2749, %v2748, %v2714
        %vm2752 = vcmask 654336
        %v2753 = vsel %vm2752, %v2750, %v2720
        %v2754 = vsel %vm2752, %v2751, %v2722
        %vm2755 = vcmask 785408
        %v2756 = vsel %vm2755, %v2753, %v2728
        %v2757 = vsel %vm2755, %v2754, %v2730
        %vm2758 = vcmask 916480
        %v2759 = vsel %vm2758, %v2756, %v2736
        %v2760 = vsel %vm2758, %v2757, %v2738
        %2763 = vrot.lane.b32.xlu0 %v2415, 16
        %v2764 = vpop.permute.xlu0 %2763
        %2765 = vrot.lane.b32.xlu0 %v2418, 16
        %v2766 = vpop.permute.xlu0 %2765
        %2771 = vrot.lane.b32.xlu0 %v2459, 32
        %v2772 = vpop.permute.xlu0 %2771
        %2773 = vrot.lane.b32.xlu0 %v2462, 32
        %v2774 = vpop.permute.xlu0 %2773
        %2779 = vrot.lane.b32.xlu0 %v2503, 48
        %v2780 = vpop.permute.xlu0 %2779
        %2781 = vrot.lane.b32.xlu0 %v2506, 48
        %v2782 = vpop.permute.xlu0 %2781
        %2787 = vrot.lane.b32.xlu0 %v2547, 64
        %v2788 = vpop.permute.xlu0 %2787
        %2789 = vrot.lane.b32.xlu0 %v2550, 64
        %v2790 = vpop.permute.xlu0 %2789
        %2795 = vrot.lane.b32.xlu0 %v2591, 80
        %v2796 = vpop.permute.xlu0 %2795
        %2797 = vrot.lane.b32.xlu0 %v2594, 80
        %v2798 = vpop.permute.xlu0 %2797
        %2803 = vrot.lane.b32.xlu0 %v2635, 96
        %v2804 = vpop.permute.xlu0 %2803
        %2805 = vrot.lane.b32.xlu0 %v2638, 96
        %v2806 = vpop.permute.xlu0 %2805
        %2811 = vrot.lane.b32.xlu0 %v2679, 112
        %v2812 = vpop.permute.xlu0 %2811
        %2813 = vrot.lane.b32.xlu0 %v2682, 112
        %v2814 = vpop.permute.xlu0 %2813
        %v2817 = vsel %vm788, %v2371, %v2764
        %v2818 = vsel %vm788, %v2374, %v2766
        %v2819 = vsel %vm2743, %v2817, %v2772
        %v2820 = vsel %vm2743, %v2818, %v2774
        %v2821 = vsel %vm2746, %v2819, %v2780
        %v2822 = vsel %vm2746, %v2820, %v2782
        %v2823 = vsel %vm2749, %v2821, %v2788
        %v2824 = vsel %vm2749, %v2822, %v2790
        %v2825 = vsel %vm2752, %v2823, %v2796
        %v2826 = vsel %vm2752, %v2824, %v2798
        %v2827 = vsel %vm2755, %v2825, %v2804
        %v2828 = vsel %vm2755, %v2826, %v2806
        %v2829 = vsel %vm2758, %v2827, %v2812
        %v2830 = vsel %vm2758, %v2828, %v2814
        %v2831 = vpack.c.bf16 %v2760, %v2759
        %v2832 = vpack.c.bf16 %v2830, %v2829
        %v2833 = vld [vmem:[#allocation8] sm:$0xf]
        %v2834 = vld [vmem:[#allocation8 + $0x4] sm:$0xf]
        %v2835 = vld [vmem:[#allocation8 + $0x8] sm:$0xf]
        %v2836 = vld [vmem:[#allocation8 + $0xc] sm:$0xf]
        %v2837 = vld [vmem:[#allocation8 + $0x10] sm:$0xf]
        %v2838 = vld [vmem:[#allocation8 + $0x14] sm:$0xf]
        %v2839 = vld [vmem:[#allocation8 + $0x18] sm:$0xf]
        %v2840 = vld [vmem:[#allocation8 + $0x1c] sm:$0xf]
        %v2841 = vld [vmem:[#allocation8 + $0x20] sm:$0xf]
        %v2842 = vld [vmem:[#allocation8 + $0x24] sm:$0xf]
        %v2843 = vld [vmem:[#allocation8 + $0x28] sm:$0xf]
        %v2844 = vld [vmem:[#allocation8 + $0x2c] sm:$0xf]
        %v2845 = vld [vmem:[#allocation8 + $0x30] sm:$0xf]
        %v2846 = vld [vmem:[#allocation8 + $0x34] sm:$0xf]
        %v2847 = vld [vmem:[#allocation8 + $0x38] sm:$0xf]
        %v2848 = vld [vmem:[#allocation8 + $0x3c] sm:$0xf]
        %v2849 = vld [vmem:[%s5] sm:$0x1]
        %v2851 = vlaneseq
        %v2852 = vshrl.u32 %v2851, 7
        %v2853 = vsub.s32 0, %v2852
        %v2854 = vrot.slane %v2849, %v2853
        %v2872 = vunpack.c.l.b16 %v2833
        %v2873 = vunpack.c.l.b16 %v2834
        %v2874 = vunpack.c.l.b16 %v2835
        %v2875 = vunpack.c.l.b16 %v2836
        %v2876 = vunpack.c.l.b16 %v2837
        %v2877 = vunpack.c.l.b16 %v2838
        %v2878 = vunpack.c.l.b16 %v2839
        %v2879 = vunpack.c.l.b16 %v2840
        %v2880 = vunpack.c.l.b16 %v2841
        %v2881 = vunpack.c.l.b16 %v2842
        %v2882 = vunpack.c.l.b16 %v2843
        %v2883 = vunpack.c.l.b16 %v2844
        %v2884 = vunpack.c.l.b16 %v2845
        %v2885 = vunpack.c.l.b16 %v2846
        %v2886 = vunpack.c.l.b16 %v2847
        %v2887 = vunpack.c.l.b16 %v2848
        %v2888 = vpack.c.b16 %v2873, %v2872
        %v2889 = vpack.c.b16 %v2875, %v2874
        %v2890 = vpack.c.b16 %v2877, %v2876
        %v2891 = vpack.c.b16 %v2879, %v2878
        %v2892 = vpack.c.b16 %v2881, %v2880
        %v2893 = vpack.c.b16 %v2883, %v2882
        %v2894 = vpack.c.b16 %v2885, %v2884
        %v2895 = vpack.c.b16 %v2887, %v2886
        %2904 = vmatprep.subr.bf16.mxu0 0
        %2905 = vmatpush1.bf16.msra.mxu0 %v2895
        %2906 = vmatprep.subr.bf16.mxu0 0
        %2907 = vmatpush1.bf16.msra.mxu0 %v2894
        %2908 = vmatprep.subr.bf16.mxu0 0
        %2909 = vmatpush1.bf16.msra.mxu0 %v2893
        %2910 = vmatprep.subr.bf16.mxu0 0
        %2911 = vmatpush1.bf16.msra.mxu0 %v2892
        %2912 = vmatprep.subr.bf16.mxu0 0
        %2913 = vmatpush1.bf16.msra.mxu0 %v2891
        %2914 = vmatprep.subr.bf16.mxu0 0
        %2915 = vmatpush1.bf16.msra.mxu0 %v2890
        %2916 = vmatprep.subr.bf16.mxu0 0
        %2917 = vmatpush1.bf16.msra.mxu0 %v2889
        %2918 = vmatprep.subr.bf16.mxu0 0
        %2919 = vmatpush1.bf16.msra.mxu0 %v2888
        %2920 = vmatprep.subr.bf16.mxu0 0
        %2921 = vmatpush2.bf16.msra.mxu0 0
        %2922 = vmatprep.subr.bf16.mxu0 0
        %2923 = vmatpush2.bf16.msra.mxu0 0
        %2924 = vmatprep.subr.bf16.mxu0 0
        %2925 = vmatpush2.bf16.msra.mxu0 0
        %2926 = vmatprep.subr.bf16.mxu0 0
        %2927 = vmatpush2.bf16.msra.mxu0 0
        %2928 = vmatprep.subr.bf16.mxu0 0
        %2929 = vmatpush2.bf16.msra.mxu0 0
        %2930 = vmatprep.subr.bf16.mxu0 0
        %2931 = vmatpush2.bf16.msra.mxu0 0
        %2932 = vmatprep.subr.bf16.mxu0 0
        %2933 = vmatpush2.bf16.msra.mxu0 0
        %2934 = vmatprep.subr.bf16.mxu0 0
        %2935 = vmatpush2.bf16.msra.mxu0 0
        %2936 = vmatprep.mubr.bf16.mxu0 0
        %2937 = vmatmul.mubr.bf16.gmra.mxu0 %v2831
        %v2938 = vpop.f32.mrf.mxu0
        %v2939 = vadd.f32 %v2854, %v2938
        %v2940 = vpop.f32.mrf.mxu0
        %v2941 = vpop.f32.mrf.mxu0
        %v2942 = vadd.f32 %v2854, %v2941
        %v2943 = vpop.f32.mrf.mxu0
        %2944 = vmatprep.mubr.bf16.mxu0 0
        %2945 = vmatmul.mubr.bf16.gmra.mxu0 %v2832
        %v2946 = vpop.f32.mrf.mxu0
        %v2947 = vadd.f32 %v2854, %v2946
        %v2948 = vpop.f32.mrf.mxu0
        %v2949 = vpop.f32.mrf.mxu0
        %v2950 = vadd.f32 %v2854, %v2949
        %v2951 = vpop.f32.mrf.mxu0
        %2952 = vdwg.mxu0
        %2953 = vst [vmem:[%s370] sm:$0xff] %v2939
        %2954 = vst [vmem:[%s370 + $0x8] sm:$0xff] %v2942
        %2955 = vst [vmem:[%s370 + $0x10] sm:$0xff] %v2947
        %2956 = vst [vmem:[%s370 + $0x18] sm:$0xff] %v2950
        %s2957 = sand.u32 %s176, 1
        %s2958 = scalar_lea.sflag [#allocation4], %s2957
        %s2959 = sand.u32 %s176, 1
        %s2960 = smul.addr %s2959, 32
        %s2961 = scalar_lea.vmem [#allocation10], %s2960
        %s2962 = sand.u32 %s202, 1
        %s2963 = scalar_lea.sflag [#allocation12], %s2962
        %s2964 = sand.u32 %s202, 1
        %s2965 = smul.addr %s2964, 256
        %s2966 = scalar_lea.vmem [#allocation11], %s2965
        // Predicated region
        $region61: #{tpu_custom_call.1} parent=43 // pred_check
          %p2967 = pneg %p186
        $region62: #{tpu_custom_call.1} parent=43 // pred_check_branch
          %2969 = sbr.rel (%p2967) target = $region64
        $region63: #{tpu_custom_call.1} parent=43 // pred_region
          %s2970 = smul.u32 4, %s32
          %s2972 = ssub.s32 512, 512
          %2973 = vsyncadd %s2958, %s2972
          %s2974 = smul.addr %s2970, 128
          %s2975 = scalar_lea.hbm %s6, %s2974
          %s2976 = sshll.u32 %s2961, 4
          %s2977 = int_to_ptr.vmem [resolvable:$true] %s2976
          %2982 = dma.vmem_to_hbm [thread:$0]  %s2977, 512, %s2975, %s2958, 128, 128, 8
        $region64: #{tpu_custom_call.1} parent=43 // pred_fallthru
          _
        // Predicated region
        $region65: #{tpu_custom_call.1} parent=43 // pred_check
          %p2983 = pneg %p212
        $region66: #{tpu_custom_call.1} parent=43 // pred_check_branch
          %2985 = sbr.rel (%p2983) target = $region68
        $region67: #{tpu_custom_call.1} parent=43 // pred_region
          %s2986 = smul.u32 2, %s32
          %s2988 = ssub.s32 4096, 4096
          %2989 = vsyncadd %s2963, %s2988
          %s2990 = smul.addr %s2986, 16
          %s2991 = smul.addr %s2990, 128
          %s2992 = scalar_lea.hbm %s7, %s2991
          %s2993 = sshll.u32 %s2966, 4
          %s2994 = int_to_ptr.vmem [resolvable:$true] %s2993
          %2999 = dma.vmem_to_hbm [thread:$0]  %s2994, 4096, %s2992, %s2963, 128, 128, 8
        $region68: #{tpu_custom_call.1} parent=43 // pred_fallthru
          _
      $region44: #{tpu_custom_call.1} parent=5 // pred_fallthru
        _
      %p3000 = scmp.le.s32.totalorder 2, %s27
      // Predicated region
      $region69: #{tpu_custom_call.1} parent=5 // pred_check
        %p3001 = pneg %p3000
      $region70: #{tpu_custom_call.1} parent=5 // pred_check_branch
        %3003 = sbr.rel (%p3001) target = $region72
      $region71: #{tpu_custom_call.1} parent=5 // pred_region
        %s3004 = ssub.s32 %s27, 2
        // Predicated region
        $region73: #{tpu_custom_call.1} parent=71 // pred_check
          %p3005 = pneg %p192
        $region74: #{tpu_custom_call.1} parent=71 // pred_check_branch
          %3007 = sbr.rel (%p3005) target = $region76
        $region75: #{tpu_custom_call.1} parent=71 // pred_region
          %s3008 = sand.u32 %s177, 1
          %s3009 = scalar_lea.sflag [#allocation4], %s3008
          %s3010 = sand.u32 %s177, 1
          %s3011 = smul.addr %s3010, 32
          %s3012 = scalar_lea.vmem [#allocation10], %s3011
          %3013 = dma.done %s3009, 512
        $region76: #{tpu_custom_call.1} parent=71 // pred_fallthru
          _
        // Predicated region
        $region77: #{tpu_custom_call.1} parent=71 // pred_check
          %p3014 = pneg %p218
        $region78: #{tpu_custom_call.1} parent=71 // pred_check_branch
          %3016 = sbr.rel (%p3014) target = $region80
        $region79: #{tpu_custom_call.1} parent=71 // pred_region
          %s3017 = sand.u32 %s203, 1
          %s3018 = scalar_lea.sflag [#allocation12], %s3017
          %s3019 = sand.u32 %s203, 1
          %s3020 = smul.addr %s3019, 256
          %s3021 = scalar_lea.vmem [#allocation11], %s3020
          %3022 = dma.done %s3018, 4096
        $region80: #{tpu_custom_call.1} parent=71 // pred_fallthru
          _
      $region72: #{tpu_custom_call.1} parent=5 // pred_fallthru
        _
    $region6: #{tpu_custom_call.1} parent=1 // loop_footer
      %s31 = sadd.s32 1, %s27
    $region7: #{tpu_custom_call.1} parent=1 // loop_footer_branch
      %26 = sbr.rel target = $region3
    $region8: #{tpu_custom_call.1} parent=1 // loop_exit
      _
    %3023 = vsyncpa [#allocation3], 1
    %s3024 = scalar_lea.sflag [#allocation3], 1
    %3025 = vsyncpa %s3024, 1
    %3026 = vsyncpa [#allocation6], 1
    %s3027 = scalar_lea.sflag [#allocation6], 1
    %3028 = vsyncpa %s3027, 1
    %3029 = vsyncpa [#allocation9], 1
    %3030 = vsyncpa [#allocation4], 1
    %s3031 = scalar_lea.sflag [#allocation4], 1
    %3032 = vsyncpa %s3031, 1
    %3033 = vsyncpa [#allocation12], 1
    %s3034 = scalar_lea.sflag [#allocation12], 1
    %3035 = vsyncpa %s3034, 1

</llo_original>
